<compile_context>
chip_gen: v5e
topology: v5e:2x2
jax: 0.10.0
libtpu: 0.0.40
codegen_flags: <defaults>
</compile_context>

<pallas_src>
import numpy as np
import jax
import jax.numpy as jnp
from jax import lax
from jax.experimental import pallas as pl
from jax.experimental.pallas import tpu as pltpu

_BN_EPS = 1e-5
_PREC = jax.lax.Precision.HIGHEST


def _bn_fused(x, gamma_col, beta_col):
    # PyTorch BatchNorm1d (training mode) in the transposed (features, batch)
    # layout, with the affine folded into a single scale/shift per feature.
    mean = jnp.mean(x, axis=1, keepdims=True)
    var = jnp.mean((x - mean) ** 2, axis=1, keepdims=True)
    scale = gamma_col * lax.rsqrt(var + _BN_EPS)
    return x * scale + (beta_col - mean * scale)


def _make_kernel(D, B, Wd, H, Tb):
    CWH = D                  # wh[l]^T column blocks start here
    CWO = D + H * Wd         # wo^T (row-padded) column block
    VO = 5 + 3 * H           # first output-layer vector column

    def kernel(disc_ref, rh_ref,                        # scalar prefetch (SMEM)
               s0_ref, vol_ref, dw_ref, w_ref, v_ref,   # VMEM inputs
               cv_ref, path_ref,                        # outputs
               s_scr, cv_scr):                          # scratch
        blk = pl.program_id(0)

        @pl.when(blk == 0)
        def _():
            s_scr[...] = s0_ref[...]
            cv_scr[...] = jnp.zeros_like(cv_scr)

        vol = vol_ref[...]                              # (D, D)

        def vcol(t, k, n):
            # k-th packed per-step parameter vector, as an (n, 1) column.
            return v_ref[t, 0:n, k:k + 1]

        def step(t, carry):
            s_old, cv = carry                           # (D, B), (1, B)
            g = blk * Tb + t                            # global timestep index

            # dW already carries sqrt(dt); vol_mat @ dW^T in transposed layout.
            vol_s_dw = s_old * jnp.dot(vol, dw_ref[t],
                                       preferred_element_type=jnp.float32,
                                       precision=_PREC)

            # ---- Net_timestep forward in (features, batch) layout ----
            x = _bn_fused(s_old, vcol(t, 0, D), vcol(t, 1, D))
            x = jnp.dot(w_ref[t, :, 0:D], x,
                        preferred_element_type=jnp.float32,
                        precision=_PREC) + vcol(t, 2, Wd)
            x = _bn_fused(x, vcol(t, 3, Wd), vcol(t, 4, Wd))
            x = jnp.maximum(x, 0.0)
            for l in range(H):                          # static unroll, small
                c0 = CWH + l * Wd
                x = jnp.dot(w_ref[t, :, c0:c0 + Wd], x,
                            preferred_element_type=jnp.float32,
                            precision=_PREC) + vcol(t, 5 + 3 * l, Wd)
                x = _bn_fused(x, vcol(t, 6 + 3 * l, Wd), vcol(t, 7 + 3 * l, Wd))
                x = jnp.maximum(x, 0.0)
            y = jnp.dot(w_ref[t, :, CWO:CWO + Wd], x,
                        preferred_element_type=jnp.float32,
                        precision=_PREC)                # (Wd, B); rows >= D are zero
            y = y[0:D, :] + vcol(t, VO, D)
            y = _bn_fused(y, vcol(t, VO + 1, D), vcol(t, VO + 2, D))

            # Discount applied after the feature reduction: scalar * (1, B).
            stoch_int = disc_ref[g] * jnp.sum(y * vol_s_dw, axis=0, keepdims=True)
            cv = cv + stoch_int

            s_new = s_old + rh_ref[g] * s_old + vol_s_dw
            path_ref[t] = s_new
            return s_new, cv

        s_fin, cv_fin = lax.fori_loop(0, Tb, step, (s_scr[...], cv_scr[...]),
                                      unroll=True)
        s_scr[...] = s_fin
        cv_scr[...] = cv_fin

        @pl.when(blk == pl.num_programs(0) - 1)
        def _():
            cv_ref[...] = cv_fin

    return kernel


def control_variate_forward(S0, dW, timegrid, volatility_mat, params, r,
                            time_block=8):
    B, D = S0.shape
    n_steps = int(timegrid.shape[0]) - 1
    Wd = params["w0"].shape[-1]
    H = params["wh"].shape[1]
    assert Wd >= D, "vNetWidth must be >= dim for the packed-parameter layout"

    # Largest divisor of n_steps not exceeding the requested time block.
    tb = max(d for d in range(1, min(time_block, n_steps) + 1) if n_steps % d == 0)

    h_arr = (timegrid[1:] - timegrid[:-1]).astype(jnp.float32)
    disc = jnp.exp(-r * timegrid[:-1]).astype(jnp.float32)   # exp(-r t_{i-1})
    rh = (r * h_arr).astype(jnp.float32)                     # r * dt

    # sqrt(dt) folded into dW; everything reoriented to (features, batch).
    dw_t = (jnp.sqrt(h_arr)[:, None, None] * dW).transpose(0, 2, 1)  # (n, D, B)
    s0_t = jnp.asarray(S0, jnp.float32).T                            # (D, B)
    vol = jnp.asarray(volatility_mat, jnp.float32)                   # (D, D)

    # ---- pack per-step parameters into two slabs ----
    # Weight slab columns: [ w0^T | wh[0]^T | ... | wh[H-1]^T | wo^T (row-padded) ]
    w0T = jnp.swapaxes(params["w0"], 1, 2)                           # (n, Wd, D)
    blocks = [w0T]
    if H > 0:
        whT = jnp.swapaxes(params["wh"], 2, 3).transpose(0, 2, 1, 3)  # (n, Wd, H, Wd)
        blocks.append(whT.reshape(n_steps, Wd, H * Wd))
    woT = jnp.swapaxes(params["wo"], 1, 2)                           # (n, D, Wd)
    blocks.append(jnp.pad(woT, ((0, 0), (0, Wd - D), (0, 0))))       # (n, Wd, Wd)
    wslab = jnp.concatenate(blocks, axis=-1).astype(jnp.float32)     # (n, Wd, CW)
    CW = wslab.shape[-1]

    # Vector slab: column k holds one per-step parameter vector along sublanes.
    def col(v):
        return jnp.pad(v, ((0, 0), (0, Wd - v.shape[-1])))

    cols = [col(params["bn0_g"][:, 0]), col(params["bn0_b"][:, 0]),
            col(params["b0"][:, 0]), col(params["bn1_g"][:, 0]),
            col(params["bn1_b"][:, 0])]
    for l in range(H):
        cols += [col(params["bh"][:, l]), col(params["bnh_g"][:, l]),
                 col(params["bnh_b"][:, l])]
    cols += [col(params["bo"][:, 0]), col(params["bno_g"][:, 0]),
             col(params["bno_b"][:, 0])]
    vslab = jnp.stack(cols, axis=-1).astype(jnp.float32)             # (n, Wd, NV)
    NV = vslab.shape[-1]

    def carried(shape):
        return pl.BlockSpec(shape, lambda i, *_: (0,) * len(shape))

    def stepped(shape):
        return pl.BlockSpec((tb,) + shape, lambda i, *_: (i,) + (0,) * len(shape))

    grid_spec = pltpu.PrefetchScalarGridSpec(
        num_scalar_prefetch=2,
        grid=(n_steps // tb,),
        in_specs=[carried((D, B)), carried((D, D)),
                  stepped((D, B)), stepped((Wd, CW)), stepped((Wd, NV))],
        out_specs=[carried((1, B)), stepped((D, B))],
        scratch_shapes=[pltpu.VMEM((D, B), jnp.float32),
                        pltpu.VMEM((1, B), jnp.float32)],
    )
    out_shape = (jax.ShapeDtypeStruct((1, B), jnp.float32),
                 jax.ShapeDtypeStruct((n_steps, D, B), jnp.float32))

    # Explicit VMEM budget: double-buffered per-block slabs + headroom (v7x-safe).
    blk_bytes = 4 * tb * (2 * D * B + Wd * CW + Wd * NV)
    vmem_limit = int(min(max(4 * blk_bytes + (4 << 20), 16 << 20), 100 << 20))

    fn = pl.pallas_call(
        _make_kernel(D, B, Wd, H, tb),
        grid_spec=grid_spec,
        out_shape=out_shape,
        compiler_params=pltpu.CompilerParams(
            dimension_semantics=("arbitrary",),
            vmem_limit_bytes=vmem_limit),
    )
    cv_t, path_t = fn(disc, rh, s0_t, vol, dw_t, wslab, vslab)

    path = jnp.concatenate([s0_t[None], path_t], axis=0).transpose(0, 2, 1)  # (T,B,D)
    return path[-1], cv_t.T, path


def init_params(key, n_steps, dim, width, n_layers):
    # Deterministic synthetic init (PyTorch Linear-style uniform, BN gamma=1 beta=0).
    H = n_layers - 1
    ks = jax.random.split(key, 6)

    def u(k, shape, fan_in):
        b = 1.0 / np.sqrt(fan_in)
        return jax.random.uniform(k, shape, jnp.float32, -b, b)

    return dict(
        bn0_g=jnp.ones((n_steps, 1, dim), jnp.float32),
        bn0_b=jnp.zeros((n_steps, 1, dim), jnp.float32),
        w0=u(ks[0], (n_steps, dim, width), dim),
        b0=u(ks[1], (n_steps, 1, width), dim),
        bn1_g=jnp.ones((n_steps, 1, width), jnp.float32),
        bn1_b=jnp.zeros((n_steps, 1, width), jnp.float32),
        wh=u(ks[2], (n_steps, H, width, width), width),
        bh=u(ks[3], (n_steps, H, width), width),
        bnh_g=jnp.ones((n_steps, H, width), jnp.float32),
        bnh_b=jnp.zeros((n_steps, H, width), jnp.float32),
        wo=u(ks[4], (n_steps, width, dim), width),
        bo=u(ks[5], (n_steps, 1, dim), width),
        bno_g=jnp.ones((n_steps, 1, dim), jnp.float32),
        bno_b=jnp.zeros((n_steps, 1, dim), jnp.float32),
    )


def _bn_ref(x, gamma, beta):
    mean = jnp.mean(x, axis=0, keepdims=True)
    var = jnp.mean((x - mean) ** 2, axis=0, keepdims=True)
    return (x - mean) * lax.rsqrt(var + _BN_EPS) * gamma + beta


def reference_forward(S0, dW, timegrid, volT, params, r):
    # Pure-JAX reference mirroring the PyTorch module (training-mode BatchNorm).
    s_old = S0
    cv = jnp.zeros((S0.shape[0], 1), jnp.float32)
    path = [s_old]
    H = params["wh"].shape[1]
    for i in range(1, timegrid.shape[0]):
        t_prev = timegrid[i - 1]
        h = timegrid[i] - t_prev
        dw = jnp.sqrt(h) * dW[i - 1]
        vol_s_dw = s_old * jnp.dot(dw, volT, precision=_PREC)
        x = _bn_ref(s_old, params["bn0_g"][i - 1, 0], params["bn0_b"][i - 1, 0])
        x = jnp.dot(x, params["w0"][i - 1], precision=_PREC) + params["b0"][i - 1, 0]
        x = _bn_ref(x, params["bn1_g"][i - 1, 0], params["bn1_b"][i - 1, 0])
        x = jnp.maximum(x, 0.0)
        for l in range(H):
            x = jnp.dot(x, params["wh"][i - 1, l], precision=_PREC) + params["bh"][i - 1, l]
            x = _bn_ref(x, params["bnh_g"][i - 1, l], params["bnh_b"][i - 1, l])
            x = jnp.maximum(x, 0.0)
        x = jnp.dot(x, params["wo"][i - 1], precision=_PREC) + params["bo"][i - 1, 0]
        x = _bn_ref(x, params["bno_g"][i - 1, 0], params["bno_b"][i - 1, 0])
        z = jnp.exp(-r * t_prev) * x
        cv = cv + jnp.sum(z * vol_s_dw, axis=1, keepdims=True)
        s_old = s_old + r * s_old * h + vol_s_dw
        path.append(s_old)
    return s_old, cv, jnp.stack(path, axis=0)


if __name__ == "__main__":
    dim, B, width, n_layers, T = 4, 16, 32, 2, 5
    r = 0.05

    key = jax.random.PRNGKey(0)
    k_s0, k_dw, k_cov, k_par = jax.random.split(key, 4)

    # Market data (deterministic): cov = A A^T + dim*I, C = chol(cov), row-scale by sigma.
    sigma = 0.2 + 0.05 * np.arange(dim, dtype=np.float32)
    A = np.asarray(jax.random.normal(k_cov, (dim, dim), jnp.float32))
    cov = A @ A.T + dim * np.eye(dim, dtype=np.float32)
    C = np.linalg.cholesky(cov)
    volatility_mat = np.asarray(C * sigma[:, None], np.float32)      # (D, D)

    timegrid = jnp.linspace(0.0, 1.0, T).astype(jnp.float32)
    S0 = 1.0 + 0.5 * jax.random.uniform(k_s0, (B, dim), jnp.float32)
    # torch.randn equivalent: standard normals, sqrt(dt) folded in by the wrapper.
    dW = jax.random.normal(k_dw, (T - 1, B, dim), jnp.float32)

    params = init_params(k_par, T - 1, dim, width, n_layers)

    s_final, cv, path = control_variate_forward(
        S0, dW, timegrid, volatility_mat, params, r, time_block=2)
    jax.block_until_ready((s_final, cv, path))

    ref_s, ref_cv, ref_path = reference_forward(
        S0, dW, timegrid, jnp.asarray(volatility_mat.T), params, r)
    np.testing.assert_allclose(np.asarray(s_final), np.asarray(ref_s), rtol=1e-4, atol=1e-4)
    np.testing.assert_allclose(np.asarray(cv), np.asarray(ref_cv), rtol=1e-4, atol=1e-4)
    np.testing.assert_allclose(np.asarray(path), np.asarray(ref_path), rtol=1e-4, atol=1e-4)
    print("KERNEL_OK")
</pallas_src>

<mosaic_0001>
module attributes {stable_mosaic.version = 11 : i64} {
  func.func @kernel(%arg0: i32, %arg1: memref<4xf32, #tpu.memory_space<smem>>, %arg2: memref<4xf32, #tpu.memory_space<smem>>, %arg3: memref<4x16xf32, #tpu.memory_space<vmem>>, %arg4: memref<4x4xf32, #tpu.memory_space<vmem>>, %arg5: memref<2x4x16xf32, #tpu.memory_space<vmem>>, %arg6: memref<2x32x68xf32, #tpu.memory_space<vmem>>, %arg7: memref<2x32x11xf32, #tpu.memory_space<vmem>>, %arg8: memref<1x16xf32, #tpu.memory_space<vmem>>, %arg9: memref<2x4x16xf32, #tpu.memory_space<vmem>>, %arg10: memref<4x16xf32, #tpu.memory_space<vmem>>, %arg11: memref<1x16xf32, #tpu.memory_space<vmem>>) attributes {dimension_semantics = [#tpu.dimension_semantics<arbitrary>], iteration_bounds = array<i64: 2>, scalar_prefetch = 2 : i64, scratch_operands = 2 : i64, tpu.core_type = #tpu.core_type<tc>, window_params = [{pipeline_mode = #tpu.pipeline_mode<synchronous>, transform_indices = @transform_0, window_bounds = array<i64: 4, 16>}, {pipeline_mode = #tpu.pipeline_mode<synchronous>, transform_indices = @transform_1, window_bounds = array<i64: 4, 4>}, {transform_indices = @transform_2, window_bounds = array<i64: 2, 4, 16>}, {transform_indices = @transform_3, window_bounds = array<i64: 2, 32, 68>}, {transform_indices = @transform_4, window_bounds = array<i64: 2, 32, 11>}, {pipeline_mode = #tpu.pipeline_mode<synchronous>, transform_indices = @transform_5, window_bounds = array<i64: 1, 16>}, {transform_indices = @transform_6, window_bounds = array<i64: 2, 4, 16>}]} {
    %c0_i32 = arith.constant 0 : i32
    %0 = arith.cmpi eq, %arg0, %c0_i32 : i32
    %1 = arith.extui %0 : i1 to i32
    %c0_i32_0 = arith.constant 0 : i32
    %2 = arith.cmpi ne, %1, %c0_i32_0 : i32
    scf.if %2 {
      %c0_121 = arith.constant 0 : index
      %c0_122 = arith.constant 0 : index
      %341 = vector.load %arg3[%c0_121, %c0_122] : memref<4x16xf32, #tpu.memory_space<vmem>>, vector<4x16xf32>
      %c0_123 = arith.constant 0 : index
      %c0_124 = arith.constant 0 : index
      %342 = vector.load %arg10[%c0_123, %c0_124] : memref<4x16xf32, #tpu.memory_space<vmem>>, vector<4x16xf32>
      tpu.vector_store %arg10[%c0_123, %c0_124], %341 {strides = array<i32>} : memref<4x16xf32, #tpu.memory_space<vmem>>, vector<4x16xf32>,
      %cst_125 = arith.constant 0.000000e+00 : f32
      %343 = vector.broadcast %cst_125 : f32 to vector<1x16xf32>
      %c0_126 = arith.constant 0 : index
      %c0_127 = arith.constant 0 : index
      %344 = vector.load %arg11[%c0_126, %c0_127] : memref<1x16xf32, #tpu.memory_space<vmem>>, vector<1x16xf32>
      tpu.vector_store %arg11[%c0_126, %c0_127], %343 {strides = array<i32>} : memref<1x16xf32, #tpu.memory_space<vmem>>, vector<1x16xf32>,
    } else {
    }
    %c0 = arith.constant 0 : index
    %c0_1 = arith.constant 0 : index
    %3 = vector.load %arg4[%c0, %c0_1] : memref<4x4xf32, #tpu.memory_space<vmem>>, vector<4x4xf32>
    %c0_2 = arith.constant 0 : index
    %c0_3 = arith.constant 0 : index
    %4 = vector.load %arg10[%c0_2, %c0_3] : memref<4x16xf32, #tpu.memory_space<vmem>>, vector<4x16xf32>
    %c0_4 = arith.constant 0 : index
    %c0_5 = arith.constant 0 : index
    %5 = vector.load %arg11[%c0_4, %c0_5] : memref<1x16xf32, #tpu.memory_space<vmem>>, vector<1x16xf32>
    %c0_i32_6 = arith.constant 0 : i32
    %c2_i32 = arith.constant 2 : i32
    %6 = arith.muli %arg0, %c2_i32 : i32
    %7 = arith.addi %6, %c0_i32_6 : i32
    %8 = arith.index_cast %c0_i32_6 : i32 to index
    %c0_7 = arith.constant 0 : index
    %c0_8 = arith.constant 0 : index
    %9 = vector.load %arg5[%8, %c0_7, %c0_8] : memref<2x4x16xf32, #tpu.memory_space<vmem>>, vector<1x4x16xf32>
    %10 = vector.shape_cast %9 : vector<1x4x16xf32> to vector<4x16xf32>
    %cst = arith.constant dense<0.000000e+00> : vector<4x16xf32>
    %11 = tpu.matmul %3, %10, %cst {dimension_numbers = #tpu.dot_dimension_numbers<[1], [0], [0], [1], [0, 0, 1, 1], [], []>, precision = #tpu.contract_precision<fp32>} : vector<4x4xf32>, vector<4x16xf32>, vector<4x16xf32> -> vector<4x16xf32>
    %12 = arith.mulf %4, %11 : vector<4x16xf32>
    %13 = arith.index_cast %c0_i32_6 : i32 to index
    %c0_9 = arith.constant 0 : index
    %c0_10 = arith.constant 0 : index
    %14 = vector.load %arg7[%13, %c0_9, %c0_10] : memref<2x32x11xf32, #tpu.memory_space<vmem>>, vector<1x4x1xf32>
    %15 = vector.shape_cast %14 : vector<1x4x1xf32> to vector<4x1xf32>
    %16 = arith.index_cast %c0_i32_6 : i32 to index
    %c0_11 = arith.constant 0 : index
    %c1 = arith.constant 1 : index
    %17 = vector.load %arg7[%16, %c0_11, %c1] : memref<2x32x11xf32, #tpu.memory_space<vmem>>, vector<1x4x1xf32>
    %18 = vector.shape_cast %17 : vector<1x4x1xf32> to vector<4x1xf32>
    %cst_12 = arith.constant dense<0.000000e+00> : vector<4xf32>
    %19 = vector.multi_reduction <add>, %4, %cst_12 [1] : vector<4x16xf32> to vector<4xf32>
    %20 = vector.shape_cast %19 : vector<4xf32> to vector<4x1xf32>
    %cst_13 = arith.constant 1.600000e+01 : f32
    %21 = vector.broadcast %cst_13 : f32 to vector<4x1xf32>
    %22 = arith.divf %20, %21 : vector<4x1xf32>
    %23 = vector.broadcast %22 : vector<4x1xf32> to vector<4x16xf32>
    %24 = arith.subf %4, %23 : vector<4x16xf32>
    %25 = arith.mulf %24, %24 : vector<4x16xf32>
    %cst_14 = arith.constant dense<0.000000e+00> : vector<4xf32>
    %26 = vector.multi_reduction <add>, %25, %cst_14 [1] : vector<4x16xf32> to vector<4xf32>
    %27 = vector.shape_cast %26 : vector<4xf32> to vector<4x1xf32>
    %cst_15 = arith.constant 1.600000e+01 : f32
    %28 = vector.broadcast %cst_15 : f32 to vector<4x1xf32>
    %29 = arith.divf %27, %28 : vector<4x1xf32>
    %cst_16 = arith.constant 9.99999974E-6 : f32
    %30 = vector.broadcast %cst_16 : f32 to vector<4x1xf32>
    %31 = arith.addf %29, %30 : vector<4x1xf32>
    %32 = math.rsqrt %31 : vector<4x1xf32>
    %33 = arith.mulf %15, %32 : vector<4x1xf32>
    %34 = vector.broadcast %33 : vector<4x1xf32> to vector<4x16xf32>
    %35 = arith.mulf %4, %34 : vector<4x16xf32>
    %36 = arith.mulf %22, %33 : vector<4x1xf32>
    %37 = arith.subf %18, %36 : vector<4x1xf32>
    %38 = vector.broadcast %37 : vector<4x1xf32> to vector<4x16xf32>
    %39 = arith.addf %35, %38 : vector<4x16xf32>
    %40 = arith.index_cast %c0_i32_6 : i32 to index
    %c0_17 = arith.constant 0 : index
    %c0_18 = arith.constant 0 : index
    %41 = vector.load %arg6[%40, %c0_17, %c0_18] : memref<2x32x68xf32, #tpu.memory_space<vmem>>, vector<1x32x4xf32>
    %42 = vector.shape_cast %41 : vector<1x32x4xf32> to vector<32x4xf32>
    %cst_19 = arith.constant dense<0.000000e+00> : vector<32x16xf32>
    %43 = tpu.matmul %42, %39, %cst_19 {dimension_numbers = #tpu.dot_dimension_numbers<[1], [0], [0], [1], [0, 0, 1, 1], [], []>, precision = #tpu.contract_precision<fp32>} : vector<32x4xf32>, vector<4x16xf32>, vector<32x16xf32> -> vector<32x16xf32>
    %44 = arith.index_cast %c0_i32_6 : i32 to index
    %c0_20 = arith.constant 0 : index
    %c2 = arith.constant 2 : index
    %45 = vector.load %arg7[%44, %c0_20, %c2] : memref<2x32x11xf32, #tpu.memory_space<vmem>>, vector<1x32x1xf32>
    %46 = vector.shape_cast %45 : vector<1x32x1xf32> to vector<32x1xf32>
    %47 = vector.broadcast %46 : vector<32x1xf32> to vector<32x16xf32>
    %48 = arith.addf %43, %47 : vector<32x16xf32>
    %49 = arith.index_cast %c0_i32_6 : i32 to index
    %c0_21 = arith.constant 0 : index
    %c3 = arith.constant 3 : index
    %50 = vector.load %arg7[%49, %c0_21, %c3] : memref<2x32x11xf32, #tpu.memory_space<vmem>>, vector<1x32x1xf32>
    %51 = vector.shape_cast %50 : vector<1x32x1xf32> to vector<32x1xf32>
    %52 = arith.index_cast %c0_i32_6 : i32 to index
    %c0_22 = arith.constant 0 : index
    %c4 = arith.constant 4 : index
    %53 = vector.load %arg7[%52, %c0_22, %c4] : memref<2x32x11xf32, #tpu.memory_space<vmem>>, vector<1x32x1xf32>
    %54 = vector.shape_cast %53 : vector<1x32x1xf32> to vector<32x1xf32>
    %cst_23 = arith.constant dense<0.000000e+00> : vector<32xf32>
    %55 = vector.multi_reduction <add>, %48, %cst_23 [1] : vector<32x16xf32> to vector<32xf32>
    %56 = vector.shape_cast %55 : vector<32xf32> to vector<32x1xf32>
    %cst_24 = arith.constant 1.600000e+01 : f32
    %57 = vector.broadcast %cst_24 : f32 to vector<32x1xf32>
    %58 = arith.divf %56, %57 : vector<32x1xf32>
    %59 = vector.broadcast %58 : vector<32x1xf32> to vector<32x16xf32>
    %60 = arith.subf %48, %59 : vector<32x16xf32>
    %61 = arith.mulf %60, %60 : vector<32x16xf32>
    %cst_25 = arith.constant dense<0.000000e+00> : vector<32xf32>
    %62 = vector.multi_reduction <add>, %61, %cst_25 [1] : vector<32x16xf32> to vector<32xf32>
    %63 = vector.shape_cast %62 : vector<32xf32> to vector<32x1xf32>
    %cst_26 = arith.constant 1.600000e+01 : f32
    %64 = vector.broadcast %cst_26 : f32 to vector<32x1xf32>
    %65 = arith.divf %63, %64 : vector<32x1xf32>
    %cst_27 = arith.constant 9.99999974E-6 : f32
    %66 = vector.broadcast %cst_27 : f32 to vector<32x1xf32>
    %67 = arith.addf %65, %66 : vector<32x1xf32>
    %68 = math.rsqrt %67 : vector<32x1xf32>
    %69 = arith.mulf %51, %68 : vector<32x1xf32>
    %70 = vector.broadcast %69 : vector<32x1xf32> to vector<32x16xf32>
    %71 = arith.mulf %48, %70 : vector<32x16xf32>
    %72 = arith.mulf %58, %69 : vector<32x1xf32>
    %73 = arith.subf %54, %72 : vector<32x1xf32>
    %74 = vector.broadcast %73 : vector<32x1xf32> to vector<32x16xf32>
    %75 = arith.addf %71, %74 : vector<32x16xf32>
    %cst_28 = arith.constant 0.000000e+00 : f32
    %76 = vector.broadcast %cst_28 : f32 to vector<32x16xf32>
    %77 = arith.maximumf %75, %76 : vector<32x16xf32>
    %78 = arith.index_cast %c0_i32_6 : i32 to index
    %c0_29 = arith.constant 0 : index
    %c4_30 = arith.constant 4 : index
    %79 = vector.load %arg6[%78, %c0_29, %c4_30] : memref<2x32x68xf32, #tpu.memory_space<vmem>>, vector<1x32x32xf32>
    %80 = vector.shape_cast %79 : vector<1x32x32xf32> to vector<32x32xf32>
    %cst_31 = arith.constant dense<0.000000e+00> : vector<32x16xf32>
    %81 = tpu.matmul %80, %77, %cst_31 {dimension_numbers = #tpu.dot_dimension_numbers<[1], [0], [0], [1], [0, 0, 1, 1], [], []>, precision = #tpu.contract_precision<fp32>} : vector<32x32xf32>, vector<32x16xf32>, vector<32x16xf32> -> vector<32x16xf32>
    %82 = arith.index_cast %c0_i32_6 : i32 to index
    %c0_32 = arith.constant 0 : index
    %c5 = arith.constant 5 : index
    %83 = vector.load %arg7[%82, %c0_32, %c5] : memref<2x32x11xf32, #tpu.memory_space<vmem>>, vector<1x32x1xf32>
    %84 = vector.shape_cast %83 : vector<1x32x1xf32> to vector<32x1xf32>
    %85 = vector.broadcast %84 : vector<32x1xf32> to vector<32x16xf32>
    %86 = arith.addf %81, %85 : vector<32x16xf32>
    %87 = arith.index_cast %c0_i32_6 : i32 to index
    %c0_33 = arith.constant 0 : index
    %c6 = arith.constant 6 : index
    %88 = vector.load %arg7[%87, %c0_33, %c6] : memref<2x32x11xf32, #tpu.memory_space<vmem>>, vector<1x32x1xf32>
    %89 = vector.shape_cast %88 : vector<1x32x1xf32> to vector<32x1xf32>
    %90 = arith.index_cast %c0_i32_6 : i32 to index
    %c0_34 = arith.constant 0 : index
    %c7 = arith.constant 7 : index
    %91 = vector.load %arg7[%90, %c0_34, %c7] : memref<2x32x11xf32, #tpu.memory_space<vmem>>, vector<1x32x1xf32>
    %92 = vector.shape_cast %91 : vector<1x32x1xf32> to vector<32x1xf32>
    %cst_35 = arith.constant dense<0.000000e+00> : vector<32xf32>
    %93 = vector.multi_reduction <add>, %86, %cst_35 [1] : vector<32x16xf32> to vector<32xf32>
    %94 = vector.shape_cast %93 : vector<32xf32> to vector<32x1xf32>
    %cst_36 = arith.constant 1.600000e+01 : f32
    %95 = vector.broadcast %cst_36 : f32 to vector<32x1xf32>
    %96 = arith.divf %94, %95 : vector<32x1xf32>
    %97 = vector.broadcast %96 : vector<32x1xf32> to vector<32x16xf32>
    %98 = arith.subf %86, %97 : vector<32x16xf32>
    %99 = arith.mulf %98, %98 : vector<32x16xf32>
    %cst_37 = arith.constant dense<0.000000e+00> : vector<32xf32>
    %100 = vector.multi_reduction <add>, %99, %cst_37 [1] : vector<32x16xf32> to vector<32xf32>
    %101 = vector.shape_cast %100 : vector<32xf32> to vector<32x1xf32>
    %cst_38 = arith.constant 1.600000e+01 : f32
    %102 = vector.broadcast %cst_38 : f32 to vector<32x1xf32>
    %103 = arith.divf %101, %102 : vector<32x1xf32>
    %cst_39 = arith.constant 9.99999974E-6 : f32
    %104 = vector.broadcast %cst_39 : f32 to vector<32x1xf32>
    %105 = arith.addf %103, %104 : vector<32x1xf32>
    %106 = math.rsqrt %105 : vector<32x1xf32>
    %107 = arith.mulf %89, %106 : vector<32x1xf32>
    %108 = vector.broadcast %107 : vector<32x1xf32> to vector<32x16xf32>
    %109 = arith.mulf %86, %108 : vector<32x16xf32>
    %110 = arith.mulf %96, %107 : vector<32x1xf32>
    %111 = arith.subf %92, %110 : vector<32x1xf32>
    %112 = vector.broadcast %111 : vector<32x1xf32> to vector<32x16xf32>
    %113 = arith.addf %109, %112 : vector<32x16xf32>
    %cst_40 = arith.constant 0.000000e+00 : f32
    %114 = vector.broadcast %cst_40 : f32 to vector<32x16xf32>
    %115 = arith.maximumf %113, %114 : vector<32x16xf32>
    %116 = arith.index_cast %c0_i32_6 : i32 to index
    %c0_41 = arith.constant 0 : index
    %c36 = arith.constant 36 : index
    %117 = vector.load %arg6[%116, %c0_41, %c36] : memref<2x32x68xf32, #tpu.memory_space<vmem>>, vector<1x32x32xf32>
    %118 = vector.shape_cast %117 : vector<1x32x32xf32> to vector<32x32xf32>
    %cst_42 = arith.constant dense<0.000000e+00> : vector<32x16xf32>
    %119 = tpu.matmul %118, %115, %cst_42 {dimension_numbers = #tpu.dot_dimension_numbers<[1], [0], [0], [1], [0, 0, 1, 1], [], []>, precision = #tpu.contract_precision<fp32>} : vector<32x32xf32>, vector<32x16xf32>, vector<32x16xf32> -> vector<32x16xf32>
    %120 = vector.extract_strided_slice %119 {offsets = [0, 0], sizes = [4, 16], strides = [1, 1]} : vector<32x16xf32> to vector<4x16xf32>
    %121 = arith.index_cast %c0_i32_6 : i32 to index
    %c0_43 = arith.constant 0 : index
    %c8 = arith.constant 8 : index
    %122 = vector.load %arg7[%121, %c0_43, %c8] : memref<2x32x11xf32, #tpu.memory_space<vmem>>, vector<1x4x1xf32>
    %123 = vector.shape_cast %122 : vector<1x4x1xf32> to vector<4x1xf32>
    %124 = vector.broadcast %123 : vector<4x1xf32> to vector<4x16xf32>
    %125 = arith.addf %120, %124 : vector<4x16xf32>
    %126 = arith.index_cast %c0_i32_6 : i32 to index
    %c0_44 = arith.constant 0 : index
    %c9 = arith.constant 9 : index
    %127 = vector.load %arg7[%126, %c0_44, %c9] : memref<2x32x11xf32, #tpu.memory_space<vmem>>, vector<1x4x1xf32>
    %128 = vector.shape_cast %127 : vector<1x4x1xf32> to vector<4x1xf32>
    %129 = arith.index_cast %c0_i32_6 : i32 to index
    %c0_45 = arith.constant 0 : index
    %c10 = arith.constant 10 : index
    %130 = vector.load %arg7[%129, %c0_45, %c10] : memref<2x32x11xf32, #tpu.memory_space<vmem>>, vector<1x4x1xf32>
    %131 = vector.shape_cast %130 : vector<1x4x1xf32> to vector<4x1xf32>
    %cst_46 = arith.constant dense<0.000000e+00> : vector<4xf32>
    %132 = vector.multi_reduction <add>, %125, %cst_46 [1] : vector<4x16xf32> to vector<4xf32>
    %133 = vector.shape_cast %132 : vector<4xf32> to vector<4x1xf32>
    %cst_47 = arith.constant 1.600000e+01 : f32
    %134 = vector.broadcast %cst_47 : f32 to vector<4x1xf32>
    %135 = arith.divf %133, %134 : vector<4x1xf32>
    %136 = vector.broadcast %135 : vector<4x1xf32> to vector<4x16xf32>
    %137 = arith.subf %125, %136 : vector<4x16xf32>
    %138 = arith.mulf %137, %137 : vector<4x16xf32>
    %cst_48 = arith.constant dense<0.000000e+00> : vector<4xf32>
    %139 = vector.multi_reduction <add>, %138, %cst_48 [1] : vector<4x16xf32> to vector<4xf32>
    %140 = vector.shape_cast %139 : vector<4xf32> to vector<4x1xf32>
    %cst_49 = arith.constant 1.600000e+01 : f32
    %141 = vector.broadcast %cst_49 : f32 to vector<4x1xf32>
    %142 = arith.divf %140, %141 : vector<4x1xf32>
    %cst_50 = arith.constant 9.99999974E-6 : f32
    %143 = vector.broadcast %cst_50 : f32 to vector<4x1xf32>
    %144 = arith.addf %142, %143 : vector<4x1xf32>
    %145 = math.rsqrt %144 : vector<4x1xf32>
    %146 = arith.mulf %128, %145 : vector<4x1xf32>
    %147 = vector.broadcast %146 : vector<4x1xf32> to vector<4x16xf32>
    %148 = arith.mulf %125, %147 : vector<4x16xf32>
    %149 = arith.mulf %135, %146 : vector<4x1xf32>
    %150 = arith.subf %131, %149 : vector<4x1xf32>
    %151 = vector.broadcast %150 : vector<4x1xf32> to vector<4x16xf32>
    %152 = arith.addf %148, %151 : vector<4x16xf32>
    %153 = arith.index_cast %7 : i32 to index
    %154 = memref.load %arg1[%153] : memref<4xf32, #tpu.memory_space<smem>>
    %155 = arith.mulf %152, %12 : vector<4x16xf32>
    %cst_51 = arith.constant dense<0.000000e+00> : vector<16xf32>
    %156 = vector.multi_reduction <add>, %155, %cst_51 [0] : vector<4x16xf32> to vector<16xf32>
    %157 = vector.shape_cast %156 : vector<16xf32> to vector<1x16xf32>
    %158 = vector.broadcast %154 : f32 to vector<1x16xf32>
    %159 = arith.mulf %158, %157 : vector<1x16xf32>
    %160 = arith.addf %5, %159 : vector<1x16xf32>
    %161 = arith.index_cast %7 : i32 to index
    %162 = memref.load %arg2[%161] : memref<4xf32, #tpu.memory_space<smem>>
    %163 = vector.broadcast %162 : f32 to vector<4x16xf32>
    %164 = arith.mulf %163, %4 : vector<4x16xf32>
    %165 = arith.addf %4, %164 : vector<4x16xf32>
    %166 = arith.addf %165, %12 : vector<4x16xf32>
    %167 = arith.index_cast %c0_i32_6 : i32 to index
    %c0_52 = arith.constant 0 : index
    %c0_53 = arith.constant 0 : index
    %168 = vector.load %arg9[%167, %c0_52, %c0_53] : memref<2x4x16xf32, #tpu.memory_space<vmem>>, vector<1x4x16xf32>
    %169 = vector.shape_cast %168 : vector<1x4x16xf32> to vector<4x16xf32>
    %170 = vector.shape_cast %166 : vector<4x16xf32> to vector<1x4x16xf32>
    tpu.vector_store %arg9[%167, %c0_52, %c0_53], %170 {strides = array<i32>} : memref<2x4x16xf32, #tpu.memory_space<vmem>>, vector<1x4x16xf32>,
    %c1_i32 = arith.constant 1 : i32
    %c2_i32_54 = arith.constant 2 : i32
    %171 = arith.muli %arg0, %c2_i32_54 : i32
    %172 = arith.addi %171, %c1_i32 : i32
    %173 = arith.index_cast %c1_i32 : i32 to index
    %c0_55 = arith.constant 0 : index
    %c0_56 = arith.constant 0 : index
    %174 = vector.load %arg5[%173, %c0_55, %c0_56] : memref<2x4x16xf32, #tpu.memory_space<vmem>>, vector<1x4x16xf32>
    %175 = vector.shape_cast %174 : vector<1x4x16xf32> to vector<4x16xf32>
    %cst_57 = arith.constant dense<0.000000e+00> : vector<4x16xf32>
    %176 = tpu.matmul %3, %175, %cst_57 {dimension_numbers = #tpu.dot_dimension_numbers<[1], [0], [0], [1], [0, 0, 1, 1], [], []>, precision = #tpu.contract_precision<fp32>} : vector<4x4xf32>, vector<4x16xf32>, vector<4x16xf32> -> vector<4x16xf32>
    %177 = arith.mulf %166, %176 : vector<4x16xf32>
    %178 = arith.index_cast %c1_i32 : i32 to index
    %c0_58 = arith.constant 0 : index
    %c0_59 = arith.constant 0 : index
    %179 = vector.load %arg7[%178, %c0_58, %c0_59] : memref<2x32x11xf32, #tpu.memory_space<vmem>>, vector<1x4x1xf32>
    %180 = vector.shape_cast %179 : vector<1x4x1xf32> to vector<4x1xf32>
    %181 = arith.index_cast %c1_i32 : i32 to index
    %c0_60 = arith.constant 0 : index
    %c1_61 = arith.constant 1 : index
    %182 = vector.load %arg7[%181, %c0_60, %c1_61] : memref<2x32x11xf32, #tpu.memory_space<vmem>>, vector<1x4x1xf32>
    %183 = vector.shape_cast %182 : vector<1x4x1xf32> to vector<4x1xf32>
    %cst_62 = arith.constant dense<0.000000e+00> : vector<4xf32>
    %184 = vector.multi_reduction <add>, %166, %cst_62 [1] : vector<4x16xf32> to vector<4xf32>
    %185 = vector.shape_cast %184 : vector<4xf32> to vector<4x1xf32>
    %cst_63 = arith.constant 1.600000e+01 : f32
    %186 = vector.broadcast %cst_63 : f32 to vector<4x1xf32>
    %187 = arith.divf %185, %186 : vector<4x1xf32>
    %188 = vector.broadcast %187 : vector<4x1xf32> to vector<4x16xf32>
    %189 = arith.subf %166, %188 : vector<4x16xf32>
    %190 = arith.mulf %189, %189 : vector<4x16xf32>
    %cst_64 = arith.constant dense<0.000000e+00> : vector<4xf32>
    %191 = vector.multi_reduction <add>, %190, %cst_64 [1] : vector<4x16xf32> to vector<4xf32>
    %192 = vector.shape_cast %191 : vector<4xf32> to vector<4x1xf32>
    %cst_65 = arith.constant 1.600000e+01 : f32
    %193 = vector.broadcast %cst_65 : f32 to vector<4x1xf32>
    %194 = arith.divf %192, %193 : vector<4x1xf32>
    %cst_66 = arith.constant 9.99999974E-6 : f32
    %195 = vector.broadcast %cst_66 : f32 to vector<4x1xf32>
    %196 = arith.addf %194, %195 : vector<4x1xf32>
    %197 = math.rsqrt %196 : vector<4x1xf32>
    %198 = arith.mulf %180, %197 : vector<4x1xf32>
    %199 = vector.broadcast %198 : vector<4x1xf32> to vector<4x16xf32>
    %200 = arith.mulf %166, %199 : vector<4x16xf32>
    %201 = arith.mulf %187, %198 : vector<4x1xf32>
    %202 = arith.subf %183, %201 : vector<4x1xf32>
    %203 = vector.broadcast %202 : vector<4x1xf32> to vector<4x16xf32>
    %204 = arith.addf %200, %203 : vector<4x16xf32>
    %205 = arith.index_cast %c1_i32 : i32 to index
    %c0_67 = arith.constant 0 : index
    %c0_68 = arith.constant 0 : index
    %206 = vector.load %arg6[%205, %c0_67, %c0_68] : memref<2x32x68xf32, #tpu.memory_space<vmem>>, vector<1x32x4xf32>
    %207 = vector.shape_cast %206 : vector<1x32x4xf32> to vector<32x4xf32>
    %cst_69 = arith.constant dense<0.000000e+00> : vector<32x16xf32>
    %208 = tpu.matmul %207, %204, %cst_69 {dimension_numbers = #tpu.dot_dimension_numbers<[1], [0], [0], [1], [0, 0, 1, 1], [], []>, precision = #tpu.contract_precision<fp32>} : vector<32x4xf32>, vector<4x16xf32>, vector<32x16xf32> -> vector<32x16xf32>
    %209 = arith.index_cast %c1_i32 : i32 to index
    %c0_70 = arith.constant 0 : index
    %c2_71 = arith.constant 2 : index
    %210 = vector.load %arg7[%209, %c0_70, %c2_71] : memref<2x32x11xf32, #tpu.memory_space<vmem>>, vector<1x32x1xf32>
    %211 = vector.shape_cast %210 : vector<1x32x1xf32> to vector<32x1xf32>
    %212 = vector.broadcast %211 : vector<32x1xf32> to vector<32x16xf32>
    %213 = arith.addf %208, %212 : vector<32x16xf32>
    %214 = arith.index_cast %c1_i32 : i32 to index
    %c0_72 = arith.constant 0 : index
    %c3_73 = arith.constant 3 : index
    %215 = vector.load %arg7[%214, %c0_72, %c3_73] : memref<2x32x11xf32, #tpu.memory_space<vmem>>, vector<1x32x1xf32>
    %216 = vector.shape_cast %215 : vector<1x32x1xf32> to vector<32x1xf32>
    %217 = arith.index_cast %c1_i32 : i32 to index
    %c0_74 = arith.constant 0 : index
    %c4_75 = arith.constant 4 : index
    %218 = vector.load %arg7[%217, %c0_74, %c4_75] : memref<2x32x11xf32, #tpu.memory_space<vmem>>, vector<1x32x1xf32>
    %219 = vector.shape_cast %218 : vector<1x32x1xf32> to vector<32x1xf32>
    %cst_76 = arith.constant dense<0.000000e+00> : vector<32xf32>
    %220 = vector.multi_reduction <add>, %213, %cst_76 [1] : vector<32x16xf32> to vector<32xf32>
    %221 = vector.shape_cast %220 : vector<32xf32> to vector<32x1xf32>
    %cst_77 = arith.constant 1.600000e+01 : f32
    %222 = vector.broadcast %cst_77 : f32 to vector<32x1xf32>
    %223 = arith.divf %221, %222 : vector<32x1xf32>
    %224 = vector.broadcast %223 : vector<32x1xf32> to vector<32x16xf32>
    %225 = arith.subf %213, %224 : vector<32x16xf32>
    %226 = arith.mulf %225, %225 : vector<32x16xf32>
    %cst_78 = arith.constant dense<0.000000e+00> : vector<32xf32>
    %227 = vector.multi_reduction <add>, %226, %cst_78 [1] : vector<32x16xf32> to vector<32xf32>
    %228 = vector.shape_cast %227 : vector<32xf32> to vector<32x1xf32>
    %cst_79 = arith.constant 1.600000e+01 : f32
    %229 = vector.broadcast %cst_79 : f32 to vector<32x1xf32>
    %230 = arith.divf %228, %229 : vector<32x1xf32>
    %cst_80 = arith.constant 9.99999974E-6 : f32
    %231 = vector.broadcast %cst_80 : f32 to vector<32x1xf32>
    %232 = arith.addf %230, %231 : vector<32x1xf32>
    %233 = math.rsqrt %232 : vector<32x1xf32>
    %234 = arith.mulf %216, %233 : vector<32x1xf32>
    %235 = vector.broadcast %234 : vector<32x1xf32> to vector<32x16xf32>
    %236 = arith.mulf %213, %235 : vector<32x16xf32>
    %237 = arith.mulf %223, %234 : vector<32x1xf32>
    %238 = arith.subf %219, %237 : vector<32x1xf32>
    %239 = vector.broadcast %238 : vector<32x1xf32> to vector<32x16xf32>
    %240 = arith.addf %236, %239 : vector<32x16xf32>
    %cst_81 = arith.constant 0.000000e+00 : f32
    %241 = vector.broadcast %cst_81 : f32 to vector<32x16xf32>
    %242 = arith.maximumf %240, %241 : vector<32x16xf32>
    %243 = arith.index_cast %c1_i32 : i32 to index
    %c0_82 = arith.constant 0 : index
    %c4_83 = arith.constant 4 : index
    %244 = vector.load %arg6[%243, %c0_82, %c4_83] : memref<2x32x68xf32, #tpu.memory_space<vmem>>, vector<1x32x32xf32>
    %245 = vector.shape_cast %244 : vector<1x32x32xf32> to vector<32x32xf32>
    %cst_84 = arith.constant dense<0.000000e+00> : vector<32x16xf32>
    %246 = tpu.matmul %245, %242, %cst_84 {dimension_numbers = #tpu.dot_dimension_numbers<[1], [0], [0], [1], [0, 0, 1, 1], [], []>, precision = #tpu.contract_precision<fp32>} : vector<32x32xf32>, vector<32x16xf32>, vector<32x16xf32> -> vector<32x16xf32>
    %247 = arith.index_cast %c1_i32 : i32 to index
    %c0_85 = arith.constant 0 : index
    %c5_86 = arith.constant 5 : index
    %248 = vector.load %arg7[%247, %c0_85, %c5_86] : memref<2x32x11xf32, #tpu.memory_space<vmem>>, vector<1x32x1xf32>
    %249 = vector.shape_cast %248 : vector<1x32x1xf32> to vector<32x1xf32>
    %250 = vector.broadcast %249 : vector<32x1xf32> to vector<32x16xf32>
    %251 = arith.addf %246, %250 : vector<32x16xf32>
    %252 = arith.index_cast %c1_i32 : i32 to index
    %c0_87 = arith.constant 0 : index
    %c6_88 = arith.constant 6 : index
    %253 = vector.load %arg7[%252, %c0_87, %c6_88] : memref<2x32x11xf32, #tpu.memory_space<vmem>>, vector<1x32x1xf32>
    %254 = vector.shape_cast %253 : vector<1x32x1xf32> to vector<32x1xf32>
    %255 = arith.index_cast %c1_i32 : i32 to index
    %c0_89 = arith.constant 0 : index
    %c7_90 = arith.constant 7 : index
    %256 = vector.load %arg7[%255, %c0_89, %c7_90] : memref<2x32x11xf32, #tpu.memory_space<vmem>>, vector<1x32x1xf32>
    %257 = vector.shape_cast %256 : vector<1x32x1xf32> to vector<32x1xf32>
    %cst_91 = arith.constant dense<0.000000e+00> : vector<32xf32>
    %258 = vector.multi_reduction <add>, %251, %cst_91 [1] : vector<32x16xf32> to vector<32xf32>
    %259 = vector.shape_cast %258 : vector<32xf32> to vector<32x1xf32>
    %cst_92 = arith.constant 1.600000e+01 : f32
    %260 = vector.broadcast %cst_92 : f32 to vector<32x1xf32>
    %261 = arith.divf %259, %260 : vector<32x1xf32>
    %262 = vector.broadcast %261 : vector<32x1xf32> to vector<32x16xf32>
    %263 = arith.subf %251, %262 : vector<32x16xf32>
    %264 = arith.mulf %263, %263 : vector<32x16xf32>
    %cst_93 = arith.constant dense<0.000000e+00> : vector<32xf32>
    %265 = vector.multi_reduction <add>, %264, %cst_93 [1] : vector<32x16xf32> to vector<32xf32>
    %266 = vector.shape_cast %265 : vector<32xf32> to vector<32x1xf32>
    %cst_94 = arith.constant 1.600000e+01 : f32
    %267 = vector.broadcast %cst_94 : f32 to vector<32x1xf32>
    %268 = arith.divf %266, %267 : vector<32x1xf32>
    %cst_95 = arith.constant 9.99999974E-6 : f32
    %269 = vector.broadcast %cst_95 : f32 to vector<32x1xf32>
    %270 = arith.addf %268, %269 : vector<32x1xf32>
    %271 = math.rsqrt %270 : vector<32x1xf32>
    %272 = arith.mulf %254, %271 : vector<32x1xf32>
    %273 = vector.broadcast %272 : vector<32x1xf32> to vector<32x16xf32>
    %274 = arith.mulf %251, %273 : vector<32x16xf32>
    %275 = arith.mulf %261, %272 : vector<32x1xf32>
    %276 = arith.subf %257, %275 : vector<32x1xf32>
    %277 = vector.broadcast %276 : vector<32x1xf32> to vector<32x16xf32>
    %278 = arith.addf %274, %277 : vector<32x16xf32>
    %cst_96 = arith.constant 0.000000e+00 : f32
    %279 = vector.broadcast %cst_96 : f32 to vector<32x16xf32>
    %280 = arith.maximumf %278, %279 : vector<32x16xf32>
    %281 = arith.index_cast %c1_i32 : i32 to index
    %c0_97 = arith.constant 0 : index
    %c36_98 = arith.constant 36 : index
    %282 = vector.load %arg6[%281, %c0_97, %c36_98] : memref<2x32x68xf32, #tpu.memory_space<vmem>>, vector<1x32x32xf32>
    %283 = vector.shape_cast %282 : vector<1x32x32xf32> to vector<32x32xf32>
    %cst_99 = arith.constant dense<0.000000e+00> : vector<32x16xf32>
    %284 = tpu.matmul %283, %280, %cst_99 {dimension_numbers = #tpu.dot_dimension_numbers<[1], [0], [0], [1], [0, 0, 1, 1], [], []>, precision = #tpu.contract_precision<fp32>} : vector<32x32xf32>, vector<32x16xf32>, vector<32x16xf32> -> vector<32x16xf32>
    %285 = vector.extract_strided_slice %284 {offsets = [0, 0], sizes = [4, 16], strides = [1, 1]} : vector<32x16xf32> to vector<4x16xf32>
    %286 = arith.index_cast %c1_i32 : i32 to index
    %c0_100 = arith.constant 0 : index
    %c8_101 = arith.constant 8 : index
    %287 = vector.load %arg7[%286, %c0_100, %c8_101] : memref<2x32x11xf32, #tpu.memory_space<vmem>>, vector<1x4x1xf32>
    %288 = vector.shape_cast %287 : vector<1x4x1xf32> to vector<4x1xf32>
    %289 = vector.broadcast %288 : vector<4x1xf32> to vector<4x16xf32>
    %290 = arith.addf %285, %289 : vector<4x16xf32>
    %291 = arith.index_cast %c1_i32 : i32 to index
    %c0_102 = arith.constant 0 : index
    %c9_103 = arith.constant 9 : index
    %292 = vector.load %arg7[%291, %c0_102, %c9_103] : memref<2x32x11xf32, #tpu.memory_space<vmem>>, vector<1x4x1xf32>
    %293 = vector.shape_cast %292 : vector<1x4x1xf32> to vector<4x1xf32>
    %294 = arith.index_cast %c1_i32 : i32 to index
    %c0_104 = arith.constant 0 : index
    %c10_105 = arith.constant 10 : index
    %295 = vector.load %arg7[%294, %c0_104, %c10_105] : memref<2x32x11xf32, #tpu.memory_space<vmem>>, vector<1x4x1xf32>
    %296 = vector.shape_cast %295 : vector<1x4x1xf32> to vector<4x1xf32>
    %cst_106 = arith.constant dense<0.000000e+00> : vector<4xf32>
    %297 = vector.multi_reduction <add>, %290, %cst_106 [1] : vector<4x16xf32> to vector<4xf32>
    %298 = vector.shape_cast %297 : vector<4xf32> to vector<4x1xf32>
    %cst_107 = arith.constant 1.600000e+01 : f32
    %299 = vector.broadcast %cst_107 : f32 to vector<4x1xf32>
    %300 = arith.divf %298, %299 : vector<4x1xf32>
    %301 = vector.broadcast %300 : vector<4x1xf32> to vector<4x16xf32>
    %302 = arith.subf %290, %301 : vector<4x16xf32>
    %303 = arith.mulf %302, %302 : vector<4x16xf32>
    %cst_108 = arith.constant dense<0.000000e+00> : vector<4xf32>
    %304 = vector.multi_reduction <add>, %303, %cst_108 [1] : vector<4x16xf32> to vector<4xf32>
    %305 = vector.shape_cast %304 : vector<4xf32> to vector<4x1xf32>
    %cst_109 = arith.constant 1.600000e+01 : f32
    %306 = vector.broadcast %cst_109 : f32 to vector<4x1xf32>
    %307 = arith.divf %305, %306 : vector<4x1xf32>
    %cst_110 = arith.constant 9.99999974E-6 : f32
    %308 = vector.broadcast %cst_110 : f32 to vector<4x1xf32>
    %309 = arith.addf %307, %308 : vector<4x1xf32>
    %310 = math.rsqrt %309 : vector<4x1xf32>
    %311 = arith.mulf %293, %310 : vector<4x1xf32>
    %312 = vector.broadcast %311 : vector<4x1xf32> to vector<4x16xf32>
    %313 = arith.mulf %290, %312 : vector<4x16xf32>
    %314 = arith.mulf %300, %311 : vector<4x1xf32>
    %315 = arith.subf %296, %314 : vector<4x1xf32>
    %316 = vector.broadcast %315 : vector<4x1xf32> to vector<4x16xf32>
    %317 = arith.addf %313, %316 : vector<4x16xf32>
    %318 = arith.index_cast %172 : i32 to index
    %319 = memref.load %arg1[%318] : memref<4xf32, #tpu.memory_space<smem>>
    %320 = arith.mulf %317, %177 : vector<4x16xf32>
    %cst_111 = arith.constant dense<0.000000e+00> : vector<16xf32>
    %321 = vector.multi_reduction <add>, %320, %cst_111 [0] : vector<4x16xf32> to vector<16xf32>
    %322 = vector.shape_cast %321 : vector<16xf32> to vector<1x16xf32>
    %323 = vector.broadcast %319 : f32 to vector<1x16xf32>
    %324 = arith.mulf %323, %322 : vector<1x16xf32>
    %325 = arith.addf %160, %324 : vector<1x16xf32>
    %326 = arith.index_cast %172 : i32 to index
    %327 = memref.load %arg2[%326] : memref<4xf32, #tpu.memory_space<smem>>
    %328 = vector.broadcast %327 : f32 to vector<4x16xf32>
    %329 = arith.mulf %328, %166 : vector<4x16xf32>
    %330 = arith.addf %166, %329 : vector<4x16xf32>
    %331 = arith.addf %330, %177 : vector<4x16xf32>
    %332 = arith.index_cast %c1_i32 : i32 to index
    %c0_112 = arith.constant 0 : index
    %c0_113 = arith.constant 0 : index
    %333 = vector.load %arg9[%332, %c0_112, %c0_113] : memref<2x4x16xf32, #tpu.memory_space<vmem>>, vector<1x4x16xf32>
    %334 = vector.shape_cast %333 : vector<1x4x16xf32> to vector<4x16xf32>
    %335 = vector.shape_cast %331 : vector<4x16xf32> to vector<1x4x16xf32>
    tpu.vector_store %arg9[%332, %c0_112, %c0_113], %335 {strides = array<i32>} : memref<2x4x16xf32, #tpu.memory_space<vmem>>, vector<1x4x16xf32>,
    %c2_i32_114 = arith.constant 2 : i32
    %c0_115 = arith.constant 0 : index
    %c0_116 = arith.constant 0 : index
    %336 = vector.load %arg10[%c0_115, %c0_116] : memref<4x16xf32, #tpu.memory_space<vmem>>, vector<4x16xf32>
    tpu.vector_store %arg10[%c0_115, %c0_116], %331 {strides = array<i32>} : memref<4x16xf32, #tpu.memory_space<vmem>>, vector<4x16xf32>,
    %c0_117 = arith.constant 0 : index
    %c0_118 = arith.constant 0 : index
    %337 = vector.load %arg11[%c0_117, %c0_118] : memref<1x16xf32, #tpu.memory_space<vmem>>, vector<1x16xf32>
    tpu.vector_store %arg11[%c0_117, %c0_118], %325 {strides = array<i32>} : memref<1x16xf32, #tpu.memory_space<vmem>>, vector<1x16xf32>,
    %c1_i32_119 = arith.constant 1 : i32
    %338 = arith.cmpi eq, %arg0, %c1_i32_119 : i32
    %339 = arith.extui %338 : i1 to i32
    %c0_i32_120 = arith.constant 0 : i32
    %340 = arith.cmpi ne, %339, %c0_i32_120 : i32
    scf.if %340 {
      %c0_121 = arith.constant 0 : index
      %c0_122 = arith.constant 0 : index
      %341 = vector.load %arg8[%c0_121, %c0_122] : memref<1x16xf32, #tpu.memory_space<vmem>>, vector<1x16xf32>
      tpu.vector_store %arg8[%c0_121, %c0_122], %325 {strides = array<i32>} : memref<1x16xf32, #tpu.memory_space<vmem>>, vector<1x16xf32>,
    } else {
    }
    return
  }
  func.func @transform_0(%arg0: i32, %arg1: memref<4xf32, #tpu.memory_space<smem>>, %arg2: memref<4xf32, #tpu.memory_space<smem>>) -> (i32, i32) {
    %c0_i32 = arith.constant 0 : i32
    %c0_i32_0 = arith.constant 0 : i32
    %c0_i32_1 = arith.constant 0 : i32
    return %c0_i32, %c0_i32_0 : i32, i32
  }
  func.func @transform_1(%arg0: i32, %arg1: memref<4xf32, #tpu.memory_space<smem>>, %arg2: memref<4xf32, #tpu.memory_space<smem>>) -> (i32, i32) {
    %c0_i32 = arith.constant 0 : i32
    %c0_i32_0 = arith.constant 0 : i32
    %c0_i32_1 = arith.constant 0 : i32
    return %c0_i32, %c0_i32_0 : i32, i32
  }
  func.func @transform_2(%arg0: i32, %arg1: memref<4xf32, #tpu.memory_space<smem>>, %arg2: memref<4xf32, #tpu.memory_space<smem>>) -> (i32, i32, i32) {
    %c0_i32 = arith.constant 0 : i32
    %c0_i32_0 = arith.constant 0 : i32
    %c0_i32_1 = arith.constant 0 : i32
    return %arg0, %c0_i32, %c0_i32_0 : i32, i32, i32
  }
  func.func @transform_3(%arg0: i32, %arg1: memref<4xf32, #tpu.memory_space<smem>>, %arg2: memref<4xf32, #tpu.memory_space<smem>>) -> (i32, i32, i32) {
    %c0_i32 = arith.constant 0 : i32
    %c0_i32_0 = arith.constant 0 : i32
    %c0_i32_1 = arith.constant 0 : i32
    return %arg0, %c0_i32, %c0_i32_0 : i32, i32, i32
  }
  func.func @transform_4(%arg0: i32, %arg1: memref<4xf32, #tpu.memory_space<smem>>, %arg2: memref<4xf32, #tpu.memory_space<smem>>) -> (i32, i32, i32) {
    %c0_i32 = arith.constant 0 : i32
    %c0_i32_0 = arith.constant 0 : i32
    %c0_i32_1 = arith.constant 0 : i32
    return %arg0, %c0_i32, %c0_i32_0 : i32, i32, i32
  }
  func.func @transform_5(%arg0: i32, %arg1: memref<4xf32, #tpu.memory_space<smem>>, %arg2: memref<4xf32, #tpu.memory_space<smem>>) -> (i32, i32) {
    %c0_i32 = arith.constant 0 : i32
    %c0_i32_0 = arith.constant 0 : i32
    %c0_i32_1 = arith.constant 0 : i32
    return %c0_i32, %c0_i32_0 : i32, i32
  }
  func.func @transform_6(%arg0: i32, %arg1: memref<4xf32, #tpu.memory_space<smem>>, %arg2: memref<4xf32, #tpu.memory_space<smem>>) -> (i32, i32, i32) {
    %c0_i32 = arith.constant 0 : i32
    %c0_i32_0 = arith.constant 0 : i32
    %c0_i32_1 = arith.constant 0 : i32
    return %arg0, %c0_i32, %c0_i32_0 : i32, i32, i32
  }
}

</mosaic_0001>

<llo_original>
// kernel: tpu_custom_call.1
$region0: #{tpu_custom_call.1}
  #allocation0 [shape = 'u32[]', space=smem, size = 0x4, offset = 0x4, fixed_abs, tag = 'smem constant byte address 0x4 - core index']
  #allocation1 [shape = 'u32[72,128]{1,0:T(1,128)}', space=vmem, size = 0x9000, scoped, tag = 'internal scratch']
  #allocation2 [shape = 'f32[4,16]{1,0:T(4,128)}', space=vmem, size = 0x800, scoped, tag = 'scratch operand']
  #allocation3 [shape = 'f32[1,16]{1,0:T(1,128)}', space=vmem, size = 0x200, scoped, tag = 'scratch operand']
  #allocation4 [shape = 's32[1]{0}', space=sflag, size = 0x4, scoped, tag = 'scoped memory for tpu_custom_call.1']
  #allocation5 [shape = 'u8[512]{0}', space=smem, size = 0x200, scoped, tag = 'prefetched SMEM operand 0']
  #allocation6 [shape = 'u8[512]{0}', space=smem, size = 0x200, scoped, tag = 'prefetched SMEM operand 1']
  %s0 = inlined_call_operand.vmem [shape: f32[4], index: 0, kind: input, shape index: {}]
  %s1 = inlined_call_operand.vmem [shape: f32[4], index: 1, kind: input, shape index: {}]
  %s2 = inlined_call_operand.vmem [shape: f32[4,16], index: 2, kind: input, shape index: {}]
  %s3 = inlined_call_operand.vmem [shape: f32[4,4], index: 3, kind: input, shape index: {}]
  %s4 = inlined_call_operand.vmem [shape: f32[4,4,16], index: 4, kind: input, shape index: {}]
  %s5 = inlined_call_operand.vmem [shape: f32[4,32,68], index: 5, kind: input, shape index: {}]
  %s6 = inlined_call_operand.vmem [shape: f32[4,32,11], index: 6, kind: input, shape index: {}]
  %s7 = inlined_call_operand.hbm [shape: f32[1,16], index: 7, kind: output, shape index: {0}]
  %s8 = inlined_call_operand.hbm [shape: f32[4,4,16], index: 8, kind: output, shape index: {1}]
  %9 = xla_tuple %s7, %s8
  %s10 = sld [smem:[#allocation0]]
  $region69: #{tpu_custom_call.1} parent=0
    _
  %s12 = ssub.s32 1, %s10
  %s13 = scalar_select 0, %s12, %s10
  %s15 = sshll.u32 %s0, 4
  %s16 = int_to_ptr.vmem [resolvable:$true] %s15
  %18 = dma.vmem_to_smem %s16, 16, [#allocation5], [#allocation4]
  %s20 = sshll.u32 %s1, 4
  %s21 = int_to_ptr.vmem [resolvable:$true] %s20
  %23 = dma.vmem_to_smem %s21, 16, [#allocation6], [#allocation4]
  %25 = dma.done [#allocation4], 32
  %26 = sfence
  $region1: #{tpu_custom_call.1} parent=0
    #allocation7 [shape = 'u8[512]{0}', space=vmem, size = 0x400, scoped, tag = 'output window, operand 0, single buffered']
    #allocation8 [shape = 's32[2]{0}', space=sflag, size = 0x8, scoped, tag = 'scoped memory for tpu_custom_call.1']
    #allocation9 [shape = 'u8[8192]{0}', space=vmem, size = 0x2000, scoped, tag = 'output window, operand 1']
    #allocation10 [shape = 's32[2]{0}', space=sflag, size = 0x8, scoped, tag = 'scoped memory for tpu_custom_call.1']
    %27 = vsyncpa [#allocation8], 0
    %28 = vsyncpa [#allocation10], 0
    %s29 = scalar_lea.sflag [#allocation10], 1
    %30 = vsyncpa %s29, 0
    loop: start=0, step=1, limit=4
    $region2: #{tpu_custom_call.1} parent=1 // loop_pre_header
      _
    $region3: #{tpu_custom_call.1} parent=1 // loop_header
      %s32 = sphi 0, %s36
      %p33 = scmp.ge.s32.totalorder %s32, 4
      %s40 = sphi 0, %s40
      %s42 = sphi 0, %s40
      %s43 = sphi 0, %s42
      %s57 = sphi 0, %s43
      %s61 = sphi 0, %s61
      %s63 = sphi 0, %s61
      %s64 = sphi 0, %s63
      %s78 = sphi 0, %s64
      %s84 = sphi 0, %s86
      %s87 = sphi 0, %s84
      %s88 = sphi 0, %s87
      %s104 = sphi 0, %s88
      %s110 = sphi 0, %s112
      %s113 = sphi 0, %s110
      %s114 = sphi 0, %s113
      %s130 = sphi 0, %s114
      %s136 = sphi 0, %s138
      %s139 = sphi 0, %s136
      %s140 = sphi 0, %s139
      %s156 = sphi 0, %s140
      %s160 = sphi 0, %s160
      %s162 = sphi 0, %s160
      %s163 = sphi 0, %s162
      %s177 = sphi 0, %s163
      %s183 = sphi 0, %s185
      %s186 = sphi 0, %s183
      %s187 = sphi 0, %s186
      %s203 = sphi 0, %s187
    $region4: #{tpu_custom_call.1} parent=1 // loop_header_branch
      %35 = sbr.rel (%p33) target = $region8
    $region5: #{tpu_custom_call.1} parent=1 // loop_body
      %s37 = ssub.s32 %s32, 1
      %s38 = ssub.s32 %s32, 2
      %s39 = sadd.s32 %s32, 1
      %s41 = sadd.s32 %s40, 1
      %p44 = scmp.eq.s32.totalorder %s32, 1
      %p45 = scmp.ne.s32.totalorder %s40, %s42
      %p46 = scmp.eq.s32.totalorder %s32, 0
      %p47 = por %p45, %p46
      %p48 = scmp.ne.s32.totalorder %s40, %s42
      %p49 = scmp.eq.s32.totalorder %s37, 1
      %p50 = por %p48, %p49
      %p51 = scmp.ne.s32.totalorder %s42, %s43
      %p52 = scmp.eq.s32.totalorder %s37, 0
      %p53 = por %p51, %p52
      %p54 = scmp.ne.s32.totalorder %s42, %s43
      %p55 = scmp.eq.s32.totalorder %s38, 1
      %p56 = por %p54, %p55
      %p58 = scmp.ne.s32.totalorder %s43, %s57
      %p59 = scmp.eq.s32.totalorder %s38, 0
      %p60 = por %p58, %p59
      %s62 = sadd.s32 %s61, 1
      %p65 = scmp.eq.s32.totalorder %s32, 1
      %p66 = scmp.ne.s32.totalorder %s61, %s63
      %p67 = scmp.eq.s32.totalorder %s32, 0
      %p68 = por %p66, %p67
      %p69 = scmp.ne.s32.totalorder %s61, %s63
      %p70 = scmp.eq.s32.totalorder %s37, 1
      %p71 = por %p69, %p70
      %p72 = scmp.ne.s32.totalorder %s63, %s64
      %p73 = scmp.eq.s32.totalorder %s37, 0
      %p74 = por %p72, %p73
      %p75 = scmp.ne.s32.totalorder %s63, %s64
      %p76 = scmp.eq.s32.totalorder %s38, 1
      %p77 = por %p75, %p76
      %p79 = scmp.ne.s32.totalorder %s64, %s78
      %p80 = scmp.eq.s32.totalorder %s38, 0
      %p81 = por %p79, %p80
      %s82 = ssub.s32 %s32, %s39
      %p83 = scmp.eq.s32.totalorder %s82, 0
      %s85 = sadd.s32 %s84, 1
      %s86 = scalar_select %p83, %s84, %s85
      %p89 = pneg %p83
      %p90 = scmp.eq.s32.totalorder %s32, 1
      %p91 = por %p89, %p90
      %p92 = scmp.ne.s32.totalorder %s84, %s87
      %p93 = scmp.eq.s32.totalorder %s32, 0
      %p94 = por %p92, %p93
      %p95 = scmp.ne.s32.totalorder %s84, %s87
      %p96 = scmp.eq.s32.totalorder %s37, 1
      %p97 = por %p95, %p96
      %p98 = scmp.ne.s32.totalorder %s87, %s88
      %p99 = scmp.eq.s32.totalorder %s37, 0
      %p100 = por %p98, %p99
      %p101 = scmp.ne.s32.totalorder %s87, %s88
      %p102 = scmp.eq.s32.totalorder %s38, 1
      %p103 = por %p101, %p102
      %p105 = scmp.ne.s32.totalorder %s88, %s104
      %p106 = scmp.eq.s32.totalorder %s38, 0
      %p107 = por %p105, %p106
      %s108 = ssub.s32 %s32, %s39
      %p109 = scmp.eq.s32.totalorder %s108, 0
      %s111 = sadd.s32 %s110, 1
      %s112 = scalar_select %p109, %s110, %s111
      %p115 = pneg %p109
      %p116 = scmp.eq.s32.totalorder %s32, 1
      %p117 = por %p115, %p116
      %p118 = scmp.ne.s32.totalorder %s110, %s113
      %p119 = scmp.eq.s32.totalorder %s32, 0
      %p120 = por %p118, %p119
      %p121 = scmp.ne.s32.totalorder %s110, %s113
      %p122 = scmp.eq.s32.totalorder %s37, 1
      %p123 = por %p121, %p122
      %p124 = scmp.ne.s32.totalorder %s113, %s114
      %p125 = scmp.eq.s32.totalorder %s37, 0
      %p126 = por %p124, %p125
      %p127 = scmp.ne.s32.totalorder %s113, %s114
      %p128 = scmp.eq.s32.totalorder %s38, 1
      %p129 = por %p127, %p128
      %p131 = scmp.ne.s32.totalorder %s114, %s130
      %p132 = scmp.eq.s32.totalorder %s38, 0
      %p133 = por %p131, %p132
      %s134 = ssub.s32 %s32, %s39
      %p135 = scmp.eq.s32.totalorder %s134, 0
      %s137 = sadd.s32 %s136, 1
      %s138 = scalar_select %p135, %s136, %s137
      %p141 = pneg %p135
      %p142 = scmp.eq.s32.totalorder %s32, 1
      %p143 = por %p141, %p142
      %p144 = scmp.ne.s32.totalorder %s136, %s139
      %p145 = scmp.eq.s32.totalorder %s32, 0
      %p146 = por %p144, %p145
      %p147 = scmp.ne.s32.totalorder %s136, %s139
      %p148 = scmp.eq.s32.totalorder %s37, 1
      %p149 = por %p147, %p148
      %p150 = scmp.ne.s32.totalorder %s139, %s140
      %p151 = scmp.eq.s32.totalorder %s37, 0
      %p152 = por %p150, %p151
      %p153 = scmp.ne.s32.totalorder %s139, %s140
      %p154 = scmp.eq.s32.totalorder %s38, 1
      %p155 = por %p153, %p154
      %p157 = scmp.ne.s32.totalorder %s140, %s156
      %p158 = scmp.eq.s32.totalorder %s38, 0
      %p159 = por %p157, %p158
      %s161 = sadd.s32 %s160, 1
      %p164 = scmp.eq.s32.totalorder %s32, 1
      %p165 = scmp.ne.s32.totalorder %s160, %s162
      %p166 = scmp.eq.s32.totalorder %s32, 0
      %p167 = por %p165, %p166
      %p168 = scmp.ne.s32.totalorder %s160, %s162
      %p169 = scmp.eq.s32.totalorder %s37, 1
      %p170 = por %p168, %p169
      %p171 = scmp.ne.s32.totalorder %s162, %s163
      %p172 = scmp.eq.s32.totalorder %s37, 0
      %p173 = por %p171, %p172
      %p174 = scmp.ne.s32.totalorder %s162, %s163
      %p175 = scmp.eq.s32.totalorder %s38, 1
      %p176 = por %p174, %p175
      %p178 = scmp.ne.s32.totalorder %s163, %s177
      %p179 = scmp.eq.s32.totalorder %s38, 0
      %p180 = por %p178, %p179
      %s181 = ssub.s32 %s32, %s39
      %p182 = scmp.eq.s32.totalorder %s181, 0
      %s184 = sadd.s32 %s183, 1
      %s185 = scalar_select %p182, %s183, %s184
      %p188 = pneg %p182
      %p189 = scmp.eq.s32.totalorder %s32, 1
      %p190 = por %p188, %p189
      %p191 = scmp.ne.s32.totalorder %s183, %s186
      %p192 = scmp.eq.s32.totalorder %s32, 0
      %p193 = por %p191, %p192
      %p194 = scmp.ne.s32.totalorder %s183, %s186
      %p195 = scmp.eq.s32.totalorder %s37, 1
      %p196 = por %p194, %p195
      %p197 = scmp.ne.s32.totalorder %s186, %s187
      %p198 = scmp.eq.s32.totalorder %s37, 0
      %p199 = por %p197, %p198
      %p200 = scmp.ne.s32.totalorder %s186, %s187
      %p201 = scmp.eq.s32.totalorder %s38, 1
      %p202 = por %p200, %p201
      %p204 = scmp.ne.s32.totalorder %s187, %s203
      %p205 = scmp.eq.s32.totalorder %s38, 0
      %p206 = por %p204, %p205
      %p207 = scmp.le.s32.totalorder 1, %s32
      %p208 = scmp.lt.s32.totalorder %s32, 3
      %p209 = pnand %p207, %p208
      %p210 = pneg %p209
      // Predicated region
      $region9: #{tpu_custom_call.1} parent=5 // pred_check
        _
      $region10: #{tpu_custom_call.1} parent=5 // pred_check_branch
        %212 = sbr.rel (%p209) target = $region12
      $region11: #{tpu_custom_call.1} parent=5 // pred_region
        %s213 = ssub.s32 %s32, 1
        // Predicated region
        $region13: #{tpu_custom_call.1} parent=11 // pred_check
          %p214 = pneg %p53
        $region14: #{tpu_custom_call.1} parent=11 // pred_check_branch
          %216 = sbr.rel (%p214) target = $region16
        $region15: #{tpu_custom_call.1} parent=11 // pred_region
          _
        $region16: #{tpu_custom_call.1} parent=11 // pred_fallthru
          _
        // Predicated region
        $region17: #{tpu_custom_call.1} parent=11 // pred_check
          %p217 = pneg %p74
        $region18: #{tpu_custom_call.1} parent=11 // pred_check_branch
          %219 = sbr.rel (%p217) target = $region20
        $region19: #{tpu_custom_call.1} parent=11 // pred_region
          _
        $region20: #{tpu_custom_call.1} parent=11 // pred_fallthru
          _
      $region12: #{tpu_custom_call.1} parent=5 // pred_fallthru
        _
      %p220 = scmp.lt.s32.totalorder %s32, 2
      // Predicated region
      $region21: #{tpu_custom_call.1} parent=5 // pred_check
        %p221 = pneg %p220
      $region22: #{tpu_custom_call.1} parent=5 // pred_check_branch
        %223 = sbr.rel (%p221) target = $region24
      $region23: #{tpu_custom_call.1} parent=5 // pred_region
        // Predicated region
        $region25: #{tpu_custom_call.1} parent=23 // pred_check
          %p224 = pneg %p94
        $region26: #{tpu_custom_call.1} parent=23 // pred_check_branch
          %226 = sbr.rel (%p224) target = $region28
        $region27: #{tpu_custom_call.1} parent=23 // pred_region
          %s227 = smul.u32 2, %s32
          %p228 = scmp.lt.s32.totalorder %s227, 3
          %s229 = scalar_select %p228, %s227, 3
          %s230 = smul.addr %s229, 4
          %s231 = scalar_lea.vmem %s4, %s230
          %s232 = smul.u32 2, %s32
        $region28: #{tpu_custom_call.1} parent=23 // pred_fallthru
          _
        // Predicated region
        $region29: #{tpu_custom_call.1} parent=23 // pred_check
          %p233 = pneg %p120
        $region30: #{tpu_custom_call.1} parent=23 // pred_check_branch
          %235 = sbr.rel (%p233) target = $region32
        $region31: #{tpu_custom_call.1} parent=23 // pred_region
          %s236 = smul.u32 2, %s32
          %p237 = scmp.lt.s32.totalorder %s236, 3
          %s238 = scalar_select %p237, %s236, 3
          %s239 = smul.addr %s238, 4
          %s240 = smul.addr %s239, 8
          %s241 = scalar_lea.vmem %s5, %s240
          %s242 = smul.u32 2, %s32
        $region32: #{tpu_custom_call.1} parent=23 // pred_fallthru
          _
        // Predicated region
        $region33: #{tpu_custom_call.1} parent=23 // pred_check
          %p243 = pneg %p146
        $region34: #{tpu_custom_call.1} parent=23 // pred_check_branch
          %245 = sbr.rel (%p243) target = $region36
        $region35: #{tpu_custom_call.1} parent=23 // pred_region
          %s246 = smul.u32 2, %s32
          %p247 = scmp.lt.s32.totalorder %s246, 3
          %s248 = scalar_select %p247, %s246, 3
          %s249 = smul.addr %s248, 4
          %s250 = smul.addr %s249, 8
          %s251 = scalar_lea.vmem %s6, %s250
          %s252 = smul.u32 2, %s32
        $region36: #{tpu_custom_call.1} parent=23 // pred_fallthru
          _
      $region24: #{tpu_custom_call.1} parent=5 // pred_fallthru
        _
      %p253 = scmp.le.s32.totalorder 1, %s32
      %p254 = scmp.lt.s32.totalorder %s32, 3
      %p255 = pnand %p253, %p254
      %p256 = pneg %p255
      // Predicated region
      $region37: #{tpu_custom_call.1} parent=5 // pred_check
        _
      $region38: #{tpu_custom_call.1} parent=5 // pred_check_branch
        %258 = sbr.rel (%p255) target = $region40
      $region39: #{tpu_custom_call.1} parent=5 // pred_region
        %s259 = ssub.s32 %s32, 1
        %p260 = pneg %p53
        %p261 = pneg %p50
        %p262 = pneg %p74
        %p263 = pneg %p71
        %s264 = smul.u32 2, %s37
        %p265 = scmp.lt.s32.totalorder %s264, 3
        %s266 = scalar_select %p265, %s264, 3
        %s267 = smul.addr %s266, 4
        %s268 = scalar_lea.vmem %s4, %s267
        %p269 = pneg %p100
        %p270 = pneg %p97
        %s271 = smul.u32 2, %s37
        %p272 = scmp.lt.s32.totalorder %s271, 3
        %s273 = scalar_select %p272, %s271, 3
        %s274 = smul.addr %s273, 4
        %s275 = smul.addr %s274, 8
        %s276 = scalar_lea.vmem %s5, %s275
        %p277 = pneg %p126
        %p278 = pneg %p123
        %s279 = smul.u32 2, %s37
        %p280 = scmp.lt.s32.totalorder %s279, 3
        %s281 = scalar_select %p280, %s279, 3
        %s282 = smul.addr %s281, 4
        %s283 = smul.addr %s282, 8
        %s284 = scalar_lea.vmem %s6, %s283
        %p285 = pneg %p152
        %p286 = pneg %p149
        %p287 = pneg %p173
        %p288 = pneg %p170
        %p289 = pneg %p199
        %p290 = pneg %p196
        %s291 = sand.u32 %s186, 1
        %s292 = scalar_lea.sflag [#allocation10], %s291
        %s293 = sand.u32 %s186, 1
        %s294 = smul.addr %s293, 8
        %s295 = scalar_lea.vmem [#allocation9], %s294
        %s296 = smul.u32 2, %s37
        %p297 = scmp.lt.s32.totalorder %s296, 3
        %s298 = scalar_select %p297, %s296, 3
        %s299 = smul.addr %s298, 4
        %s300 = scalar_lea.vmem %s4, %s299
        %s301 = smul.u32 2, %s37
        %s302 = smul.u32 2, %s37
        %p303 = scmp.lt.s32.totalorder %s302, 3
        %s304 = scalar_select %p303, %s302, 3
        %s305 = smul.addr %s304, 4
        %s306 = smul.addr %s305, 8
        %s307 = scalar_lea.vmem %s5, %s306
        %s308 = smul.u32 2, %s37
        %s309 = smul.u32 2, %s37
        %p310 = scmp.lt.s32.totalorder %s309, 3
        %s311 = scalar_select %p310, %s309, 3
        %s312 = smul.addr %s311, 4
        %s313 = smul.addr %s312, 8
        %s314 = scalar_lea.vmem %s6, %s313
        %s315 = smul.u32 2, %s37
        %s316 = smul.u32 2, %s37
        %p317 = scmp.eq.s32.totalorder %s37, 0
        // Predicated region
        $region41: #{tpu_custom_call.1} parent=39 // pred_check
          %p318 = pneg %p317
        $region42: #{tpu_custom_call.1} parent=39 // pred_check_branch
          %320 = sbr.rel (%p318) target = $region44
        $region43: #{tpu_custom_call.1} parent=39 // pred_region
          %v321 = vld [vmem:[%s2] sm:$0xf]
          %vm322 = vcmask 125952
          %323 = vst.msk [vmem:[#allocation2] sm:$0xf] %vm322, %v321
          %vm324 = vcmask 122880
          %325 = vst.msk [vmem:[#allocation3] sm:$0x1] %vm324, 0.0
        $region44: #{tpu_custom_call.1} parent=39 // pred_fallthru
          _
        %v326 = vld [vmem:[%s3] sm:$0xf]
        %v327 = vld [vmem:[#allocation2] sm:$0xf]
        %v328 = vld [vmem:[#allocation3] sm:$0x1]
        %s329 = smul.u32 %s37, 2
        %v330 = vld [vmem:[%s300] sm:$0xf]
        %vm331 = vcmask 31744
        %v333 = vsel %vm331, %v326, 0
        %vm335 = vcmask 1043456
        %v337 = vsel %vm335, %v330, 0
        %339 = vmatpush.msra.mxu0 0.0
        %340 = vmatpush.msra.mxu0 0.0
        %341 = vmatpush.msra.mxu0 0.0
        %342 = vmatpush.msra.mxu0 0.0
        %343 = vmatpush.msra.mxu0 0.0
        %344 = vmatpush.msra.mxu0 0.0
        %345 = vmatpush.msra.mxu0 0.0
        %346 = vmatpush.msra.mxu0 0.0
        %347 = vmatpush.msra.mxu0 0.0
        %348 = vmatpush.msra.mxu0 0.0
        %349 = vmatpush.msra.mxu0 0.0
        %350 = vmatpush.msra.mxu0 0.0
        %351 = vmatpush.msra.mxu0 0.0
        %352 = vmatpush.msra.mxu0 0.0
        %353 = vmatpush.msra.mxu0 0.0
        %v354 = vand.u32 %v337, 4294901760
        %355 = vmatpush.msra.mxu0 %v354
        %v356 = vand.u32 %v333, 4294901760
        %v357 = vsub.f32 %v333, %v356
        %v358 = vand.u32 %v357, 4294901760
        %v359 = vsub.f32 %v357, %v358
        %v360 = vand.u32 %v359, 4294901760
        %361 = vmatmul.f32.gmra.mxu0 %v360
        %v362 = vpop.f32.mrf.mxu0
        %v363 = vadd.f32 0.0, %v362
        %364 = vdwg.mxu0
        %365 = vmatpush.msra.mxu0 0.0
        %366 = vmatpush.msra.mxu0 0.0
        %367 = vmatpush.msra.mxu0 0.0
        %368 = vmatpush.msra.mxu0 0.0
        %369 = vmatpush.msra.mxu0 0.0
        %370 = vmatpush.msra.mxu0 0.0
        %371 = vmatpush.msra.mxu0 0.0
        %372 = vmatpush.msra.mxu0 0.0
        %373 = vmatpush.msra.mxu0 0.0
        %374 = vmatpush.msra.mxu0 0.0
        %375 = vmatpush.msra.mxu0 0.0
        %376 = vmatpush.msra.mxu0 0.0
        %377 = vmatpush.msra.mxu0 0.0
        %378 = vmatpush.msra.mxu0 0.0
        %379 = vmatpush.msra.mxu0 0.0
        %v380 = vand.u32 %v337, 4294901760
        %v381 = vsub.f32 %v337, %v380
        %v382 = vand.u32 %v381, 4294901760
        %v383 = vsub.f32 %v381, %v382
        %v384 = vand.u32 %v383, 4294901760
        %385 = vmatpush.msra.mxu0 %v384
        %v386 = vand.u32 %v333, 4294901760
        %387 = vmatmul.f32.gmra.mxu0 %v386
        %v388 = vpop.f32.mrf.mxu0
        %v389 = vadd.f32 %v363, %v388
        %390 = vdwg.mxu0
        %391 = vmatpush.msra.mxu0 0.0
        %392 = vmatpush.msra.mxu0 0.0
        %393 = vmatpush.msra.mxu0 0.0
        %394 = vmatpush.msra.mxu0 0.0
        %395 = vmatpush.msra.mxu0 0.0
        %396 = vmatpush.msra.mxu0 0.0
        %397 = vmatpush.msra.mxu0 0.0
        %398 = vmatpush.msra.mxu0 0.0
        %399 = vmatpush.msra.mxu0 0.0
        %400 = vmatpush.msra.mxu0 0.0
        %401 = vmatpush.msra.mxu0 0.0
        %402 = vmatpush.msra.mxu0 0.0
        %403 = vmatpush.msra.mxu0 0.0
        %404 = vmatpush.msra.mxu0 0.0
        %405 = vmatpush.msra.mxu0 0.0
        %v406 = vand.u32 %v337, 4294901760
        %v407 = vsub.f32 %v337, %v406
        %408 = vmatpush.msra.mxu0 %v407
        %v409 = vand.u32 %v333, 4294901760
        %v410 = vsub.f32 %v333, %v409
        %411 = vmatmul.f32.gmra.mxu0 %v410
        %v412 = vpop.f32.mrf.mxu0
        %v413 = vadd.f32 %v389, %v412
        %414 = vdwg.mxu0
        %415 = vmatpush.msra.mxu0 0.0
        %416 = vmatpush.msra.mxu0 0.0
        %417 = vmatpush.msra.mxu0 0.0
        %418 = vmatpush.msra.mxu0 0.0
        %419 = vmatpush.msra.mxu0 0.0
        %420 = vmatpush.msra.mxu0 0.0
        %421 = vmatpush.msra.mxu0 0.0
        %422 = vmatpush.msra.mxu0 0.0
        %423 = vmatpush.msra.mxu0 0.0
        %424 = vmatpush.msra.mxu0 0.0
        %425 = vmatpush.msra.mxu0 0.0
        %426 = vmatpush.msra.mxu0 0.0
        %427 = vmatpush.msra.mxu0 0.0
        %428 = vmatpush.msra.mxu0 0.0
        %429 = vmatpush.msra.mxu0 0.0
        %v430 = vand.u32 %v337, 4294901760
        %431 = vmatpush.msra.mxu0 %v430
        %v432 = vand.u32 %v333, 4294901760
        %v433 = vsub.f32 %v333, %v432
        %v434 = vand.u32 %v433, 4294901760
        %435 = vmatmul.f32.gmra.mxu0 %v434
        %v436 = vpop.f32.mrf.mxu0
        %v437 = vadd.f32 %v413, %v436
        %438 = vdwg.mxu0
        %439 = vmatpush.msra.mxu0 0.0
        %440 = vmatpush.msra.mxu0 0.0
        %441 = vmatpush.msra.mxu0 0.0
        %442 = vmatpush.msra.mxu0 0.0
        %443 = vmatpush.msra.mxu0 0.0
        %444 = vmatpush.msra.mxu0 0.0
        %445 = vmatpush.msra.mxu0 0.0
        %446 = vmatpush.msra.mxu0 0.0
        %447 = vmatpush.msra.mxu0 0.0
        %448 = vmatpush.msra.mxu0 0.0
        %449 = vmatpush.msra.mxu0 0.0
        %450 = vmatpush.msra.mxu0 0.0
        %451 = vmatpush.msra.mxu0 0.0
        %452 = vmatpush.msra.mxu0 0.0
        %453 = vmatpush.msra.mxu0 0.0
        %v454 = vand.u32 %v337, 4294901760
        %v455 = vsub.f32 %v337, %v454
        %v456 = vand.u32 %v455, 4294901760
        %457 = vmatpush.msra.mxu0 %v456
        %v458 = vand.u32 %v333, 4294901760
        %459 = vmatmul.f32.gmra.mxu0 %v458
        %v460 = vpop.f32.mrf.mxu0
        %v461 = vadd.f32 %v437, %v460
        %462 = vdwg.mxu0
        %463 = vmatpush.msra.mxu0 0.0
        %464 = vmatpush.msra.mxu0 0.0
        %465 = vmatpush.msra.mxu0 0.0
        %466 = vmatpush.msra.mxu0 0.0
        %467 = vmatpush.msra.mxu0 0.0
        %468 = vmatpush.msra.mxu0 0.0
        %469 = vmatpush.msra.mxu0 0.0
        %470 = vmatpush.msra.mxu0 0.0
        %471 = vmatpush.msra.mxu0 0.0
        %472 = vmatpush.msra.mxu0 0.0
        %473 = vmatpush.msra.mxu0 0.0
        %474 = vmatpush.msra.mxu0 0.0
        %475 = vmatpush.msra.mxu0 0.0
        %476 = vmatpush.msra.mxu0 0.0
        %477 = vmatpush.msra.mxu0 0.0
        %v478 = vand.u32 %v337, 4294901760
        %479 = vmatpush.msra.mxu0 %v478
        %v480 = vand.u32 %v333, 4294901760
        %481 = vmatmul.f32.gmra.mxu0 %v480
        %v482 = vpop.f32.mrf.mxu0
        %v483 = vadd.f32 %v461, %v482
        %484 = vdwg.mxu0
        %v485 = vmul.f32 %v327, %v483
        %v486 = vld [vmem:[%s314] sm:$0xf]
        %vm487 = vcmask 125952
        %v488 = vsel %vm487, %v327, 0.0
        %489 = vadd.xlane.f32.xlu0 %v488
        %v490 = vpop.xlane.xlu0 %489
        %v491 = vrcp.pop 16.0
        %v492 = vmul.f32 16.0, %v491
        %v493 = vsub.f32 1.0, %v492
        %v494 = vmul.f32 %v491, %v493
        %v495 = vadd.f32 %v491, %v494
        %vm496 = vweird.f32 %v491
        %v497 = vsel %vm496, %v491, %v495
        %v498 = vmul.f32 %v490, %v497
        %v499 = vsub.f32 %v327, %v498
        %v500 = vmul.f32 %v499, %v499
        %v501 = vsel %vm487, %v500, 0.0
        %502 = vadd.xlane.f32.xlu0 %v501
        %v503 = vpop.xlane.xlu0 %502
        %v504 = vmul.f32 %v503, %v497
        %v505 = vadd.f32 %v504, 1e-05
        %v506 = vrsqrt.pop %v505
        %v507 = vmul.f32 %v506, %v505
        %v508 = vmul.f32 %v507, %v506
        %v509 = vmul.f32 0.5, %v508
        %v510 = vsub.f32 1.5, %v509
        %v511 = vmul.f32 %v506, %v510
        %vm512 = vweird.f32 %v505
        %vm513 = vweird.f32 %v506
        %vm514 = vmor %vm512, %vm513
        %v515 = vsel %vm514, %v506, %v511
        %v516 = vmul.f32 %v486, %v515
        %518 = vset.pattern.permute.xlu0 0
        %519 = vperm.xlu0 %518, %v516
        %v520 = vpop.permute.xlu0 %519
        %v522 = vmul.f32 %v327, %v520
        %v523 = vmul.f32 %v498, %v516
        %525 = vrot.lane.b32.xlu0 %v523, 1
        %v526 = vpop.permute.xlu0 %525
        %v528 = vsub.f32 %v486, %v526
        %530 = vset.pattern.permute.xlu0 1
        %531 = vperm.xlu0 %530, %v528
        %v532 = vpop.permute.xlu0 %531
        %v534 = vadd.f32 %v522, %v532
        %v535 = vld [vmem:[%s307] sm:$0xff]
        %v536 = vld [vmem:[%s307 + $0x8] sm:$0xff]
        %v537 = vld [vmem:[%s307 + $0x10] sm:$0xff]
        %v538 = vld [vmem:[%s307 + $0x18] sm:$0xff]
        %v539 = vld [vmem:[%s314] sm:$0xff]
        %v540 = vld [vmem:[%s314 + $0x8] sm:$0xff]
        %v541 = vld [vmem:[%s314 + $0x10] sm:$0xff]
        %v542 = vld [vmem:[%s314 + $0x18] sm:$0xff]
        %544 = vset.pattern.permute.xlu0 2
        %545 = vperm.xlu0 %544, %v539
        %v546 = vpop.permute.xlu0 %545
        %549 = vset.pattern.permute.xlu0 2
        %550 = vperm.xlu0 %549, %v540
        %v551 = vpop.permute.xlu0 %550
        %554 = vset.pattern.permute.xlu0 2
        %555 = vperm.xlu0 %554, %v541
        %v556 = vpop.permute.xlu0 %555
        %559 = vset.pattern.permute.xlu0 2
        %560 = vperm.xlu0 %559, %v542
        %v561 = vpop.permute.xlu0 %560
        %v564 = vsel %vm331, %v535, 0
        %v567 = vsel %vm331, %v536, 0
        %v570 = vsel %vm331, %v537, 0
        %v573 = vsel %vm331, %v538, 0
        %v576 = vsel %vm335, %v534, 0
        %578 = vmatpush.msra.mxu0 0.0
        %579 = vmatpush.msra.mxu0 0.0
        %580 = vmatpush.msra.mxu0 0.0
        %581 = vmatpush.msra.mxu0 0.0
        %582 = vmatpush.msra.mxu0 0.0
        %583 = vmatpush.msra.mxu0 0.0
        %584 = vmatpush.msra.mxu0 0.0
        %585 = vmatpush.msra.mxu0 0.0
        %586 = vmatpush.msra.mxu0 0.0
        %587 = vmatpush.msra.mxu0 0.0
        %588 = vmatpush.msra.mxu0 0.0
        %589 = vmatpush.msra.mxu0 0.0
        %590 = vmatpush.msra.mxu0 0.0
        %591 = vmatpush.msra.mxu0 0.0
        %592 = vmatpush.msra.mxu0 0.0
        %v593 = vand.u32 %v576, 4294901760
        %594 = vmatpush.msra.mxu0 %v593
        %v595 = vand.u32 %v564, 4294901760
        %v596 = vsub.f32 %v564, %v595
        %v597 = vand.u32 %v596, 4294901760
        %v598 = vsub.f32 %v596, %v597
        %v599 = vand.u32 %v598, 4294901760
        %600 = vmatmul.f32.gmra.mxu0 %v599
        %v601 = vpop.f32.mrf.mxu0
        %v602 = vadd.f32 %v546, %v601
        %v603 = vand.u32 %v567, 4294901760
        %v604 = vsub.f32 %v567, %v603
        %v605 = vand.u32 %v604, 4294901760
        %v606 = vsub.f32 %v604, %v605
        %v607 = vand.u32 %v606, 4294901760
        %608 = vmatmul.f32.gmra.mxu0 %v607
        %v609 = vpop.f32.mrf.mxu0
        %v610 = vadd.f32 %v551, %v609
        %v611 = vand.u32 %v570, 4294901760
        %v612 = vsub.f32 %v570, %v611
        %v613 = vand.u32 %v612, 4294901760
        %v614 = vsub.f32 %v612, %v613
        %v615 = vand.u32 %v614, 4294901760
        %616 = vmatmul.f32.gmra.mxu0 %v615
        %v617 = vpop.f32.mrf.mxu0
        %v618 = vadd.f32 %v556, %v617
        %v619 = vand.u32 %v573, 4294901760
        %v620 = vsub.f32 %v573, %v619
        %v621 = vand.u32 %v620, 4294901760
        %v622 = vsub.f32 %v620, %v621
        %v623 = vand.u32 %v622, 4294901760
        %624 = vmatmul.f32.gmra.mxu0 %v623
        %v625 = vpop.f32.mrf.mxu0
        %v626 = vadd.f32 %v561, %v625
        %627 = vdwg.mxu0
        %628 = vmatpush.msra.mxu0 0.0
        %629 = vmatpush.msra.mxu0 0.0
        %630 = vmatpush.msra.mxu0 0.0
        %631 = vmatpush.msra.mxu0 0.0
        %632 = vmatpush.msra.mxu0 0.0
        %633 = vmatpush.msra.mxu0 0.0
        %634 = vmatpush.msra.mxu0 0.0
        %635 = vmatpush.msra.mxu0 0.0
        %636 = vmatpush.msra.mxu0 0.0
        %637 = vmatpush.msra.mxu0 0.0
        %638 = vmatpush.msra.mxu0 0.0
        %639 = vmatpush.msra.mxu0 0.0
        %640 = vmatpush.msra.mxu0 0.0
        %641 = vmatpush.msra.mxu0 0.0
        %642 = vmatpush.msra.mxu0 0.0
        %v643 = vand.u32 %v576, 4294901760
        %v644 = vsub.f32 %v576, %v643
        %v645 = vand.u32 %v644, 4294901760
        %v646 = vsub.f32 %v644, %v645
        %v647 = vand.u32 %v646, 4294901760
        %648 = vmatpush.msra.mxu0 %v647
        %v649 = vand.u32 %v564, 4294901760
        %650 = vmatmul.f32.gmra.mxu0 %v649
        %v651 = vpop.f32.mrf.mxu0
        %v652 = vadd.f32 %v602, %v651
        %v653 = vand.u32 %v567, 4294901760
        %654 = vmatmul.f32.gmra.mxu0 %v653
        %v655 = vpop.f32.mrf.mxu0
        %v656 = vadd.f32 %v610, %v655
        %v657 = vand.u32 %v570, 4294901760
        %658 = vmatmul.f32.gmra.mxu0 %v657
        %v659 = vpop.f32.mrf.mxu0
        %v660 = vadd.f32 %v618, %v659
        %v661 = vand.u32 %v573, 4294901760
        %662 = vmatmul.f32.gmra.mxu0 %v661
        %v663 = vpop.f32.mrf.mxu0
        %v664 = vadd.f32 %v626, %v663
        %665 = vdwg.mxu0
        %666 = vmatpush.msra.mxu0 0.0
        %667 = vmatpush.msra.mxu0 0.0
        %668 = vmatpush.msra.mxu0 0.0
        %669 = vmatpush.msra.mxu0 0.0
        %670 = vmatpush.msra.mxu0 0.0
        %671 = vmatpush.msra.mxu0 0.0
        %672 = vmatpush.msra.mxu0 0.0
        %673 = vmatpush.msra.mxu0 0.0
        %674 = vmatpush.msra.mxu0 0.0
        %675 = vmatpush.msra.mxu0 0.0
        %676 = vmatpush.msra.mxu0 0.0
        %677 = vmatpush.msra.mxu0 0.0
        %678 = vmatpush.msra.mxu0 0.0
        %679 = vmatpush.msra.mxu0 0.0
        %680 = vmatpush.msra.mxu0 0.0
        %v681 = vand.u32 %v576, 4294901760
        %v682 = vsub.f32 %v576, %v681
        %683 = vmatpush.msra.mxu0 %v682
        %v684 = vand.u32 %v564, 4294901760
        %v685 = vsub.f32 %v564, %v684
        %686 = vmatmul.f32.gmra.mxu0 %v685
        %v687 = vpop.f32.mrf.mxu0
        %v688 = vadd.f32 %v652, %v687
        %v689 = vand.u32 %v567, 4294901760
        %v690 = vsub.f32 %v567, %v689
        %691 = vmatmul.f32.gmra.mxu0 %v690
        %v692 = vpop.f32.mrf.mxu0
        %v693 = vadd.f32 %v656, %v692
        %v694 = vand.u32 %v570, 4294901760
        %v695 = vsub.f32 %v570, %v694
        %696 = vmatmul.f32.gmra.mxu0 %v695
        %v697 = vpop.f32.mrf.mxu0
        %v698 = vadd.f32 %v660, %v697
        %v699 = vand.u32 %v573, 4294901760
        %v700 = vsub.f32 %v573, %v699
        %701 = vmatmul.f32.gmra.mxu0 %v700
        %v702 = vpop.f32.mrf.mxu0
        %v703 = vadd.f32 %v664, %v702
        %704 = vdwg.mxu0
        %705 = vmatpush.msra.mxu0 0.0
        %706 = vmatpush.msra.mxu0 0.0
        %707 = vmatpush.msra.mxu0 0.0
        %708 = vmatpush.msra.mxu0 0.0
        %709 = vmatpush.msra.mxu0 0.0
        %710 = vmatpush.msra.mxu0 0.0
        %711 = vmatpush.msra.mxu0 0.0
        %712 = vmatpush.msra.mxu0 0.0
        %713 = vmatpush.msra.mxu0 0.0
        %714 = vmatpush.msra.mxu0 0.0
        %715 = vmatpush.msra.mxu0 0.0
        %716 = vmatpush.msra.mxu0 0.0
        %717 = vmatpush.msra.mxu0 0.0
        %718 = vmatpush.msra.mxu0 0.0
        %719 = vmatpush.msra.mxu0 0.0
        %v720 = vand.u32 %v576, 4294901760
        %721 = vmatpush.msra.mxu0 %v720
        %v722 = vand.u32 %v564, 4294901760
        %v723 = vsub.f32 %v564, %v722
        %v724 = vand.u32 %v723, 4294901760
        %725 = vmatmul.f32.gmra.mxu0 %v724
        %v726 = vpop.f32.mrf.mxu0
        %v727 = vadd.f32 %v688, %v726
        %v728 = vand.u32 %v567, 4294901760
        %v729 = vsub.f32 %v567, %v728
        %v730 = vand.u32 %v729, 4294901760
        %731 = vmatmul.f32.gmra.mxu0 %v730
        %v732 = vpop.f32.mrf.mxu0
        %v733 = vadd.f32 %v693, %v732
        %v734 = vand.u32 %v570, 4294901760
        %v735 = vsub.f32 %v570, %v734
        %v736 = vand.u32 %v735, 4294901760
        %737 = vmatmul.f32.gmra.mxu0 %v736
        %v738 = vpop.f32.mrf.mxu0
        %v739 = vadd.f32 %v698, %v738
        %v740 = vand.u32 %v573, 4294901760
        %v741 = vsub.f32 %v573, %v740
        %v742 = vand.u32 %v741, 4294901760
        %743 = vmatmul.f32.gmra.mxu0 %v742
        %v744 = vpop.f32.mrf.mxu0
        %v745 = vadd.f32 %v703, %v744
        %746 = vdwg.mxu0
        %747 = vmatpush.msra.mxu0 0.0
        %748 = vmatpush.msra.mxu0 0.0
        %749 = vmatpush.msra.mxu0 0.0
        %750 = vmatpush.msra.mxu0 0.0
        %751 = vmatpush.msra.mxu0 0.0
        %752 = vmatpush.msra.mxu0 0.0
        %753 = vmatpush.msra.mxu0 0.0
        %754 = vmatpush.msra.mxu0 0.0
        %755 = vmatpush.msra.mxu0 0.0
        %756 = vmatpush.msra.mxu0 0.0
        %757 = vmatpush.msra.mxu0 0.0
        %758 = vmatpush.msra.mxu0 0.0
        %759 = vmatpush.msra.mxu0 0.0
        %760 = vmatpush.msra.mxu0 0.0
        %761 = vmatpush.msra.mxu0 0.0
        %v762 = vand.u32 %v576, 4294901760
        %v763 = vsub.f32 %v576, %v762
        %v764 = vand.u32 %v763, 4294901760
        %765 = vmatpush.msra.mxu0 %v764
        %v766 = vand.u32 %v564, 4294901760
        %767 = vmatmul.f32.gmra.mxu0 %v766
        %v768 = vpop.f32.mrf.mxu0
        %v769 = vadd.f32 %v727, %v768
        %v770 = vand.u32 %v567, 4294901760
        %771 = vmatmul.f32.gmra.mxu0 %v770
        %v772 = vpop.f32.mrf.mxu0
        %v773 = vadd.f32 %v733, %v772
        %v774 = vand.u32 %v570, 4294901760
        %775 = vmatmul.f32.gmra.mxu0 %v774
        %v776 = vpop.f32.mrf.mxu0
        %v777 = vadd.f32 %v739, %v776
        %v778 = vand.u32 %v573, 4294901760
        %779 = vmatmul.f32.gmra.mxu0 %v778
        %v780 = vpop.f32.mrf.mxu0
        %v781 = vadd.f32 %v745, %v780
        %782 = vdwg.mxu0
        %783 = vmatpush.msra.mxu0 0.0
        %784 = vmatpush.msra.mxu0 0.0
        %785 = vmatpush.msra.mxu0 0.0
        %786 = vmatpush.msra.mxu0 0.0
        %787 = vmatpush.msra.mxu0 0.0
        %788 = vmatpush.msra.mxu0 0.0
        %789 = vmatpush.msra.mxu0 0.0
        %790 = vmatpush.msra.mxu0 0.0
        %791 = vmatpush.msra.mxu0 0.0
        %792 = vmatpush.msra.mxu0 0.0
        %793 = vmatpush.msra.mxu0 0.0
        %794 = vmatpush.msra.mxu0 0.0
        %795 = vmatpush.msra.mxu0 0.0
        %796 = vmatpush.msra.mxu0 0.0
        %797 = vmatpush.msra.mxu0 0.0
        %v798 = vand.u32 %v576, 4294901760
        %799 = vmatpush.msra.mxu0 %v798
        %v800 = vand.u32 %v564, 4294901760
        %801 = vmatmul.f32.gmra.mxu0 %v800
        %v802 = vpop.f32.mrf.mxu0
        %v803 = vadd.f32 %v769, %v802
        %v804 = vand.u32 %v567, 4294901760
        %805 = vmatmul.f32.gmra.mxu0 %v804
        %v806 = vpop.f32.mrf.mxu0
        %v807 = vadd.f32 %v773, %v806
        %v808 = vand.u32 %v570, 4294901760
        %809 = vmatmul.f32.gmra.mxu0 %v808
        %v810 = vpop.f32.mrf.mxu0
        %v811 = vadd.f32 %v777, %v810
        %v812 = vand.u32 %v573, 4294901760
        %813 = vmatmul.f32.gmra.mxu0 %v812
        %v814 = vpop.f32.mrf.mxu0
        %v815 = vadd.f32 %v781, %v814
        %816 = vdwg.mxu0
        %vm817 = vcmask 130048
        %v818 = vsel %vm817, %v803, 0.0
        %819 = vadd.xlane.f32.xlu0 %v818
        %v820 = vpop.xlane.xlu0 %819
        %v821 = vsel %vm817, %v807, 0.0
        %822 = vadd.xlane.f32.xlu0 %v821
        %v823 = vpop.xlane.xlu0 %822
        %v824 = vsel %vm817, %v811, 0.0
        %825 = vadd.xlane.f32.xlu0 %v824
        %v826 = vpop.xlane.xlu0 %825
        %v827 = vsel %vm817, %v815, 0.0
        %828 = vadd.xlane.f32.xlu0 %v827
        %v829 = vpop.xlane.xlu0 %828
        %v830 = vmul.f32 %v820, %v497
        %v831 = vmul.f32 %v823, %v497
        %v832 = vmul.f32 %v826, %v497
        %v833 = vmul.f32 %v829, %v497
        %v834 = vsub.f32 %v803, %v830
        %v835 = vsub.f32 %v807, %v831
        %v836 = vsub.f32 %v811, %v832
        %v837 = vsub.f32 %v815, %v833
        %v838 = vmul.f32 %v834, %v834
        %v839 = vmul.f32 %v835, %v835
        %v840 = vmul.f32 %v836, %v836
        %v841 = vmul.f32 %v837, %v837
        %v842 = vsel %vm817, %v838, 0.0
        %843 = vadd.xlane.f32.xlu0 %v842
        %v844 = vpop.xlane.xlu0 %843
        %v845 = vsel %vm817, %v839, 0.0
        %846 = vadd.xlane.f32.xlu0 %v845
        %v847 = vpop.xlane.xlu0 %846
        %v848 = vsel %vm817, %v840, 0.0
        %849 = vadd.xlane.f32.xlu0 %v848
        %v850 = vpop.xlane.xlu0 %849
        %v851 = vsel %vm817, %v841, 0.0
        %852 = vadd.xlane.f32.xlu0 %v851
        %v853 = vpop.xlane.xlu0 %852
        %v854 = vmul.f32 %v844, %v497
        %v855 = vmul.f32 %v847, %v497
        %v856 = vmul.f32 %v850, %v497
        %v857 = vmul.f32 %v853, %v497
        %v858 = vadd.f32 %v854, 1e-05
        %v859 = vadd.f32 %v855, 1e-05
        %v860 = vadd.f32 %v856, 1e-05
        %v861 = vadd.f32 %v857, 1e-05
        %v862 = vrsqrt.pop %v858
        %v863 = vmul.f32 %v862, %v858
        %v864 = vmul.f32 %v863, %v862
        %v865 = vmul.f32 0.5, %v864
        %v866 = vsub.f32 1.5, %v865
        %v867 = vmul.f32 %v862, %v866
        %vm868 = vweird.f32 %v858
        %vm869 = vweird.f32 %v862
        %vm870 = vmor %vm868, %vm869
        %v871 = vsel %vm870, %v862, %v867
        %v872 = vrsqrt.pop %v859
        %v873 = vmul.f32 %v872, %v859
        %v874 = vmul.f32 %v873, %v872
        %v875 = vmul.f32 0.5, %v874
        %v876 = vsub.f32 1.5, %v875
        %v877 = vmul.f32 %v872, %v876
        %vm878 = vweird.f32 %v859
        %vm879 = vweird.f32 %v872
        %vm880 = vmor %vm878, %vm879
        %v881 = vsel %vm880, %v872, %v877
        %v882 = vrsqrt.pop %v860
        %v883 = vmul.f32 %v882, %v860
        %v884 = vmul.f32 %v883, %v882
        %v885 = vmul.f32 0.5, %v884
        %v886 = vsub.f32 1.5, %v885
        %v887 = vmul.f32 %v882, %v886
        %vm888 = vweird.f32 %v860
        %vm889 = vweird.f32 %v882
        %vm890 = vmor %vm888, %vm889
        %v891 = vsel %vm890, %v882, %v887
        %v892 = vrsqrt.pop %v861
        %v893 = vmul.f32 %v892, %v861
        %v894 = vmul.f32 %v893, %v892
        %v895 = vmul.f32 0.5, %v894
        %v896 = vsub.f32 1.5, %v895
        %v897 = vmul.f32 %v892, %v896
        %vm898 = vweird.f32 %v861
        %vm899 = vweird.f32 %v892
        %vm900 = vmor %vm898, %vm899
        %v901 = vsel %vm900, %v892, %v897
        %v902 = vmul.f32 %v539, %v871
        %v903 = vmul.f32 %v540, %v881
        %v904 = vmul.f32 %v541, %v891
        %v905 = vmul.f32 %v542, %v901
        %907 = vset.pattern.permute.xlu0 3
        %908 = vperm.xlu0 %907, %v902
        %v909 = vpop.permute.xlu0 %908
        %912 = vset.pattern.permute.xlu0 3
        %913 = vperm.xlu0 %912, %v903
        %v914 = vpop.permute.xlu0 %913
        %917 = vset.pattern.permute.xlu0 3
        %918 = vperm.xlu0 %917, %v904
        %v919 = vpop.permute.xlu0 %918
        %922 = vset.pattern.permute.xlu0 3
        %923 = vperm.xlu0 %922, %v905
        %v924 = vpop.permute.xlu0 %923
        %v926 = vmul.f32 %v803, %v909
        %v927 = vmul.f32 %v807, %v914
        %v928 = vmul.f32 %v811, %v919
        %v929 = vmul.f32 %v815, %v924
        %v930 = vmul.f32 %v830, %v902
        %v931 = vmul.f32 %v831, %v903
        %v932 = vmul.f32 %v832, %v904
        %v933 = vmul.f32 %v833, %v905
        %938 = vrot.lane.b32.xlu0 %v930, 1
        %v939 = vpop.permute.xlu0 %938
        %940 = vrot.lane.b32.xlu0 %v931, 1
        %v941 = vpop.permute.xlu0 %940
        %942 = vrot.lane.b32.xlu0 %v932, 1
        %v943 = vpop.permute.xlu0 %942
        %944 = vrot.lane.b32.xlu0 %v933, 1
        %v945 = vpop.permute.xlu0 %944
        %v950 = vsub.f32 %v539, %v939
        %v951 = vsub.f32 %v540, %v941
        %v952 = vsub.f32 %v541, %v943
        %v953 = vsub.f32 %v542, %v945
        %955 = vset.pattern.permute.xlu0 4
        %956 = vperm.xlu0 %955, %v950
        %v957 = vpop.permute.xlu0 %956
        %960 = vset.pattern.permute.xlu0 4
        %961 = vperm.xlu0 %960, %v951
        %v962 = vpop.permute.xlu0 %961
        %965 = vset.pattern.permute.xlu0 4
        %966 = vperm.xlu0 %965, %v952
        %v967 = vpop.permute.xlu0 %966
        %970 = vset.pattern.permute.xlu0 4
        %971 = vperm.xlu0 %970, %v953
        %v972 = vpop.permute.xlu0 %971
        %v974 = vadd.f32 %v926, %v957
        %v975 = vadd.f32 %v927, %v962
        %v976 = vadd.f32 %v928, %v967
        %v977 = vadd.f32 %v929, %v972
        %v978 = vmax.f32 %v974, 0.0
        %v979 = vmax.f32 %v975, 0.0
        %v980 = vmax.f32 %v976, 0.0
        %v981 = vmax.f32 %v977, 0.0
        %982 = vset.pattern.permute.xlu0 5
        %983 = vperm.xlu0 %982, %v539
        %v984 = vpop.permute.xlu0 %983
        %986 = vset.pattern.permute.xlu0 5
        %987 = vperm.xlu0 %986, %v540
        %v988 = vpop.permute.xlu0 %987
        %990 = vset.pattern.permute.xlu0 5
        %991 = vperm.xlu0 %990, %v541
        %v992 = vpop.permute.xlu0 %991
        %994 = vset.pattern.permute.xlu0 5
        %995 = vperm.xlu0 %994, %v542
        %v996 = vpop.permute.xlu0 %995
        %998 = vrot.lane.b32.xlu0 %v535, 124
        %v999 = vpop.permute.xlu0 %998
        %1000 = vrot.lane.b32.xlu0 %v536, 124
        %v1001 = vpop.permute.xlu0 %1000
        %1002 = vrot.lane.b32.xlu0 %v537, 124
        %v1003 = vpop.permute.xlu0 %1002
        %1004 = vrot.lane.b32.xlu0 %v538, 124
        %v1005 = vpop.permute.xlu0 %1004
        %vm1006 = vcmask 261120
        %v1007 = vsel %vm1006, %v999, 0
        %v1009 = vsel %vm1006, %v1001, 0
        %v1011 = vsel %vm1006, %v1003, 0
        %v1013 = vsel %vm1006, %v1005, 0
        %1015 = vmatpush.msra.mxu0 0.0
        %1016 = vmatpush.msra.mxu0 0.0
        %1017 = vmatpush.msra.mxu0 0.0
        %1018 = vmatpush.msra.mxu0 0.0
        %1019 = vmatpush.msra.mxu0 0.0
        %1020 = vmatpush.msra.mxu0 0.0
        %1021 = vmatpush.msra.mxu0 0.0
        %1022 = vmatpush.msra.mxu0 0.0
        %1023 = vmatpush.msra.mxu0 0.0
        %1024 = vmatpush.msra.mxu0 0.0
        %1025 = vmatpush.msra.mxu0 0.0
        %1026 = vmatpush.msra.mxu0 0.0
        %v1027 = vand.u32 %v981, 4294901760
        %1028 = vmatpush.msra.mxu0 %v1027
        %v1029 = vand.u32 %v980, 4294901760
        %1030 = vmatpush.msra.mxu0 %v1029
        %v1031 = vand.u32 %v979, 4294901760
        %1032 = vmatpush.msra.mxu0 %v1031
        %v1033 = vand.u32 %v978, 4294901760
        %1034 = vmatpush.msra.mxu0 %v1033
        %v1035 = vand.u32 %v1007, 4294901760
        %v1036 = vsub.f32 %v1007, %v1035
        %v1037 = vand.u32 %v1036, 4294901760
        %v1038 = vsub.f32 %v1036, %v1037
        %v1039 = vand.u32 %v1038, 4294901760
        %1040 = vmatmul.f32.gmra.mxu0 %v1039
        %v1041 = vpop.f32.mrf.mxu0
        %v1042 = vadd.f32 %v984, %v1041
        %v1043 = vand.u32 %v1009, 4294901760
        %v1044 = vsub.f32 %v1009, %v1043
        %v1045 = vand.u32 %v1044, 4294901760
        %v1046 = vsub.f32 %v1044, %v1045
        %v1047 = vand.u32 %v1046, 4294901760
        %1048 = vmatmul.f32.gmra.mxu0 %v1047
        %v1049 = vpop.f32.mrf.mxu0
        %v1050 = vadd.f32 %v988, %v1049
        %v1051 = vand.u32 %v1011, 4294901760
        %v1052 = vsub.f32 %v1011, %v1051
        %v1053 = vand.u32 %v1052, 4294901760
        %v1054 = vsub.f32 %v1052, %v1053
        %v1055 = vand.u32 %v1054, 4294901760
        %1056 = vmatmul.f32.gmra.mxu0 %v1055
        %v1057 = vpop.f32.mrf.mxu0
        %v1058 = vadd.f32 %v992, %v1057
        %v1059 = vand.u32 %v1013, 4294901760
        %v1060 = vsub.f32 %v1013, %v1059
        %v1061 = vand.u32 %v1060, 4294901760
        %v1062 = vsub.f32 %v1060, %v1061
        %v1063 = vand.u32 %v1062, 4294901760
        %1064 = vmatmul.f32.gmra.mxu0 %v1063
        %v1065 = vpop.f32.mrf.mxu0
        %v1066 = vadd.f32 %v996, %v1065
        %1067 = vdwg.mxu0
        %1068 = vmatpush.msra.mxu0 0.0
        %1069 = vmatpush.msra.mxu0 0.0
        %1070 = vmatpush.msra.mxu0 0.0
        %1071 = vmatpush.msra.mxu0 0.0
        %1072 = vmatpush.msra.mxu0 0.0
        %1073 = vmatpush.msra.mxu0 0.0
        %1074 = vmatpush.msra.mxu0 0.0
        %1075 = vmatpush.msra.mxu0 0.0
        %1076 = vmatpush.msra.mxu0 0.0
        %1077 = vmatpush.msra.mxu0 0.0
        %1078 = vmatpush.msra.mxu0 0.0
        %1079 = vmatpush.msra.mxu0 0.0
        %v1080 = vand.u32 %v981, 4294901760
        %v1081 = vsub.f32 %v981, %v1080
        %v1082 = vand.u32 %v1081, 4294901760
        %v1083 = vsub.f32 %v1081, %v1082
        %v1084 = vand.u32 %v1083, 4294901760
        %1085 = vmatpush.msra.mxu0 %v1084
        %v1086 = vand.u32 %v980, 4294901760
        %v1087 = vsub.f32 %v980, %v1086
        %v1088 = vand.u32 %v1087, 4294901760
        %v1089 = vsub.f32 %v1087, %v1088
        %v1090 = vand.u32 %v1089, 4294901760
        %1091 = vmatpush.msra.mxu0 %v1090
        %v1092 = vand.u32 %v979, 4294901760
        %v1093 = vsub.f32 %v979, %v1092
        %v1094 = vand.u32 %v1093, 4294901760
        %v1095 = vsub.f32 %v1093, %v1094
        %v1096 = vand.u32 %v1095, 4294901760
        %1097 = vmatpush.msra.mxu0 %v1096
        %v1098 = vand.u32 %v978, 4294901760
        %v1099 = vsub.f32 %v978, %v1098
        %v1100 = vand.u32 %v1099, 4294901760
        %v1101 = vsub.f32 %v1099, %v1100
        %v1102 = vand.u32 %v1101, 4294901760
        %1103 = vmatpush.msra.mxu0 %v1102
        %v1104 = vand.u32 %v1007, 4294901760
        %1105 = vmatmul.f32.gmra.mxu0 %v1104
        %v1106 = vpop.f32.mrf.mxu0
        %v1107 = vadd.f32 %v1042, %v1106
        %v1108 = vand.u32 %v1009, 4294901760
        %1109 = vmatmul.f32.gmra.mxu0 %v1108
        %v1110 = vpop.f32.mrf.mxu0
        %v1111 = vadd.f32 %v1050, %v1110
        %v1112 = vand.u32 %v1011, 4294901760
        %1113 = vmatmul.f32.gmra.mxu0 %v1112
        %v1114 = vpop.f32.mrf.mxu0
        %v1115 = vadd.f32 %v1058, %v1114
        %v1116 = vand.u32 %v1013, 4294901760
        %1117 = vmatmul.f32.gmra.mxu0 %v1116
        %v1118 = vpop.f32.mrf.mxu0
        %v1119 = vadd.f32 %v1066, %v1118
        %1120 = vdwg.mxu0
        %1121 = vmatpush.msra.mxu0 0.0
        %1122 = vmatpush.msra.mxu0 0.0
        %1123 = vmatpush.msra.mxu0 0.0
        %1124 = vmatpush.msra.mxu0 0.0
        %1125 = vmatpush.msra.mxu0 0.0
        %1126 = vmatpush.msra.mxu0 0.0
        %1127 = vmatpush.msra.mxu0 0.0
        %1128 = vmatpush.msra.mxu0 0.0
        %1129 = vmatpush.msra.mxu0 0.0
        %1130 = vmatpush.msra.mxu0 0.0
        %1131 = vmatpush.msra.mxu0 0.0
        %1132 = vmatpush.msra.mxu0 0.0
        %v1133 = vand.u32 %v981, 4294901760
        %v1134 = vsub.f32 %v981, %v1133
        %1135 = vmatpush.msra.mxu0 %v1134
        %v1136 = vand.u32 %v980, 4294901760
        %v1137 = vsub.f32 %v980, %v1136
        %1138 = vmatpush.msra.mxu0 %v1137
        %v1139 = vand.u32 %v979, 4294901760
        %v1140 = vsub.f32 %v979, %v1139
        %1141 = vmatpush.msra.mxu0 %v1140
        %v1142 = vand.u32 %v978, 4294901760
        %v1143 = vsub.f32 %v978, %v1142
        %1144 = vmatpush.msra.mxu0 %v1143
        %v1145 = vand.u32 %v1007, 4294901760
        %v1146 = vsub.f32 %v1007, %v1145
        %1147 = vmatmul.f32.gmra.mxu0 %v1146
        %v1148 = vpop.f32.mrf.mxu0
        %v1149 = vadd.f32 %v1107, %v1148
        %v1150 = vand.u32 %v1009, 4294901760
        %v1151 = vsub.f32 %v1009, %v1150
        %1152 = vmatmul.f32.gmra.mxu0 %v1151
        %v1153 = vpop.f32.mrf.mxu0
        %v1154 = vadd.f32 %v1111, %v1153
        %v1155 = vand.u32 %v1011, 4294901760
        %v1156 = vsub.f32 %v1011, %v1155
        %1157 = vmatmul.f32.gmra.mxu0 %v1156
        %v1158 = vpop.f32.mrf.mxu0
        %v1159 = vadd.f32 %v1115, %v1158
        %v1160 = vand.u32 %v1013, 4294901760
        %v1161 = vsub.f32 %v1013, %v1160
        %1162 = vmatmul.f32.gmra.mxu0 %v1161
        %v1163 = vpop.f32.mrf.mxu0
        %v1164 = vadd.f32 %v1119, %v1163
        %1165 = vdwg.mxu0
        %1166 = vmatpush.msra.mxu0 0.0
        %1167 = vmatpush.msra.mxu0 0.0
        %1168 = vmatpush.msra.mxu0 0.0
        %1169 = vmatpush.msra.mxu0 0.0
        %1170 = vmatpush.msra.mxu0 0.0
        %1171 = vmatpush.msra.mxu0 0.0
        %1172 = vmatpush.msra.mxu0 0.0
        %1173 = vmatpush.msra.mxu0 0.0
        %1174 = vmatpush.msra.mxu0 0.0
        %1175 = vmatpush.msra.mxu0 0.0
        %1176 = vmatpush.msra.mxu0 0.0
        %1177 = vmatpush.msra.mxu0 0.0
        %v1178 = vand.u32 %v981, 4294901760
        %1179 = vmatpush.msra.mxu0 %v1178
        %v1180 = vand.u32 %v980, 4294901760
        %1181 = vmatpush.msra.mxu0 %v1180
        %v1182 = vand.u32 %v979, 4294901760
        %1183 = vmatpush.msra.mxu0 %v1182
        %v1184 = vand.u32 %v978, 4294901760
        %1185 = vmatpush.msra.mxu0 %v1184
        %v1186 = vand.u32 %v1007, 4294901760
        %v1187 = vsub.f32 %v1007, %v1186
        %v1188 = vand.u32 %v1187, 4294901760
        %1189 = vmatmul.f32.gmra.mxu0 %v1188
        %v1190 = vpop.f32.mrf.mxu0
        %v1191 = vadd.f32 %v1149, %v1190
        %v1192 = vand.u32 %v1009, 4294901760
        %v1193 = vsub.f32 %v1009, %v1192
        %v1194 = vand.u32 %v1193, 4294901760
        %1195 = vmatmul.f32.gmra.mxu0 %v1194
        %v1196 = vpop.f32.mrf.mxu0
        %v1197 = vadd.f32 %v1154, %v1196
        %v1198 = vand.u32 %v1011, 4294901760
        %v1199 = vsub.f32 %v1011, %v1198
        %v1200 = vand.u32 %v1199, 4294901760
        %1201 = vmatmul.f32.gmra.mxu0 %v1200
        %v1202 = vpop.f32.mrf.mxu0
        %v1203 = vadd.f32 %v1159, %v1202
        %v1204 = vand.u32 %v1013, 4294901760
        %v1205 = vsub.f32 %v1013, %v1204
        %v1206 = vand.u32 %v1205, 4294901760
        %1207 = vmatmul.f32.gmra.mxu0 %v1206
        %v1208 = vpop.f32.mrf.mxu0
        %v1209 = vadd.f32 %v1164, %v1208
        %1210 = vdwg.mxu0
        %1211 = vmatpush.msra.mxu0 0.0
        %1212 = vmatpush.msra.mxu0 0.0
        %1213 = vmatpush.msra.mxu0 0.0
        %1214 = vmatpush.msra.mxu0 0.0
        %1215 = vmatpush.msra.mxu0 0.0
        %1216 = vmatpush.msra.mxu0 0.0
        %1217 = vmatpush.msra.mxu0 0.0
        %1218 = vmatpush.msra.mxu0 0.0
        %1219 = vmatpush.msra.mxu0 0.0
        %1220 = vmatpush.msra.mxu0 0.0
        %1221 = vmatpush.msra.mxu0 0.0
        %1222 = vmatpush.msra.mxu0 0.0
        %v1223 = vand.u32 %v981, 4294901760
        %v1224 = vsub.f32 %v981, %v1223
        %v1225 = vand.u32 %v1224, 4294901760
        %1226 = vmatpush.msra.mxu0 %v1225
        %v1227 = vand.u32 %v980, 4294901760
        %v1228 = vsub.f32 %v980, %v1227
        %v1229 = vand.u32 %v1228, 4294901760
        %1230 = vmatpush.msra.mxu0 %v1229
        %v1231 = vand.u32 %v979, 4294901760
        %v1232 = vsub.f32 %v979, %v1231
        %v1233 = vand.u32 %v1232, 4294901760
        %1234 = vmatpush.msra.mxu0 %v1233
        %v1235 = vand.u32 %v978, 4294901760
        %v1236 = vsub.f32 %v978, %v1235
        %v1237 = vand.u32 %v1236, 4294901760
        %1238 = vmatpush.msra.mxu0 %v1237
        %v1239 = vand.u32 %v1007, 4294901760
        %1240 = vmatmul.f32.gmra.mxu0 %v1239
        %v1241 = vpop.f32.mrf.mxu0
        %v1242 = vadd.f32 %v1191, %v1241
        %v1243 = vand.u32 %v1009, 4294901760
        %1244 = vmatmul.f32.gmra.mxu0 %v1243
        %v1245 = vpop.f32.mrf.mxu0
        %v1246 = vadd.f32 %v1197, %v1245
        %v1247 = vand.u32 %v1011, 4294901760
        %1248 = vmatmul.f32.gmra.mxu0 %v1247
        %v1249 = vpop.f32.mrf.mxu0
        %v1250 = vadd.f32 %v1203, %v1249
        %v1251 = vand.u32 %v1013, 4294901760
        %1252 = vmatmul.f32.gmra.mxu0 %v1251
        %v1253 = vpop.f32.mrf.mxu0
        %v1254 = vadd.f32 %v1209, %v1253
        %1255 = vdwg.mxu0
        %1256 = vmatpush.msra.mxu0 0.0
        %1257 = vmatpush.msra.mxu0 0.0
        %1258 = vmatpush.msra.mxu0 0.0
        %1259 = vmatpush.msra.mxu0 0.0
        %1260 = vmatpush.msra.mxu0 0.0
        %1261 = vmatpush.msra.mxu0 0.0
        %1262 = vmatpush.msra.mxu0 0.0
        %1263 = vmatpush.msra.mxu0 0.0
        %1264 = vmatpush.msra.mxu0 0.0
        %1265 = vmatpush.msra.mxu0 0.0
        %1266 = vmatpush.msra.mxu0 0.0
        %1267 = vmatpush.msra.mxu0 0.0
        %v1268 = vand.u32 %v981, 4294901760
        %1269 = vmatpush.msra.mxu0 %v1268
        %v1270 = vand.u32 %v980, 4294901760
        %1271 = vmatpush.msra.mxu0 %v1270
        %v1272 = vand.u32 %v979, 4294901760
        %1273 = vmatpush.msra.mxu0 %v1272
        %v1274 = vand.u32 %v978, 4294901760
        %1275 = vmatpush.msra.mxu0 %v1274
        %v1276 = vand.u32 %v1007, 4294901760
        %1277 = vmatmul.f32.gmra.mxu0 %v1276
        %v1278 = vpop.f32.mrf.mxu0
        %v1279 = vadd.f32 %v1242, %v1278
        %v1280 = vand.u32 %v1009, 4294901760
        %1281 = vmatmul.f32.gmra.mxu0 %v1280
        %v1282 = vpop.f32.mrf.mxu0
        %v1283 = vadd.f32 %v1246, %v1282
        %v1284 = vand.u32 %v1011, 4294901760
        %1285 = vmatmul.f32.gmra.mxu0 %v1284
        %v1286 = vpop.f32.mrf.mxu0
        %v1287 = vadd.f32 %v1250, %v1286
        %v1288 = vand.u32 %v1013, 4294901760
        %1289 = vmatmul.f32.gmra.mxu0 %v1288
        %v1290 = vpop.f32.mrf.mxu0
        %v1291 = vadd.f32 %v1254, %v1290
        %1292 = vdwg.mxu0
        %v1293 = vsel %vm817, %v1279, 0.0
        %1294 = vadd.xlane.f32.xlu0 %v1293
        %v1295 = vpop.xlane.xlu0 %1294
        %v1296 = vsel %vm817, %v1283, 0.0
        %1297 = vadd.xlane.f32.xlu0 %v1296
        %v1298 = vpop.xlane.xlu0 %1297
        %v1299 = vsel %vm817, %v1287, 0.0
        %1300 = vadd.xlane.f32.xlu0 %v1299
        %v1301 = vpop.xlane.xlu0 %1300
        %v1302 = vsel %vm817, %v1291, 0.0
        %1303 = vadd.xlane.f32.xlu0 %v1302
        %v1304 = vpop.xlane.xlu0 %1303
        %v1305 = vmul.f32 %v1295, %v497
        %v1306 = vmul.f32 %v1298, %v497
        %v1307 = vmul.f32 %v1301, %v497
        %v1308 = vmul.f32 %v1304, %v497
        %v1309 = vsub.f32 %v1279, %v1305
        %v1310 = vsub.f32 %v1283, %v1306
        %v1311 = vsub.f32 %v1287, %v1307
        %v1312 = vsub.f32 %v1291, %v1308
        %v1313 = vmul.f32 %v1309, %v1309
        %v1314 = vmul.f32 %v1310, %v1310
        %v1315 = vmul.f32 %v1311, %v1311
        %v1316 = vmul.f32 %v1312, %v1312
        %v1317 = vsel %vm817, %v1313, 0.0
        %1318 = vadd.xlane.f32.xlu0 %v1317
        %v1319 = vpop.xlane.xlu0 %1318
        %v1320 = vsel %vm817, %v1314, 0.0
        %1321 = vadd.xlane.f32.xlu0 %v1320
        %v1322 = vpop.xlane.xlu0 %1321
        %v1323 = vsel %vm817, %v1315, 0.0
        %1324 = vadd.xlane.f32.xlu0 %v1323
        %v1325 = vpop.xlane.xlu0 %1324
        %v1326 = vsel %vm817, %v1316, 0.0
        %1327 = vadd.xlane.f32.xlu0 %v1326
        %v1328 = vpop.xlane.xlu0 %1327
        %v1329 = vmul.f32 %v1319, %v497
        %v1330 = vmul.f32 %v1322, %v497
        %v1331 = vmul.f32 %v1325, %v497
        %v1332 = vmul.f32 %v1328, %v497
        %v1333 = vadd.f32 %v1329, 1e-05
        %v1334 = vadd.f32 %v1330, 1e-05
        %v1335 = vadd.f32 %v1331, 1e-05
        %v1336 = vadd.f32 %v1332, 1e-05
        %v1337 = vrsqrt.pop %v1333
        %v1338 = vmul.f32 %v1337, %v1333
        %v1339 = vmul.f32 %v1338, %v1337
        %v1340 = vmul.f32 0.5, %v1339
        %v1341 = vsub.f32 1.5, %v1340
        %v1342 = vmul.f32 %v1337, %v1341
        %vm1343 = vweird.f32 %v1333
        %vm1344 = vweird.f32 %v1337
        %vm1345 = vmor %vm1343, %vm1344
        %v1346 = vsel %vm1345, %v1337, %v1342
        %v1347 = vrsqrt.pop %v1334
        %v1348 = vmul.f32 %v1347, %v1334
        %v1349 = vmul.f32 %v1348, %v1347
        %v1350 = vmul.f32 0.5, %v1349
        %v1351 = vsub.f32 1.5, %v1350
        %v1352 = vmul.f32 %v1347, %v1351
        %vm1353 = vweird.f32 %v1334
        %vm1354 = vweird.f32 %v1347
        %vm1355 = vmor %vm1353, %vm1354
        %v1356 = vsel %vm1355, %v1347, %v1352
        %v1357 = vrsqrt.pop %v1335
        %v1358 = vmul.f32 %v1357, %v1335
        %v1359 = vmul.f32 %v1358, %v1357
        %v1360 = vmul.f32 0.5, %v1359
        %v1361 = vsub.f32 1.5, %v1360
        %v1362 = vmul.f32 %v1357, %v1361
        %vm1363 = vweird.f32 %v1335
        %vm1364 = vweird.f32 %v1357
        %vm1365 = vmor %vm1363, %vm1364
        %v1366 = vsel %vm1365, %v1357, %v1362
        %v1367 = vrsqrt.pop %v1336
        %v1368 = vmul.f32 %v1367, %v1336
        %v1369 = vmul.f32 %v1368, %v1367
        %v1370 = vmul.f32 0.5, %v1369
        %v1371 = vsub.f32 1.5, %v1370
        %v1372 = vmul.f32 %v1367, %v1371
        %vm1373 = vweird.f32 %v1336
        %vm1374 = vweird.f32 %v1367
        %vm1375 = vmor %vm1373, %vm1374
        %v1376 = vsel %vm1375, %v1367, %v1372
        %v1377 = vmul.f32 %v539, %v1346
        %v1378 = vmul.f32 %v540, %v1356
        %v1379 = vmul.f32 %v541, %v1366
        %v1380 = vmul.f32 %v542, %v1376
        %1382 = vset.pattern.permute.xlu0 6
        %1383 = vperm.xlu0 %1382, %v1377
        %v1384 = vpop.permute.xlu0 %1383
        %1387 = vset.pattern.permute.xlu0 6
        %1388 = vperm.xlu0 %1387, %v1378
        %v1389 = vpop.permute.xlu0 %1388
        %1392 = vset.pattern.permute.xlu0 6
        %1393 = vperm.xlu0 %1392, %v1379
        %v1394 = vpop.permute.xlu0 %1393
        %1397 = vset.pattern.permute.xlu0 6
        %1398 = vperm.xlu0 %1397, %v1380
        %v1399 = vpop.permute.xlu0 %1398
        %v1401 = vmul.f32 %v1279, %v1384
        %v1402 = vmul.f32 %v1283, %v1389
        %v1403 = vmul.f32 %v1287, %v1394
        %v1404 = vmul.f32 %v1291, %v1399
        %v1405 = vmul.f32 %v1305, %v1377
        %v1406 = vmul.f32 %v1306, %v1378
        %v1407 = vmul.f32 %v1307, %v1379
        %v1408 = vmul.f32 %v1308, %v1380
        %1413 = vrot.lane.b32.xlu0 %v1405, 1
        %v1414 = vpop.permute.xlu0 %1413
        %1415 = vrot.lane.b32.xlu0 %v1406, 1
        %v1416 = vpop.permute.xlu0 %1415
        %1417 = vrot.lane.b32.xlu0 %v1407, 1
        %v1418 = vpop.permute.xlu0 %1417
        %1419 = vrot.lane.b32.xlu0 %v1408, 1
        %v1420 = vpop.permute.xlu0 %1419
        %v1425 = vsub.f32 %v539, %v1414
        %v1426 = vsub.f32 %v540, %v1416
        %v1427 = vsub.f32 %v541, %v1418
        %v1428 = vsub.f32 %v542, %v1420
        %1430 = vset.pattern.permute.xlu0 7
        %1431 = vperm.xlu0 %1430, %v1425
        %v1432 = vpop.permute.xlu0 %1431
        %1435 = vset.pattern.permute.xlu0 7
        %1436 = vperm.xlu0 %1435, %v1426
        %v1437 = vpop.permute.xlu0 %1436
        %1440 = vset.pattern.permute.xlu0 7
        %1441 = vperm.xlu0 %1440, %v1427
        %v1442 = vpop.permute.xlu0 %1441
        %1445 = vset.pattern.permute.xlu0 7
        %1446 = vperm.xlu0 %1445, %v1428
        %v1447 = vpop.permute.xlu0 %1446
        %v1449 = vadd.f32 %v1401, %v1432
        %v1450 = vadd.f32 %v1402, %v1437
        %v1451 = vadd.f32 %v1403, %v1442
        %v1452 = vadd.f32 %v1404, %v1447
        %v1453 = vmax.f32 %v1449, 0.0
        %v1454 = vmax.f32 %v1450, 0.0
        %v1455 = vmax.f32 %v1451, 0.0
        %v1456 = vmax.f32 %v1452, 0.0
        %1457 = vrot.lane.b32.xlu0 %v535, 92
        %v1458 = vpop.permute.xlu0 %1457
        %1459 = vrot.lane.b32.xlu0 %v536, 92
        %v1460 = vpop.permute.xlu0 %1459
        %1461 = vrot.lane.b32.xlu0 %v537, 92
        %v1462 = vpop.permute.xlu0 %1461
        %1463 = vrot.lane.b32.xlu0 %v538, 92
        %v1464 = vpop.permute.xlu0 %1463
        %v1465 = vsel %vm1006, %v1458, 0
        %v1467 = vsel %vm1006, %v1460, 0
        %v1469 = vsel %vm1006, %v1462, 0
        %v1471 = vsel %vm1006, %v1464, 0
        %1473 = vmatpush.msra.mxu0 0.0
        %1474 = vmatpush.msra.mxu0 0.0
        %1475 = vmatpush.msra.mxu0 0.0
        %1476 = vmatpush.msra.mxu0 0.0
        %1477 = vmatpush.msra.mxu0 0.0
        %1478 = vmatpush.msra.mxu0 0.0
        %1479 = vmatpush.msra.mxu0 0.0
        %1480 = vmatpush.msra.mxu0 0.0
        %1481 = vmatpush.msra.mxu0 0.0
        %1482 = vmatpush.msra.mxu0 0.0
        %1483 = vmatpush.msra.mxu0 0.0
        %1484 = vmatpush.msra.mxu0 0.0
        %v1485 = vand.u32 %v1456, 4294901760
        %1486 = vmatpush.msra.mxu0 %v1485
        %v1487 = vand.u32 %v1455, 4294901760
        %1488 = vmatpush.msra.mxu0 %v1487
        %v1489 = vand.u32 %v1454, 4294901760
        %1490 = vmatpush.msra.mxu0 %v1489
        %v1491 = vand.u32 %v1453, 4294901760
        %1492 = vmatpush.msra.mxu0 %v1491
        %v1493 = vand.u32 %v1465, 4294901760
        %v1494 = vsub.f32 %v1465, %v1493
        %v1495 = vand.u32 %v1494, 4294901760
        %v1496 = vsub.f32 %v1494, %v1495
        %v1497 = vand.u32 %v1496, 4294901760
        %1498 = vmatmul.f32.gmra.mxu0 %v1497
        %v1499 = vpop.f32.mrf.mxu0
        %v1500 = vadd.f32 0.0, %v1499
        %v1501 = vand.u32 %v1467, 4294901760
        %v1502 = vsub.f32 %v1467, %v1501
        %v1503 = vand.u32 %v1502, 4294901760
        %v1504 = vsub.f32 %v1502, %v1503
        %v1505 = vand.u32 %v1504, 4294901760
        %1506 = vmatmul.f32.gmra.mxu0 %v1505
        %v1507 = vpop.f32.mrf.mxu0
        %v1508 = vand.u32 %v1469, 4294901760
        %v1509 = vsub.f32 %v1469, %v1508
        %v1510 = vand.u32 %v1509, 4294901760
        %v1511 = vsub.f32 %v1509, %v1510
        %v1512 = vand.u32 %v1511, 4294901760
        %1513 = vmatmul.f32.gmra.mxu0 %v1512
        %v1514 = vpop.f32.mrf.mxu0
        %v1515 = vand.u32 %v1471, 4294901760
        %v1516 = vsub.f32 %v1471, %v1515
        %v1517 = vand.u32 %v1516, 4294901760
        %v1518 = vsub.f32 %v1516, %v1517
        %v1519 = vand.u32 %v1518, 4294901760
        %1520 = vmatmul.f32.gmra.mxu0 %v1519
        %v1521 = vpop.f32.mrf.mxu0
        %1522 = vdwg.mxu0
        %1523 = vmatpush.msra.mxu0 0.0
        %1524 = vmatpush.msra.mxu0 0.0
        %1525 = vmatpush.msra.mxu0 0.0
        %1526 = vmatpush.msra.mxu0 0.0
        %1527 = vmatpush.msra.mxu0 0.0
        %1528 = vmatpush.msra.mxu0 0.0
        %1529 = vmatpush.msra.mxu0 0.0
        %1530 = vmatpush.msra.mxu0 0.0
        %1531 = vmatpush.msra.mxu0 0.0
        %1532 = vmatpush.msra.mxu0 0.0
        %1533 = vmatpush.msra.mxu0 0.0
        %1534 = vmatpush.msra.mxu0 0.0
        %v1535 = vand.u32 %v1456, 4294901760
        %v1536 = vsub.f32 %v1456, %v1535
        %v1537 = vand.u32 %v1536, 4294901760
        %v1538 = vsub.f32 %v1536, %v1537
        %v1539 = vand.u32 %v1538, 4294901760
        %1540 = vmatpush.msra.mxu0 %v1539
        %v1541 = vand.u32 %v1455, 4294901760
        %v1542 = vsub.f32 %v1455, %v1541
        %v1543 = vand.u32 %v1542, 4294901760
        %v1544 = vsub.f32 %v1542, %v1543
        %v1545 = vand.u32 %v1544, 4294901760
        %1546 = vmatpush.msra.mxu0 %v1545
        %v1547 = vand.u32 %v1454, 4294901760
        %v1548 = vsub.f32 %v1454, %v1547
        %v1549 = vand.u32 %v1548, 4294901760
        %v1550 = vsub.f32 %v1548, %v1549
        %v1551 = vand.u32 %v1550, 4294901760
        %1552 = vmatpush.msra.mxu0 %v1551
        %v1553 = vand.u32 %v1453, 4294901760
        %v1554 = vsub.f32 %v1453, %v1553
        %v1555 = vand.u32 %v1554, 4294901760
        %v1556 = vsub.f32 %v1554, %v1555
        %v1557 = vand.u32 %v1556, 4294901760
        %1558 = vmatpush.msra.mxu0 %v1557
        %v1559 = vand.u32 %v1465, 4294901760
        %1560 = vmatmul.f32.gmra.mxu0 %v1559
        %v1561 = vpop.f32.mrf.mxu0
        %v1562 = vadd.f32 %v1500, %v1561
        %v1563 = vand.u32 %v1467, 4294901760
        %1564 = vmatmul.f32.gmra.mxu0 %v1563
        %v1565 = vpop.f32.mrf.mxu0
        %v1566 = vand.u32 %v1469, 4294901760
        %1567 = vmatmul.f32.gmra.mxu0 %v1566
        %v1568 = vpop.f32.mrf.mxu0
        %v1569 = vand.u32 %v1471, 4294901760
        %1570 = vmatmul.f32.gmra.mxu0 %v1569
        %v1571 = vpop.f32.mrf.mxu0
        %1572 = vdwg.mxu0
        %1573 = vmatpush.msra.mxu0 0.0
        %1574 = vmatpush.msra.mxu0 0.0
        %1575 = vmatpush.msra.mxu0 0.0
        %1576 = vmatpush.msra.mxu0 0.0
        %1577 = vmatpush.msra.mxu0 0.0
        %1578 = vmatpush.msra.mxu0 0.0
        %1579 = vmatpush.msra.mxu0 0.0
        %1580 = vmatpush.msra.mxu0 0.0
        %1581 = vmatpush.msra.mxu0 0.0
        %1582 = vmatpush.msra.mxu0 0.0
        %1583 = vmatpush.msra.mxu0 0.0
        %1584 = vmatpush.msra.mxu0 0.0
        %v1585 = vand.u32 %v1456, 4294901760
        %v1586 = vsub.f32 %v1456, %v1585
        %1587 = vmatpush.msra.mxu0 %v1586
        %v1588 = vand.u32 %v1455, 4294901760
        %v1589 = vsub.f32 %v1455, %v1588
        %1590 = vmatpush.msra.mxu0 %v1589
        %v1591 = vand.u32 %v1454, 4294901760
        %v1592 = vsub.f32 %v1454, %v1591
        %1593 = vmatpush.msra.mxu0 %v1592
        %v1594 = vand.u32 %v1453, 4294901760
        %v1595 = vsub.f32 %v1453, %v1594
        %1596 = vmatpush.msra.mxu0 %v1595
        %v1597 = vand.u32 %v1465, 4294901760
        %v1598 = vsub.f32 %v1465, %v1597
        %1599 = vmatmul.f32.gmra.mxu0 %v1598
        %v1600 = vpop.f32.mrf.mxu0
        %v1601 = vadd.f32 %v1562, %v1600
        %v1602 = vand.u32 %v1467, 4294901760
        %v1603 = vsub.f32 %v1467, %v1602
        %1604 = vmatmul.f32.gmra.mxu0 %v1603
        %v1605 = vpop.f32.mrf.mxu0
        %v1606 = vand.u32 %v1469, 4294901760
        %v1607 = vsub.f32 %v1469, %v1606
        %1608 = vmatmul.f32.gmra.mxu0 %v1607
        %v1609 = vpop.f32.mrf.mxu0
        %v1610 = vand.u32 %v1471, 4294901760
        %v1611 = vsub.f32 %v1471, %v1610
        %1612 = vmatmul.f32.gmra.mxu0 %v1611
        %v1613 = vpop.f32.mrf.mxu0
        %1614 = vdwg.mxu0
        %1615 = vmatpush.msra.mxu0 0.0
        %1616 = vmatpush.msra.mxu0 0.0
        %1617 = vmatpush.msra.mxu0 0.0
        %1618 = vmatpush.msra.mxu0 0.0
        %1619 = vmatpush.msra.mxu0 0.0
        %1620 = vmatpush.msra.mxu0 0.0
        %1621 = vmatpush.msra.mxu0 0.0
        %1622 = vmatpush.msra.mxu0 0.0
        %1623 = vmatpush.msra.mxu0 0.0
        %1624 = vmatpush.msra.mxu0 0.0
        %1625 = vmatpush.msra.mxu0 0.0
        %1626 = vmatpush.msra.mxu0 0.0
        %v1627 = vand.u32 %v1456, 4294901760
        %1628 = vmatpush.msra.mxu0 %v1627
        %v1629 = vand.u32 %v1455, 4294901760
        %1630 = vmatpush.msra.mxu0 %v1629
        %v1631 = vand.u32 %v1454, 4294901760
        %1632 = vmatpush.msra.mxu0 %v1631
        %v1633 = vand.u32 %v1453, 4294901760
        %1634 = vmatpush.msra.mxu0 %v1633
        %v1635 = vand.u32 %v1465, 4294901760
        %v1636 = vsub.f32 %v1465, %v1635
        %v1637 = vand.u32 %v1636, 4294901760
        %1638 = vmatmul.f32.gmra.mxu0 %v1637
        %v1639 = vpop.f32.mrf.mxu0
        %v1640 = vadd.f32 %v1601, %v1639
        %v1641 = vand.u32 %v1467, 4294901760
        %v1642 = vsub.f32 %v1467, %v1641
        %v1643 = vand.u32 %v1642, 4294901760
        %1644 = vmatmul.f32.gmra.mxu0 %v1643
        %v1645 = vpop.f32.mrf.mxu0
        %v1646 = vand.u32 %v1469, 4294901760
        %v1647 = vsub.f32 %v1469, %v1646
        %v1648 = vand.u32 %v1647, 4294901760
        %1649 = vmatmul.f32.gmra.mxu0 %v1648
        %v1650 = vpop.f32.mrf.mxu0
        %v1651 = vand.u32 %v1471, 4294901760
        %v1652 = vsub.f32 %v1471, %v1651
        %v1653 = vand.u32 %v1652, 4294901760
        %1654 = vmatmul.f32.gmra.mxu0 %v1653
        %v1655 = vpop.f32.mrf.mxu0
        %1656 = vdwg.mxu0
        %1657 = vmatpush.msra.mxu0 0.0
        %1658 = vmatpush.msra.mxu0 0.0
        %1659 = vmatpush.msra.mxu0 0.0
        %1660 = vmatpush.msra.mxu0 0.0
        %1661 = vmatpush.msra.mxu0 0.0
        %1662 = vmatpush.msra.mxu0 0.0
        %1663 = vmatpush.msra.mxu0 0.0
        %1664 = vmatpush.msra.mxu0 0.0
        %1665 = vmatpush.msra.mxu0 0.0
        %1666 = vmatpush.msra.mxu0 0.0
        %1667 = vmatpush.msra.mxu0 0.0
        %1668 = vmatpush.msra.mxu0 0.0
        %v1669 = vand.u32 %v1456, 4294901760
        %v1670 = vsub.f32 %v1456, %v1669
        %v1671 = vand.u32 %v1670, 4294901760
        %1672 = vmatpush.msra.mxu0 %v1671
        %v1673 = vand.u32 %v1455, 4294901760
        %v1674 = vsub.f32 %v1455, %v1673
        %v1675 = vand.u32 %v1674, 4294901760
        %1676 = vmatpush.msra.mxu0 %v1675
        %v1677 = vand.u32 %v1454, 4294901760
        %v1678 = vsub.f32 %v1454, %v1677
        %v1679 = vand.u32 %v1678, 4294901760
        %1680 = vmatpush.msra.mxu0 %v1679
        %v1681 = vand.u32 %v1453, 4294901760
        %v1682 = vsub.f32 %v1453, %v1681
        %v1683 = vand.u32 %v1682, 4294901760
        %1684 = vmatpush.msra.mxu0 %v1683
        %v1685 = vand.u32 %v1465, 4294901760
        %1686 = vmatmul.f32.gmra.mxu0 %v1685
        %v1687 = vpop.f32.mrf.mxu0
        %v1688 = vadd.f32 %v1640, %v1687
        %v1689 = vand.u32 %v1467, 4294901760
        %1690 = vmatmul.f32.gmra.mxu0 %v1689
        %v1691 = vpop.f32.mrf.mxu0
        %v1692 = vand.u32 %v1469, 4294901760
        %1693 = vmatmul.f32.gmra.mxu0 %v1692
        %v1694 = vpop.f32.mrf.mxu0
        %v1695 = vand.u32 %v1471, 4294901760
        %1696 = vmatmul.f32.gmra.mxu0 %v1695
        %v1697 = vpop.f32.mrf.mxu0
        %1698 = vdwg.mxu0
        %1699 = vmatpush.msra.mxu0 0.0
        %1700 = vmatpush.msra.mxu0 0.0
        %1701 = vmatpush.msra.mxu0 0.0
        %1702 = vmatpush.msra.mxu0 0.0
        %1703 = vmatpush.msra.mxu0 0.0
        %1704 = vmatpush.msra.mxu0 0.0
        %1705 = vmatpush.msra.mxu0 0.0
        %1706 = vmatpush.msra.mxu0 0.0
        %1707 = vmatpush.msra.mxu0 0.0
        %1708 = vmatpush.msra.mxu0 0.0
        %1709 = vmatpush.msra.mxu0 0.0
        %1710 = vmatpush.msra.mxu0 0.0
        %v1711 = vand.u32 %v1456, 4294901760
        %1712 = vmatpush.msra.mxu0 %v1711
        %v1713 = vand.u32 %v1455, 4294901760
        %1714 = vmatpush.msra.mxu0 %v1713
        %v1715 = vand.u32 %v1454, 4294901760
        %1716 = vmatpush.msra.mxu0 %v1715
        %v1717 = vand.u32 %v1453, 4294901760
        %1718 = vmatpush.msra.mxu0 %v1717
        %v1719 = vand.u32 %v1465, 4294901760
        %1720 = vmatmul.f32.gmra.mxu0 %v1719
        %v1721 = vpop.f32.mrf.mxu0
        %v1722 = vadd.f32 %v1688, %v1721
        %v1723 = vand.u32 %v1467, 4294901760
        %1724 = vmatmul.f32.gmra.mxu0 %v1723
        %v1725 = vpop.f32.mrf.mxu0
        %v1726 = vand.u32 %v1469, 4294901760
        %1727 = vmatmul.f32.gmra.mxu0 %v1726
        %v1728 = vpop.f32.mrf.mxu0
        %v1729 = vand.u32 %v1471, 4294901760
        %1730 = vmatmul.f32.gmra.mxu0 %v1729
        %v1731 = vpop.f32.mrf.mxu0
        %1732 = vdwg.mxu0
        %1734 = vset.pattern.permute.xlu0 8
        %1735 = vperm.xlu0 %1734, %v486
        %v1736 = vpop.permute.xlu0 %1735
        %v1738 = vadd.f32 %v1722, %v1736
        %v1739 = vsel %vm487, %v1738, 0.0
        %1740 = vadd.xlane.f32.xlu0 %v1739
        %v1741 = vpop.xlane.xlu0 %1740
        %v1742 = vmul.f32 %v1741, %v497
        %v1743 = vsub.f32 %v1738, %v1742
        %v1744 = vmul.f32 %v1743, %v1743
        %v1745 = vsel %vm487, %v1744, 0.0
        %1746 = vadd.xlane.f32.xlu0 %v1745
        %v1747 = vpop.xlane.xlu0 %1746
        %v1748 = vmul.f32 %v1747, %v497
        %v1749 = vadd.f32 %v1748, 1e-05
        %v1750 = vrsqrt.pop %v1749
        %v1751 = vmul.f32 %v1750, %v1749
        %v1752 = vmul.f32 %v1751, %v1750
        %v1753 = vmul.f32 0.5, %v1752
        %v1754 = vsub.f32 1.5, %v1753
        %v1755 = vmul.f32 %v1750, %v1754
        %vm1756 = vweird.f32 %v1749
        %vm1757 = vweird.f32 %v1750
        %vm1758 = vmor %vm1756, %vm1757
        %v1759 = vsel %vm1758, %v1750, %v1755
        %v1760 = vmul.f32 %v486, %v1759
        %1762 = vset.pattern.permute.xlu0 9
        %1763 = vperm.xlu0 %1762, %v1760
        %v1764 = vpop.permute.xlu0 %1763
        %v1766 = vmul.f32 %v1738, %v1764
        %v1767 = vmul.f32 %v1742, %v1760
        %1769 = vrot.lane.b32.xlu0 %v1767, 1
        %v1770 = vpop.permute.xlu0 %1769
        %v1772 = vsub.f32 %v486, %v1770
        %1774 = vset.pattern.permute.xlu0 10
        %1775 = vperm.xlu0 %1774, %v1772
        %v1776 = vpop.permute.xlu0 %1775
        %v1778 = vadd.f32 %v1766, %v1776
        %s1779 = sld [smem:[#allocation5 + %s329]]
        %v1780 = vmul.f32 %v1778, %v485
        %v1781 = vsel %vm487, %v1780, 0.0
        %v1782 = vrot.slane %v1781, 4
        %v1783 = vadd.f32 %v1781, %v1782
        %v1784 = vrot.slane %v1783, 2
        %v1785 = vadd.f32 %v1783, %v1784
        %v1786 = vrot.slane %v1785, 1
        %v1787 = vadd.f32 %v1785, %v1786
        %v1788 = vstv %s1779
        %v1789 = vmul.f32 %v1788, %v1787
        %v1790 = vadd.f32 %v328, %v1789
        %s1791 = sld [smem:[#allocation6 + %s329]]
        %v1792 = vstv %s1791
        %v1793 = vmul.f32 %v1792, %v327
        %v1794 = vadd.f32 %v327, %v1793
        %v1795 = vadd.f32 %v1794, %v485
        %1796 = vst.msk [vmem:[%s295] sm:$0xf] %vm487, %v1795
        %s1797 = sadd.s32 %s329, 1
        %s1798 = scalar_lea.vmem %s300, 4
        %v1799 = vld [vmem:[%s1798] sm:$0xf]
        %v1801 = vsel %vm335, %v1799, 0
        %1803 = vmatpush.msra.mxu0 0.0
        %1804 = vmatpush.msra.mxu0 0.0
        %1805 = vmatpush.msra.mxu0 0.0
        %1806 = vmatpush.msra.mxu0 0.0
        %1807 = vmatpush.msra.mxu0 0.0
        %1808 = vmatpush.msra.mxu0 0.0
        %1809 = vmatpush.msra.mxu0 0.0
        %1810 = vmatpush.msra.mxu0 0.0
        %1811 = vmatpush.msra.mxu0 0.0
        %1812 = vmatpush.msra.mxu0 0.0
        %1813 = vmatpush.msra.mxu0 0.0
        %1814 = vmatpush.msra.mxu0 0.0
        %1815 = vmatpush.msra.mxu0 0.0
        %1816 = vmatpush.msra.mxu0 0.0
        %1817 = vmatpush.msra.mxu0 0.0
        %v1818 = vand.u32 %v1801, 4294901760
        %1819 = vmatpush.msra.mxu0 %v1818
        %v1820 = vand.u32 %v333, 4294901760
        %v1821 = vsub.f32 %v333, %v1820
        %v1822 = vand.u32 %v1821, 4294901760
        %v1823 = vsub.f32 %v1821, %v1822
        %v1824 = vand.u32 %v1823, 4294901760
        %1825 = vmatmul.f32.gmra.mxu0 %v1824
        %v1826 = vpop.f32.mrf.mxu0
        %v1827 = vadd.f32 0.0, %v1826
        %1828 = vdwg.mxu0
        %1829 = vmatpush.msra.mxu0 0.0
        %1830 = vmatpush.msra.mxu0 0.0
        %1831 = vmatpush.msra.mxu0 0.0
        %1832 = vmatpush.msra.mxu0 0.0
        %1833 = vmatpush.msra.mxu0 0.0
        %1834 = vmatpush.msra.mxu0 0.0
        %1835 = vmatpush.msra.mxu0 0.0
        %1836 = vmatpush.msra.mxu0 0.0
        %1837 = vmatpush.msra.mxu0 0.0
        %1838 = vmatpush.msra.mxu0 0.0
        %1839 = vmatpush.msra.mxu0 0.0
        %1840 = vmatpush.msra.mxu0 0.0
        %1841 = vmatpush.msra.mxu0 0.0
        %1842 = vmatpush.msra.mxu0 0.0
        %1843 = vmatpush.msra.mxu0 0.0
        %v1844 = vand.u32 %v1801, 4294901760
        %v1845 = vsub.f32 %v1801, %v1844
        %v1846 = vand.u32 %v1845, 4294901760
        %v1847 = vsub.f32 %v1845, %v1846
        %v1848 = vand.u32 %v1847, 4294901760
        %1849 = vmatpush.msra.mxu0 %v1848
        %v1850 = vand.u32 %v333, 4294901760
        %1851 = vmatmul.f32.gmra.mxu0 %v1850
        %v1852 = vpop.f32.mrf.mxu0
        %v1853 = vadd.f32 %v1827, %v1852
        %1854 = vdwg.mxu0
        %1855 = vmatpush.msra.mxu0 0.0
        %1856 = vmatpush.msra.mxu0 0.0
        %1857 = vmatpush.msra.mxu0 0.0
        %1858 = vmatpush.msra.mxu0 0.0
        %1859 = vmatpush.msra.mxu0 0.0
        %1860 = vmatpush.msra.mxu0 0.0
        %1861 = vmatpush.msra.mxu0 0.0
        %1862 = vmatpush.msra.mxu0 0.0
        %1863 = vmatpush.msra.mxu0 0.0
        %1864 = vmatpush.msra.mxu0 0.0
        %1865 = vmatpush.msra.mxu0 0.0
        %1866 = vmatpush.msra.mxu0 0.0
        %1867 = vmatpush.msra.mxu0 0.0
        %1868 = vmatpush.msra.mxu0 0.0
        %1869 = vmatpush.msra.mxu0 0.0
        %v1870 = vand.u32 %v1801, 4294901760
        %v1871 = vsub.f32 %v1801, %v1870
        %1872 = vmatpush.msra.mxu0 %v1871
        %v1873 = vand.u32 %v333, 4294901760
        %v1874 = vsub.f32 %v333, %v1873
        %1875 = vmatmul.f32.gmra.mxu0 %v1874
        %v1876 = vpop.f32.mrf.mxu0
        %v1877 = vadd.f32 %v1853, %v1876
        %1878 = vdwg.mxu0
        %1879 = vmatpush.msra.mxu0 0.0
        %1880 = vmatpush.msra.mxu0 0.0
        %1881 = vmatpush.msra.mxu0 0.0
        %1882 = vmatpush.msra.mxu0 0.0
        %1883 = vmatpush.msra.mxu0 0.0
        %1884 = vmatpush.msra.mxu0 0.0
        %1885 = vmatpush.msra.mxu0 0.0
        %1886 = vmatpush.msra.mxu0 0.0
        %1887 = vmatpush.msra.mxu0 0.0
        %1888 = vmatpush.msra.mxu0 0.0
        %1889 = vmatpush.msra.mxu0 0.0
        %1890 = vmatpush.msra.mxu0 0.0
        %1891 = vmatpush.msra.mxu0 0.0
        %1892 = vmatpush.msra.mxu0 0.0
        %1893 = vmatpush.msra.mxu0 0.0
        %v1894 = vand.u32 %v1801, 4294901760
        %1895 = vmatpush.msra.mxu0 %v1894
        %v1896 = vand.u32 %v333, 4294901760
        %v1897 = vsub.f32 %v333, %v1896
        %v1898 = vand.u32 %v1897, 4294901760
        %1899 = vmatmul.f32.gmra.mxu0 %v1898
        %v1900 = vpop.f32.mrf.mxu0
        %v1901 = vadd.f32 %v1877, %v1900
        %1902 = vdwg.mxu0
        %1903 = vmatpush.msra.mxu0 0.0
        %1904 = vmatpush.msra.mxu0 0.0
        %1905 = vmatpush.msra.mxu0 0.0
        %1906 = vmatpush.msra.mxu0 0.0
        %1907 = vmatpush.msra.mxu0 0.0
        %1908 = vmatpush.msra.mxu0 0.0
        %1909 = vmatpush.msra.mxu0 0.0
        %1910 = vmatpush.msra.mxu0 0.0
        %1911 = vmatpush.msra.mxu0 0.0
        %1912 = vmatpush.msra.mxu0 0.0
        %1913 = vmatpush.msra.mxu0 0.0
        %1914 = vmatpush.msra.mxu0 0.0
        %1915 = vmatpush.msra.mxu0 0.0
        %1916 = vmatpush.msra.mxu0 0.0
        %1917 = vmatpush.msra.mxu0 0.0
        %v1918 = vand.u32 %v1801, 4294901760
        %v1919 = vsub.f32 %v1801, %v1918
        %v1920 = vand.u32 %v1919, 4294901760
        %1921 = vmatpush.msra.mxu0 %v1920
        %v1922 = vand.u32 %v333, 4294901760
        %1923 = vmatmul.f32.gmra.mxu0 %v1922
        %v1924 = vpop.f32.mrf.mxu0
        %v1925 = vadd.f32 %v1901, %v1924
        %1926 = vdwg.mxu0
        %1927 = vmatpush.msra.mxu0 0.0
        %1928 = vmatpush.msra.mxu0 0.0
        %1929 = vmatpush.msra.mxu0 0.0
        %1930 = vmatpush.msra.mxu0 0.0
        %1931 = vmatpush.msra.mxu0 0.0
        %1932 = vmatpush.msra.mxu0 0.0
        %1933 = vmatpush.msra.mxu0 0.0
        %1934 = vmatpush.msra.mxu0 0.0
        %1935 = vmatpush.msra.mxu0 0.0
        %1936 = vmatpush.msra.mxu0 0.0
        %1937 = vmatpush.msra.mxu0 0.0
        %1938 = vmatpush.msra.mxu0 0.0
        %1939 = vmatpush.msra.mxu0 0.0
        %1940 = vmatpush.msra.mxu0 0.0
        %1941 = vmatpush.msra.mxu0 0.0
        %v1942 = vand.u32 %v1801, 4294901760
        %1943 = vmatpush.msra.mxu0 %v1942
        %v1944 = vand.u32 %v333, 4294901760
        %1945 = vmatmul.f32.gmra.mxu0 %v1944
        %v1946 = vpop.f32.mrf.mxu0
        %v1947 = vadd.f32 %v1925, %v1946
        %1948 = vdwg.mxu0
        %v1949 = vmul.f32 %v1795, %v1947
        %s1950 = scalar_lea.vmem %s314, 32
        %v1951 = vld [vmem:[%s1950] sm:$0xf]
        %v1952 = vsel %vm487, %v1795, 0.0
        %1953 = vadd.xlane.f32.xlu0 %v1952
        %v1954 = vpop.xlane.xlu0 %1953
        %v1955 = vmul.f32 %v1954, %v497
        %v1956 = vsub.f32 %v1795, %v1955
        %v1957 = vmul.f32 %v1956, %v1956
        %v1958 = vsel %vm487, %v1957, 0.0
        %1959 = vadd.xlane.f32.xlu0 %v1958
        %v1960 = vpop.xlane.xlu0 %1959
        %v1961 = vmul.f32 %v1960, %v497
        %v1962 = vadd.f32 %v1961, 1e-05
        %v1963 = vrsqrt.pop %v1962
        %v1964 = vmul.f32 %v1963, %v1962
        %v1965 = vmul.f32 %v1964, %v1963
        %v1966 = vmul.f32 0.5, %v1965
        %v1967 = vsub.f32 1.5, %v1966
        %v1968 = vmul.f32 %v1963, %v1967
        %vm1969 = vweird.f32 %v1962
        %vm1970 = vweird.f32 %v1963
        %vm1971 = vmor %vm1969, %vm1970
        %v1972 = vsel %vm1971, %v1963, %v1968
        %v1973 = vmul.f32 %v1951, %v1972
        %1975 = vset.pattern.permute.xlu0 0
        %1976 = vperm.xlu0 %1975, %v1973
        %v1977 = vpop.permute.xlu0 %1976
        %v1979 = vmul.f32 %v1795, %v1977
        %v1980 = vmul.f32 %v1955, %v1973
        %1982 = vrot.lane.b32.xlu0 %v1980, 1
        %v1983 = vpop.permute.xlu0 %1982
        %v1985 = vsub.f32 %v1951, %v1983
        %1987 = vset.pattern.permute.xlu0 1
        %1988 = vperm.xlu0 %1987, %v1985
        %v1989 = vpop.permute.xlu0 %1988
        %v1991 = vadd.f32 %v1979, %v1989
        %s1992 = scalar_lea.vmem %s307, 32
        %v1993 = vld [vmem:[%s1992] sm:$0xff]
        %v1994 = vld [vmem:[%s1992 + $0x8] sm:$0xff]
        %v1995 = vld [vmem:[%s1992 + $0x10] sm:$0xff]
        %v1996 = vld [vmem:[%s1992 + $0x18] sm:$0xff]
        %v1997 = vld [vmem:[%s1950] sm:$0xff]
        %v1998 = vld [vmem:[%s1950 + $0x8] sm:$0xff]
        %v1999 = vld [vmem:[%s1950 + $0x10] sm:$0xff]
        %v2000 = vld [vmem:[%s1950 + $0x18] sm:$0xff]
        %2002 = vset.pattern.permute.xlu0 2
        %2003 = vperm.xlu0 %2002, %v1997
        %v2004 = vpop.permute.xlu0 %2003
        %2007 = vset.pattern.permute.xlu0 2
        %2008 = vperm.xlu0 %2007, %v1998
        %v2009 = vpop.permute.xlu0 %2008
        %2012 = vset.pattern.permute.xlu0 2
        %2013 = vperm.xlu0 %2012, %v1999
        %v2014 = vpop.permute.xlu0 %2013
        %2017 = vset.pattern.permute.xlu0 2
        %2018 = vperm.xlu0 %2017, %v2000
        %v2019 = vpop.permute.xlu0 %2018
        %v2022 = vsel %vm331, %v1993, 0
        %v2025 = vsel %vm331, %v1994, 0
        %v2028 = vsel %vm331, %v1995, 0
        %v2031 = vsel %vm331, %v1996, 0
        %v2034 = vsel %vm335, %v1991, 0
        %2036 = vmatpush.msra.mxu0 0.0
        %2037 = vmatpush.msra.mxu0 0.0
        %2038 = vmatpush.msra.mxu0 0.0
        %2039 = vmatpush.msra.mxu0 0.0
        %2040 = vmatpush.msra.mxu0 0.0
        %2041 = vmatpush.msra.mxu0 0.0
        %2042 = vmatpush.msra.mxu0 0.0
        %2043 = vmatpush.msra.mxu0 0.0
        %2044 = vmatpush.msra.mxu0 0.0
        %2045 = vmatpush.msra.mxu0 0.0
        %2046 = vmatpush.msra.mxu0 0.0
        %2047 = vmatpush.msra.mxu0 0.0
        %2048 = vmatpush.msra.mxu0 0.0
        %2049 = vmatpush.msra.mxu0 0.0
        %2050 = vmatpush.msra.mxu0 0.0
        %v2051 = vand.u32 %v2034, 4294901760
        %2052 = vmatpush.msra.mxu0 %v2051
        %v2053 = vand.u32 %v2022, 4294901760
        %v2054 = vsub.f32 %v2022, %v2053
        %v2055 = vand.u32 %v2054, 4294901760
        %v2056 = vsub.f32 %v2054, %v2055
        %v2057 = vand.u32 %v2056, 4294901760
        %2058 = vmatmul.f32.gmra.mxu0 %v2057
        %v2059 = vpop.f32.mrf.mxu0
        %v2060 = vadd.f32 %v2004, %v2059
        %v2061 = vand.u32 %v2025, 4294901760
        %v2062 = vsub.f32 %v2025, %v2061
        %v2063 = vand.u32 %v2062, 4294901760
        %v2064 = vsub.f32 %v2062, %v2063
        %v2065 = vand.u32 %v2064, 4294901760
        %2066 = vmatmul.f32.gmra.mxu0 %v2065
        %v2067 = vpop.f32.mrf.mxu0
        %v2068 = vadd.f32 %v2009, %v2067
        %v2069 = vand.u32 %v2028, 4294901760
        %v2070 = vsub.f32 %v2028, %v2069
        %v2071 = vand.u32 %v2070, 4294901760
        %v2072 = vsub.f32 %v2070, %v2071
        %v2073 = vand.u32 %v2072, 4294901760
        %2074 = vmatmul.f32.gmra.mxu0 %v2073
        %v2075 = vpop.f32.mrf.mxu0
        %v2076 = vadd.f32 %v2014, %v2075
        %v2077 = vand.u32 %v2031, 4294901760
        %v2078 = vsub.f32 %v2031, %v2077
        %v2079 = vand.u32 %v2078, 4294901760
        %v2080 = vsub.f32 %v2078, %v2079
        %v2081 = vand.u32 %v2080, 4294901760
        %2082 = vmatmul.f32.gmra.mxu0 %v2081
        %v2083 = vpop.f32.mrf.mxu0
        %v2084 = vadd.f32 %v2019, %v2083
        %2085 = vdwg.mxu0
        %2086 = vmatpush.msra.mxu0 0.0
        %2087 = vmatpush.msra.mxu0 0.0
        %2088 = vmatpush.msra.mxu0 0.0
        %2089 = vmatpush.msra.mxu0 0.0
        %2090 = vmatpush.msra.mxu0 0.0
        %2091 = vmatpush.msra.mxu0 0.0
        %2092 = vmatpush.msra.mxu0 0.0
        %2093 = vmatpush.msra.mxu0 0.0
        %2094 = vmatpush.msra.mxu0 0.0
        %2095 = vmatpush.msra.mxu0 0.0
        %2096 = vmatpush.msra.mxu0 0.0
        %2097 = vmatpush.msra.mxu0 0.0
        %2098 = vmatpush.msra.mxu0 0.0
        %2099 = vmatpush.msra.mxu0 0.0
        %2100 = vmatpush.msra.mxu0 0.0
        %v2101 = vand.u32 %v2034, 4294901760
        %v2102 = vsub.f32 %v2034, %v2101
        %v2103 = vand.u32 %v2102, 4294901760
        %v2104 = vsub.f32 %v2102, %v2103
        %v2105 = vand.u32 %v2104, 4294901760
        %2106 = vmatpush.msra.mxu0 %v2105
        %v2107 = vand.u32 %v2022, 4294901760
        %2108 = vmatmul.f32.gmra.mxu0 %v2107
        %v2109 = vpop.f32.mrf.mxu0
        %v2110 = vadd.f32 %v2060, %v2109
        %v2111 = vand.u32 %v2025, 4294901760
        %2112 = vmatmul.f32.gmra.mxu0 %v2111
        %v2113 = vpop.f32.mrf.mxu0
        %v2114 = vadd.f32 %v2068, %v2113
        %v2115 = vand.u32 %v2028, 4294901760
        %2116 = vmatmul.f32.gmra.mxu0 %v2115
        %v2117 = vpop.f32.mrf.mxu0
        %v2118 = vadd.f32 %v2076, %v2117
        %v2119 = vand.u32 %v2031, 4294901760
        %2120 = vmatmul.f32.gmra.mxu0 %v2119
        %v2121 = vpop.f32.mrf.mxu0
        %v2122 = vadd.f32 %v2084, %v2121
        %2123 = vdwg.mxu0
        %2124 = vmatpush.msra.mxu0 0.0
        %2125 = vmatpush.msra.mxu0 0.0
        %2126 = vmatpush.msra.mxu0 0.0
        %2127 = vmatpush.msra.mxu0 0.0
        %2128 = vmatpush.msra.mxu0 0.0
        %2129 = vmatpush.msra.mxu0 0.0
        %2130 = vmatpush.msra.mxu0 0.0
        %2131 = vmatpush.msra.mxu0 0.0
        %2132 = vmatpush.msra.mxu0 0.0
        %2133 = vmatpush.msra.mxu0 0.0
        %2134 = vmatpush.msra.mxu0 0.0
        %2135 = vmatpush.msra.mxu0 0.0
        %2136 = vmatpush.msra.mxu0 0.0
        %2137 = vmatpush.msra.mxu0 0.0
        %2138 = vmatpush.msra.mxu0 0.0
        %v2139 = vand.u32 %v2034, 4294901760
        %v2140 = vsub.f32 %v2034, %v2139
        %2141 = vmatpush.msra.mxu0 %v2140
        %v2142 = vand.u32 %v2022, 4294901760
        %v2143 = vsub.f32 %v2022, %v2142
        %2144 = vmatmul.f32.gmra.mxu0 %v2143
        %v2145 = vpop.f32.mrf.mxu0
        %v2146 = vadd.f32 %v2110, %v2145
        %v2147 = vand.u32 %v2025, 4294901760
        %v2148 = vsub.f32 %v2025, %v2147
        %2149 = vmatmul.f32.gmra.mxu0 %v2148
        %v2150 = vpop.f32.mrf.mxu0
        %v2151 = vadd.f32 %v2114, %v2150
        %v2152 = vand.u32 %v2028, 4294901760
        %v2153 = vsub.f32 %v2028, %v2152
        %2154 = vmatmul.f32.gmra.mxu0 %v2153
        %v2155 = vpop.f32.mrf.mxu0
        %v2156 = vadd.f32 %v2118, %v2155
        %v2157 = vand.u32 %v2031, 4294901760
        %v2158 = vsub.f32 %v2031, %v2157
        %2159 = vmatmul.f32.gmra.mxu0 %v2158
        %v2160 = vpop.f32.mrf.mxu0
        %v2161 = vadd.f32 %v2122, %v2160
        %2162 = vdwg.mxu0
        %2163 = vmatpush.msra.mxu0 0.0
        %2164 = vmatpush.msra.mxu0 0.0
        %2165 = vmatpush.msra.mxu0 0.0
        %2166 = vmatpush.msra.mxu0 0.0
        %2167 = vmatpush.msra.mxu0 0.0
        %2168 = vmatpush.msra.mxu0 0.0
        %2169 = vmatpush.msra.mxu0 0.0
        %2170 = vmatpush.msra.mxu0 0.0
        %2171 = vmatpush.msra.mxu0 0.0
        %2172 = vmatpush.msra.mxu0 0.0
        %2173 = vmatpush.msra.mxu0 0.0
        %2174 = vmatpush.msra.mxu0 0.0
        %2175 = vmatpush.msra.mxu0 0.0
        %2176 = vmatpush.msra.mxu0 0.0
        %2177 = vmatpush.msra.mxu0 0.0
        %v2178 = vand.u32 %v2034, 4294901760
        %2179 = vmatpush.msra.mxu0 %v2178
        %v2180 = vand.u32 %v2022, 4294901760
        %v2181 = vsub.f32 %v2022, %v2180
        %v2182 = vand.u32 %v2181, 4294901760
        %2183 = vmatmul.f32.gmra.mxu0 %v2182
        %v2184 = vpop.f32.mrf.mxu0
        %v2185 = vadd.f32 %v2146, %v2184
        %v2186 = vand.u32 %v2025, 4294901760
        %v2187 = vsub.f32 %v2025, %v2186
        %v2188 = vand.u32 %v2187, 4294901760
        %2189 = vmatmul.f32.gmra.mxu0 %v2188
        %v2190 = vpop.f32.mrf.mxu0
        %v2191 = vadd.f32 %v2151, %v2190
        %v2192 = vand.u32 %v2028, 4294901760
        %v2193 = vsub.f32 %v2028, %v2192
        %v2194 = vand.u32 %v2193, 4294901760
        %2195 = vmatmul.f32.gmra.mxu0 %v2194
        %v2196 = vpop.f32.mrf.mxu0
        %v2197 = vadd.f32 %v2156, %v2196
        %v2198 = vand.u32 %v2031, 4294901760
        %v2199 = vsub.f32 %v2031, %v2198
        %v2200 = vand.u32 %v2199, 4294901760
        %2201 = vmatmul.f32.gmra.mxu0 %v2200
        %v2202 = vpop.f32.mrf.mxu0
        %v2203 = vadd.f32 %v2161, %v2202
        %2204 = vdwg.mxu0
        %2205 = vmatpush.msra.mxu0 0.0
        %2206 = vmatpush.msra.mxu0 0.0
        %2207 = vmatpush.msra.mxu0 0.0
        %2208 = vmatpush.msra.mxu0 0.0
        %2209 = vmatpush.msra.mxu0 0.0
        %2210 = vmatpush.msra.mxu0 0.0
        %2211 = vmatpush.msra.mxu0 0.0
        %2212 = vmatpush.msra.mxu0 0.0
        %2213 = vmatpush.msra.mxu0 0.0
        %2214 = vmatpush.msra.mxu0 0.0
        %2215 = vmatpush.msra.mxu0 0.0
        %2216 = vmatpush.msra.mxu0 0.0
        %2217 = vmatpush.msra.mxu0 0.0
        %2218 = vmatpush.msra.mxu0 0.0
        %2219 = vmatpush.msra.mxu0 0.0
        %v2220 = vand.u32 %v2034, 4294901760
        %v2221 = vsub.f32 %v2034, %v2220
        %v2222 = vand.u32 %v2221, 4294901760
        %2223 = vmatpush.msra.mxu0 %v2222
        %v2224 = vand.u32 %v2022, 4294901760
        %2225 = vmatmul.f32.gmra.mxu0 %v2224
        %v2226 = vpop.f32.mrf.mxu0
        %v2227 = vadd.f32 %v2185, %v2226
        %v2228 = vand.u32 %v2025, 4294901760
        %2229 = vmatmul.f32.gmra.mxu0 %v2228
        %v2230 = vpop.f32.mrf.mxu0
        %v2231 = vadd.f32 %v2191, %v2230
        %v2232 = vand.u32 %v2028, 4294901760
        %2233 = vmatmul.f32.gmra.mxu0 %v2232
        %v2234 = vpop.f32.mrf.mxu0
        %v2235 = vadd.f32 %v2197, %v2234
        %v2236 = vand.u32 %v2031, 4294901760
        %2237 = vmatmul.f32.gmra.mxu0 %v2236
        %v2238 = vpop.f32.mrf.mxu0
        %v2239 = vadd.f32 %v2203, %v2238
        %2240 = vdwg.mxu0
        %2241 = vmatpush.msra.mxu0 0.0
        %2242 = vmatpush.msra.mxu0 0.0
        %2243 = vmatpush.msra.mxu0 0.0
        %2244 = vmatpush.msra.mxu0 0.0
        %2245 = vmatpush.msra.mxu0 0.0
        %2246 = vmatpush.msra.mxu0 0.0
        %2247 = vmatpush.msra.mxu0 0.0
        %2248 = vmatpush.msra.mxu0 0.0
        %2249 = vmatpush.msra.mxu0 0.0
        %2250 = vmatpush.msra.mxu0 0.0
        %2251 = vmatpush.msra.mxu0 0.0
        %2252 = vmatpush.msra.mxu0 0.0
        %2253 = vmatpush.msra.mxu0 0.0
        %2254 = vmatpush.msra.mxu0 0.0
        %2255 = vmatpush.msra.mxu0 0.0
        %v2256 = vand.u32 %v2034, 4294901760
        %2257 = vmatpush.msra.mxu0 %v2256
        %v2258 = vand.u32 %v2022, 4294901760
        %2259 = vmatmul.f32.gmra.mxu0 %v2258
        %v2260 = vpop.f32.mrf.mxu0
        %v2261 = vadd.f32 %v2227, %v2260
        %v2262 = vand.u32 %v2025, 4294901760
        %2263 = vmatmul.f32.gmra.mxu0 %v2262
        %v2264 = vpop.f32.mrf.mxu0
        %v2265 = vadd.f32 %v2231, %v2264
        %v2266 = vand.u32 %v2028, 4294901760
        %2267 = vmatmul.f32.gmra.mxu0 %v2266
        %v2268 = vpop.f32.mrf.mxu0
        %v2269 = vadd.f32 %v2235, %v2268
        %v2270 = vand.u32 %v2031, 4294901760
        %2271 = vmatmul.f32.gmra.mxu0 %v2270
        %v2272 = vpop.f32.mrf.mxu0
        %v2273 = vadd.f32 %v2239, %v2272
        %2274 = vdwg.mxu0
        %v2275 = vsel %vm817, %v2261, 0.0
        %2276 = vadd.xlane.f32.xlu0 %v2275
        %v2277 = vpop.xlane.xlu0 %2276
        %v2278 = vsel %vm817, %v2265, 0.0
        %2279 = vadd.xlane.f32.xlu0 %v2278
        %v2280 = vpop.xlane.xlu0 %2279
        %v2281 = vsel %vm817, %v2269, 0.0
        %2282 = vadd.xlane.f32.xlu0 %v2281
        %v2283 = vpop.xlane.xlu0 %2282
        %v2284 = vsel %vm817, %v2273, 0.0
        %2285 = vadd.xlane.f32.xlu0 %v2284
        %v2286 = vpop.xlane.xlu0 %2285
        %v2287 = vmul.f32 %v2277, %v497
        %v2288 = vmul.f32 %v2280, %v497
        %v2289 = vmul.f32 %v2283, %v497
        %v2290 = vmul.f32 %v2286, %v497
        %v2291 = vsub.f32 %v2261, %v2287
        %v2292 = vsub.f32 %v2265, %v2288
        %v2293 = vsub.f32 %v2269, %v2289
        %v2294 = vsub.f32 %v2273, %v2290
        %v2295 = vmul.f32 %v2291, %v2291
        %v2296 = vmul.f32 %v2292, %v2292
        %v2297 = vmul.f32 %v2293, %v2293
        %v2298 = vmul.f32 %v2294, %v2294
        %v2299 = vsel %vm817, %v2295, 0.0
        %2300 = vadd.xlane.f32.xlu0 %v2299
        %v2301 = vpop.xlane.xlu0 %2300
        %v2302 = vsel %vm817, %v2296, 0.0
        %2303 = vadd.xlane.f32.xlu0 %v2302
        %v2304 = vpop.xlane.xlu0 %2303
        %v2305 = vsel %vm817, %v2297, 0.0
        %2306 = vadd.xlane.f32.xlu0 %v2305
        %v2307 = vpop.xlane.xlu0 %2306
        %v2308 = vsel %vm817, %v2298, 0.0
        %2309 = vadd.xlane.f32.xlu0 %v2308
        %v2310 = vpop.xlane.xlu0 %2309
        %v2311 = vmul.f32 %v2301, %v497
        %v2312 = vmul.f32 %v2304, %v497
        %v2313 = vmul.f32 %v2307, %v497
        %v2314 = vmul.f32 %v2310, %v497
        %v2315 = vadd.f32 %v2311, 1e-05
        %v2316 = vadd.f32 %v2312, 1e-05
        %v2317 = vadd.f32 %v2313, 1e-05
        %v2318 = vadd.f32 %v2314, 1e-05
        %v2319 = vrsqrt.pop %v2315
        %v2320 = vmul.f32 %v2319, %v2315
        %v2321 = vmul.f32 %v2320, %v2319
        %v2322 = vmul.f32 0.5, %v2321
        %v2323 = vsub.f32 1.5, %v2322
        %v2324 = vmul.f32 %v2319, %v2323
        %vm2325 = vweird.f32 %v2315
        %vm2326 = vweird.f32 %v2319
        %vm2327 = vmor %vm2325, %vm2326
        %v2328 = vsel %vm2327, %v2319, %v2324
        %v2329 = vrsqrt.pop %v2316
        %v2330 = vmul.f32 %v2329, %v2316
        %v2331 = vmul.f32 %v2330, %v2329
        %v2332 = vmul.f32 0.5, %v2331
        %v2333 = vsub.f32 1.5, %v2332
        %v2334 = vmul.f32 %v2329, %v2333
        %vm2335 = vweird.f32 %v2316
        %vm2336 = vweird.f32 %v2329
        %vm2337 = vmor %vm2335, %vm2336
        %v2338 = vsel %vm2337, %v2329, %v2334
        %v2339 = vrsqrt.pop %v2317
        %v2340 = vmul.f32 %v2339, %v2317
        %v2341 = vmul.f32 %v2340, %v2339
        %v2342 = vmul.f32 0.5, %v2341
        %v2343 = vsub.f32 1.5, %v2342
        %v2344 = vmul.f32 %v2339, %v2343
        %vm2345 = vweird.f32 %v2317
        %vm2346 = vweird.f32 %v2339
        %vm2347 = vmor %vm2345, %vm2346
        %v2348 = vsel %vm2347, %v2339, %v2344
        %v2349 = vrsqrt.pop %v2318
        %v2350 = vmul.f32 %v2349, %v2318
        %v2351 = vmul.f32 %v2350, %v2349
        %v2352 = vmul.f32 0.5, %v2351
        %v2353 = vsub.f32 1.5, %v2352
        %v2354 = vmul.f32 %v2349, %v2353
        %vm2355 = vweird.f32 %v2318
        %vm2356 = vweird.f32 %v2349
        %vm2357 = vmor %vm2355, %vm2356
        %v2358 = vsel %vm2357, %v2349, %v2354
        %v2359 = vmul.f32 %v1997, %v2328
        %v2360 = vmul.f32 %v1998, %v2338
        %v2361 = vmul.f32 %v1999, %v2348
        %v2362 = vmul.f32 %v2000, %v2358
        %2364 = vset.pattern.permute.xlu0 3
        %2365 = vperm.xlu0 %2364, %v2359
        %v2366 = vpop.permute.xlu0 %2365
        %2369 = vset.pattern.permute.xlu0 3
        %2370 = vperm.xlu0 %2369, %v2360
        %v2371 = vpop.permute.xlu0 %2370
        %2374 = vset.pattern.permute.xlu0 3
        %2375 = vperm.xlu0 %2374, %v2361
        %v2376 = vpop.permute.xlu0 %2375
        %2379 = vset.pattern.permute.xlu0 3
        %2380 = vperm.xlu0 %2379, %v2362
        %v2381 = vpop.permute.xlu0 %2380
        %v2383 = vmul.f32 %v2261, %v2366
        %v2384 = vmul.f32 %v2265, %v2371
        %v2385 = vmul.f32 %v2269, %v2376
        %v2386 = vmul.f32 %v2273, %v2381
        %v2387 = vmul.f32 %v2287, %v2359
        %v2388 = vmul.f32 %v2288, %v2360
        %v2389 = vmul.f32 %v2289, %v2361
        %v2390 = vmul.f32 %v2290, %v2362
        %2395 = vrot.lane.b32.xlu0 %v2387, 1
        %v2396 = vpop.permute.xlu0 %2395
        %2397 = vrot.lane.b32.xlu0 %v2388, 1
        %v2398 = vpop.permute.xlu0 %2397
        %2399 = vrot.lane.b32.xlu0 %v2389, 1
        %v2400 = vpop.permute.xlu0 %2399
        %2401 = vrot.lane.b32.xlu0 %v2390, 1
        %v2402 = vpop.permute.xlu0 %2401
        %v2407 = vsub.f32 %v1997, %v2396
        %v2408 = vsub.f32 %v1998, %v2398
        %v2409 = vsub.f32 %v1999, %v2400
        %v2410 = vsub.f32 %v2000, %v2402
        %2412 = vset.pattern.permute.xlu0 4
        %2413 = vperm.xlu0 %2412, %v2407
        %v2414 = vpop.permute.xlu0 %2413
        %2417 = vset.pattern.permute.xlu0 4
        %2418 = vperm.xlu0 %2417, %v2408
        %v2419 = vpop.permute.xlu0 %2418
        %2422 = vset.pattern.permute.xlu0 4
        %2423 = vperm.xlu0 %2422, %v2409
        %v2424 = vpop.permute.xlu0 %2423
        %2427 = vset.pattern.permute.xlu0 4
        %2428 = vperm.xlu0 %2427, %v2410
        %v2429 = vpop.permute.xlu0 %2428
        %v2431 = vadd.f32 %v2383, %v2414
        %v2432 = vadd.f32 %v2384, %v2419
        %v2433 = vadd.f32 %v2385, %v2424
        %v2434 = vadd.f32 %v2386, %v2429
        %v2435 = vmax.f32 %v2431, 0.0
        %v2436 = vmax.f32 %v2432, 0.0
        %v2437 = vmax.f32 %v2433, 0.0
        %v2438 = vmax.f32 %v2434, 0.0
        %2439 = vset.pattern.permute.xlu0 5
        %2440 = vperm.xlu0 %2439, %v1997
        %v2441 = vpop.permute.xlu0 %2440
        %2443 = vset.pattern.permute.xlu0 5
        %2444 = vperm.xlu0 %2443, %v1998
        %v2445 = vpop.permute.xlu0 %2444
        %2447 = vset.pattern.permute.xlu0 5
        %2448 = vperm.xlu0 %2447, %v1999
        %v2449 = vpop.permute.xlu0 %2448
        %2451 = vset.pattern.permute.xlu0 5
        %2452 = vperm.xlu0 %2451, %v2000
        %v2453 = vpop.permute.xlu0 %2452
        %2455 = vrot.lane.b32.xlu0 %v1993, 124
        %v2456 = vpop.permute.xlu0 %2455
        %2457 = vrot.lane.b32.xlu0 %v1994, 124
        %v2458 = vpop.permute.xlu0 %2457
        %2459 = vrot.lane.b32.xlu0 %v1995, 124
        %v2460 = vpop.permute.xlu0 %2459
        %2461 = vrot.lane.b32.xlu0 %v1996, 124
        %v2462 = vpop.permute.xlu0 %2461
        %v2463 = vsel %vm1006, %v2456, 0
        %v2465 = vsel %vm1006, %v2458, 0
        %v2467 = vsel %vm1006, %v2460, 0
        %v2469 = vsel %vm1006, %v2462, 0
        %2471 = vmatpush.msra.mxu0 0.0
        %2472 = vmatpush.msra.mxu0 0.0
        %2473 = vmatpush.msra.mxu0 0.0
        %2474 = vmatpush.msra.mxu0 0.0
        %2475 = vmatpush.msra.mxu0 0.0
        %2476 = vmatpush.msra.mxu0 0.0
        %2477 = vmatpush.msra.mxu0 0.0
        %2478 = vmatpush.msra.mxu0 0.0
        %2479 = vmatpush.msra.mxu0 0.0
        %2480 = vmatpush.msra.mxu0 0.0
        %2481 = vmatpush.msra.mxu0 0.0
        %2482 = vmatpush.msra.mxu0 0.0
        %v2483 = vand.u32 %v2438, 4294901760
        %2484 = vmatpush.msra.mxu0 %v2483
        %v2485 = vand.u32 %v2437, 4294901760
        %2486 = vmatpush.msra.mxu0 %v2485
        %v2487 = vand.u32 %v2436, 4294901760
        %2488 = vmatpush.msra.mxu0 %v2487
        %v2489 = vand.u32 %v2435, 4294901760
        %2490 = vmatpush.msra.mxu0 %v2489
        %v2491 = vand.u32 %v2463, 4294901760
        %v2492 = vsub.f32 %v2463, %v2491
        %v2493 = vand.u32 %v2492, 4294901760
        %v2494 = vsub.f32 %v2492, %v2493
        %v2495 = vand.u32 %v2494, 4294901760
        %2496 = vmatmul.f32.gmra.mxu0 %v2495
        %v2497 = vpop.f32.mrf.mxu0
        %v2498 = vadd.f32 %v2441, %v2497
        %v2499 = vand.u32 %v2465, 4294901760
        %v2500 = vsub.f32 %v2465, %v2499
        %v2501 = vand.u32 %v2500, 4294901760
        %v2502 = vsub.f32 %v2500, %v2501
        %v2503 = vand.u32 %v2502, 4294901760
        %2504 = vmatmul.f32.gmra.mxu0 %v2503
        %v2505 = vpop.f32.mrf.mxu0
        %v2506 = vadd.f32 %v2445, %v2505
        %v2507 = vand.u32 %v2467, 4294901760
        %v2508 = vsub.f32 %v2467, %v2507
        %v2509 = vand.u32 %v2508, 4294901760
        %v2510 = vsub.f32 %v2508, %v2509
        %v2511 = vand.u32 %v2510, 4294901760
        %2512 = vmatmul.f32.gmra.mxu0 %v2511
        %v2513 = vpop.f32.mrf.mxu0
        %v2514 = vadd.f32 %v2449, %v2513
        %v2515 = vand.u32 %v2469, 4294901760
        %v2516 = vsub.f32 %v2469, %v2515
        %v2517 = vand.u32 %v2516, 4294901760
        %v2518 = vsub.f32 %v2516, %v2517
        %v2519 = vand.u32 %v2518, 4294901760
        %2520 = vmatmul.f32.gmra.mxu0 %v2519
        %v2521 = vpop.f32.mrf.mxu0
        %v2522 = vadd.f32 %v2453, %v2521
        %2523 = vdwg.mxu0
        %2524 = vmatpush.msra.mxu0 0.0
        %2525 = vmatpush.msra.mxu0 0.0
        %2526 = vmatpush.msra.mxu0 0.0
        %2527 = vmatpush.msra.mxu0 0.0
        %2528 = vmatpush.msra.mxu0 0.0
        %2529 = vmatpush.msra.mxu0 0.0
        %2530 = vmatpush.msra.mxu0 0.0
        %2531 = vmatpush.msra.mxu0 0.0
        %2532 = vmatpush.msra.mxu0 0.0
        %2533 = vmatpush.msra.mxu0 0.0
        %2534 = vmatpush.msra.mxu0 0.0
        %2535 = vmatpush.msra.mxu0 0.0
        %v2536 = vand.u32 %v2438, 4294901760
        %v2537 = vsub.f32 %v2438, %v2536
        %v2538 = vand.u32 %v2537, 4294901760
        %v2539 = vsub.f32 %v2537, %v2538
        %v2540 = vand.u32 %v2539, 4294901760
        %2541 = vmatpush.msra.mxu0 %v2540
        %v2542 = vand.u32 %v2437, 4294901760
        %v2543 = vsub.f32 %v2437, %v2542
        %v2544 = vand.u32 %v2543, 4294901760
        %v2545 = vsub.f32 %v2543, %v2544
        %v2546 = vand.u32 %v2545, 4294901760
        %2547 = vmatpush.msra.mxu0 %v2546
        %v2548 = vand.u32 %v2436, 4294901760
        %v2549 = vsub.f32 %v2436, %v2548
        %v2550 = vand.u32 %v2549, 4294901760
        %v2551 = vsub.f32 %v2549, %v2550
        %v2552 = vand.u32 %v2551, 4294901760
        %2553 = vmatpush.msra.mxu0 %v2552
        %v2554 = vand.u32 %v2435, 4294901760
        %v2555 = vsub.f32 %v2435, %v2554
        %v2556 = vand.u32 %v2555, 4294901760
        %v2557 = vsub.f32 %v2555, %v2556
        %v2558 = vand.u32 %v2557, 4294901760
        %2559 = vmatpush.msra.mxu0 %v2558
        %v2560 = vand.u32 %v2463, 4294901760
        %2561 = vmatmul.f32.gmra.mxu0 %v2560
        %v2562 = vpop.f32.mrf.mxu0
        %v2563 = vadd.f32 %v2498, %v2562
        %v2564 = vand.u32 %v2465, 4294901760
        %2565 = vmatmul.f32.gmra.mxu0 %v2564
        %v2566 = vpop.f32.mrf.mxu0
        %v2567 = vadd.f32 %v2506, %v2566
        %v2568 = vand.u32 %v2467, 4294901760
        %2569 = vmatmul.f32.gmra.mxu0 %v2568
        %v2570 = vpop.f32.mrf.mxu0
        %v2571 = vadd.f32 %v2514, %v2570
        %v2572 = vand.u32 %v2469, 4294901760
        %2573 = vmatmul.f32.gmra.mxu0 %v2572
        %v2574 = vpop.f32.mrf.mxu0
        %v2575 = vadd.f32 %v2522, %v2574
        %2576 = vdwg.mxu0
        %2577 = vmatpush.msra.mxu0 0.0
        %2578 = vmatpush.msra.mxu0 0.0
        %2579 = vmatpush.msra.mxu0 0.0
        %2580 = vmatpush.msra.mxu0 0.0
        %2581 = vmatpush.msra.mxu0 0.0
        %2582 = vmatpush.msra.mxu0 0.0
        %2583 = vmatpush.msra.mxu0 0.0
        %2584 = vmatpush.msra.mxu0 0.0
        %2585 = vmatpush.msra.mxu0 0.0
        %2586 = vmatpush.msra.mxu0 0.0
        %2587 = vmatpush.msra.mxu0 0.0
        %2588 = vmatpush.msra.mxu0 0.0
        %v2589 = vand.u32 %v2438, 4294901760
        %v2590 = vsub.f32 %v2438, %v2589
        %2591 = vmatpush.msra.mxu0 %v2590
        %v2592 = vand.u32 %v2437, 4294901760
        %v2593 = vsub.f32 %v2437, %v2592
        %2594 = vmatpush.msra.mxu0 %v2593
        %v2595 = vand.u32 %v2436, 4294901760
        %v2596 = vsub.f32 %v2436, %v2595
        %2597 = vmatpush.msra.mxu0 %v2596
        %v2598 = vand.u32 %v2435, 4294901760
        %v2599 = vsub.f32 %v2435, %v2598
        %2600 = vmatpush.msra.mxu0 %v2599
        %v2601 = vand.u32 %v2463, 4294901760
        %v2602 = vsub.f32 %v2463, %v2601
        %2603 = vmatmul.f32.gmra.mxu0 %v2602
        %v2604 = vpop.f32.mrf.mxu0
        %v2605 = vadd.f32 %v2563, %v2604
        %v2606 = vand.u32 %v2465, 4294901760
        %v2607 = vsub.f32 %v2465, %v2606
        %2608 = vmatmul.f32.gmra.mxu0 %v2607
        %v2609 = vpop.f32.mrf.mxu0
        %v2610 = vadd.f32 %v2567, %v2609
        %v2611 = vand.u32 %v2467, 4294901760
        %v2612 = vsub.f32 %v2467, %v2611
        %2613 = vmatmul.f32.gmra.mxu0 %v2612
        %v2614 = vpop.f32.mrf.mxu0
        %v2615 = vadd.f32 %v2571, %v2614
        %v2616 = vand.u32 %v2469, 4294901760
        %v2617 = vsub.f32 %v2469, %v2616
        %2618 = vmatmul.f32.gmra.mxu0 %v2617
        %v2619 = vpop.f32.mrf.mxu0
        %v2620 = vadd.f32 %v2575, %v2619
        %2621 = vdwg.mxu0
        %2622 = vmatpush.msra.mxu0 0.0
        %2623 = vmatpush.msra.mxu0 0.0
        %2624 = vmatpush.msra.mxu0 0.0
        %2625 = vmatpush.msra.mxu0 0.0
        %2626 = vmatpush.msra.mxu0 0.0
        %2627 = vmatpush.msra.mxu0 0.0
        %2628 = vmatpush.msra.mxu0 0.0
        %2629 = vmatpush.msra.mxu0 0.0
        %2630 = vmatpush.msra.mxu0 0.0
        %2631 = vmatpush.msra.mxu0 0.0
        %2632 = vmatpush.msra.mxu0 0.0
        %2633 = vmatpush.msra.mxu0 0.0
        %v2634 = vand.u32 %v2438, 4294901760
        %2635 = vmatpush.msra.mxu0 %v2634
        %v2636 = vand.u32 %v2437, 4294901760
        %2637 = vmatpush.msra.mxu0 %v2636
        %v2638 = vand.u32 %v2436, 4294901760
        %2639 = vmatpush.msra.mxu0 %v2638
        %v2640 = vand.u32 %v2435, 4294901760
        %2641 = vmatpush.msra.mxu0 %v2640
        %v2642 = vand.u32 %v2463, 4294901760
        %v2643 = vsub.f32 %v2463, %v2642
        %v2644 = vand.u32 %v2643, 4294901760
        %2645 = vmatmul.f32.gmra.mxu0 %v2644
        %v2646 = vpop.f32.mrf.mxu0
        %v2647 = vadd.f32 %v2605, %v2646
        %v2648 = vand.u32 %v2465, 4294901760
        %v2649 = vsub.f32 %v2465, %v2648
        %v2650 = vand.u32 %v2649, 4294901760
        %2651 = vmatmul.f32.gmra.mxu0 %v2650
        %v2652 = vpop.f32.mrf.mxu0
        %v2653 = vadd.f32 %v2610, %v2652
        %v2654 = vand.u32 %v2467, 4294901760
        %v2655 = vsub.f32 %v2467, %v2654
        %v2656 = vand.u32 %v2655, 4294901760
        %2657 = vmatmul.f32.gmra.mxu0 %v2656
        %v2658 = vpop.f32.mrf.mxu0
        %v2659 = vadd.f32 %v2615, %v2658
        %v2660 = vand.u32 %v2469, 4294901760
        %v2661 = vsub.f32 %v2469, %v2660
        %v2662 = vand.u32 %v2661, 4294901760
        %2663 = vmatmul.f32.gmra.mxu0 %v2662
        %v2664 = vpop.f32.mrf.mxu0
        %v2665 = vadd.f32 %v2620, %v2664
        %2666 = vdwg.mxu0
        %2667 = vmatpush.msra.mxu0 0.0
        %2668 = vmatpush.msra.mxu0 0.0
        %2669 = vmatpush.msra.mxu0 0.0
        %2670 = vmatpush.msra.mxu0 0.0
        %2671 = vmatpush.msra.mxu0 0.0
        %2672 = vmatpush.msra.mxu0 0.0
        %2673 = vmatpush.msra.mxu0 0.0
        %2674 = vmatpush.msra.mxu0 0.0
        %2675 = vmatpush.msra.mxu0 0.0
        %2676 = vmatpush.msra.mxu0 0.0
        %2677 = vmatpush.msra.mxu0 0.0
        %2678 = vmatpush.msra.mxu0 0.0
        %v2679 = vand.u32 %v2438, 4294901760
        %v2680 = vsub.f32 %v2438, %v2679
        %v2681 = vand.u32 %v2680, 4294901760
        %2682 = vmatpush.msra.mxu0 %v2681
        %v2683 = vand.u32 %v2437, 4294901760
        %v2684 = vsub.f32 %v2437, %v2683
        %v2685 = vand.u32 %v2684, 4294901760
        %2686 = vmatpush.msra.mxu0 %v2685
        %v2687 = vand.u32 %v2436, 4294901760
        %v2688 = vsub.f32 %v2436, %v2687
        %v2689 = vand.u32 %v2688, 4294901760
        %2690 = vmatpush.msra.mxu0 %v2689
        %v2691 = vand.u32 %v2435, 4294901760
        %v2692 = vsub.f32 %v2435, %v2691
        %v2693 = vand.u32 %v2692, 4294901760
        %2694 = vmatpush.msra.mxu0 %v2693
        %v2695 = vand.u32 %v2463, 4294901760
        %2696 = vmatmul.f32.gmra.mxu0 %v2695
        %v2697 = vpop.f32.mrf.mxu0
        %v2698 = vadd.f32 %v2647, %v2697
        %v2699 = vand.u32 %v2465, 4294901760
        %2700 = vmatmul.f32.gmra.mxu0 %v2699
        %v2701 = vpop.f32.mrf.mxu0
        %v2702 = vadd.f32 %v2653, %v2701
        %v2703 = vand.u32 %v2467, 4294901760
        %2704 = vmatmul.f32.gmra.mxu0 %v2703
        %v2705 = vpop.f32.mrf.mxu0
        %v2706 = vadd.f32 %v2659, %v2705
        %v2707 = vand.u32 %v2469, 4294901760
        %2708 = vmatmul.f32.gmra.mxu0 %v2707
        %v2709 = vpop.f32.mrf.mxu0
        %v2710 = vadd.f32 %v2665, %v2709
        %2711 = vdwg.mxu0
        %2712 = vmatpush.msra.mxu0 0.0
        %2713 = vmatpush.msra.mxu0 0.0
        %2714 = vmatpush.msra.mxu0 0.0
        %2715 = vmatpush.msra.mxu0 0.0
        %2716 = vmatpush.msra.mxu0 0.0
        %2717 = vmatpush.msra.mxu0 0.0
        %2718 = vmatpush.msra.mxu0 0.0
        %2719 = vmatpush.msra.mxu0 0.0
        %2720 = vmatpush.msra.mxu0 0.0
        %2721 = vmatpush.msra.mxu0 0.0
        %2722 = vmatpush.msra.mxu0 0.0
        %2723 = vmatpush.msra.mxu0 0.0
        %v2724 = vand.u32 %v2438, 4294901760
        %2725 = vmatpush.msra.mxu0 %v2724
        %v2726 = vand.u32 %v2437, 4294901760
        %2727 = vmatpush.msra.mxu0 %v2726
        %v2728 = vand.u32 %v2436, 4294901760
        %2729 = vmatpush.msra.mxu0 %v2728
        %v2730 = vand.u32 %v2435, 4294901760
        %2731 = vmatpush.msra.mxu0 %v2730
        %v2732 = vand.u32 %v2463, 4294901760
        %2733 = vmatmul.f32.gmra.mxu0 %v2732
        %v2734 = vpop.f32.mrf.mxu0
        %v2735 = vadd.f32 %v2698, %v2734
        %v2736 = vand.u32 %v2465, 4294901760
        %2737 = vmatmul.f32.gmra.mxu0 %v2736
        %v2738 = vpop.f32.mrf.mxu0
        %v2739 = vadd.f32 %v2702, %v2738
        %v2740 = vand.u32 %v2467, 4294901760
        %2741 = vmatmul.f32.gmra.mxu0 %v2740
        %v2742 = vpop.f32.mrf.mxu0
        %v2743 = vadd.f32 %v2706, %v2742
        %v2744 = vand.u32 %v2469, 4294901760
        %2745 = vmatmul.f32.gmra.mxu0 %v2744
        %v2746 = vpop.f32.mrf.mxu0
        %v2747 = vadd.f32 %v2710, %v2746
        %2748 = vdwg.mxu0
        %v2749 = vsel %vm817, %v2735, 0.0
        %2750 = vadd.xlane.f32.xlu0 %v2749
        %v2751 = vpop.xlane.xlu0 %2750
        %v2752 = vsel %vm817, %v2739, 0.0
        %2753 = vadd.xlane.f32.xlu0 %v2752
        %v2754 = vpop.xlane.xlu0 %2753
        %v2755 = vsel %vm817, %v2743, 0.0
        %2756 = vadd.xlane.f32.xlu0 %v2755
        %v2757 = vpop.xlane.xlu0 %2756
        %v2758 = vsel %vm817, %v2747, 0.0
        %2759 = vadd.xlane.f32.xlu0 %v2758
        %v2760 = vpop.xlane.xlu0 %2759
        %v2761 = vmul.f32 %v2751, %v497
        %v2762 = vmul.f32 %v2754, %v497
        %v2763 = vmul.f32 %v2757, %v497
        %v2764 = vmul.f32 %v2760, %v497
        %v2765 = vsub.f32 %v2735, %v2761
        %v2766 = vsub.f32 %v2739, %v2762
        %v2767 = vsub.f32 %v2743, %v2763
        %v2768 = vsub.f32 %v2747, %v2764
        %v2769 = vmul.f32 %v2765, %v2765
        %v2770 = vmul.f32 %v2766, %v2766
        %v2771 = vmul.f32 %v2767, %v2767
        %v2772 = vmul.f32 %v2768, %v2768
        %v2773 = vsel %vm817, %v2769, 0.0
        %2774 = vadd.xlane.f32.xlu0 %v2773
        %v2775 = vpop.xlane.xlu0 %2774
        %v2776 = vsel %vm817, %v2770, 0.0
        %2777 = vadd.xlane.f32.xlu0 %v2776
        %v2778 = vpop.xlane.xlu0 %2777
        %v2779 = vsel %vm817, %v2771, 0.0
        %2780 = vadd.xlane.f32.xlu0 %v2779
        %v2781 = vpop.xlane.xlu0 %2780
        %v2782 = vsel %vm817, %v2772, 0.0
        %2783 = vadd.xlane.f32.xlu0 %v2782
        %v2784 = vpop.xlane.xlu0 %2783
        %v2785 = vmul.f32 %v2775, %v497
        %v2786 = vmul.f32 %v2778, %v497
        %v2787 = vmul.f32 %v2781, %v497
        %v2788 = vmul.f32 %v2784, %v497
        %v2789 = vadd.f32 %v2785, 1e-05
        %v2790 = vadd.f32 %v2786, 1e-05
        %v2791 = vadd.f32 %v2787, 1e-05
        %v2792 = vadd.f32 %v2788, 1e-05
        %v2793 = vrsqrt.pop %v2789
        %v2794 = vmul.f32 %v2793, %v2789
        %v2795 = vmul.f32 %v2794, %v2793
        %v2796 = vmul.f32 0.5, %v2795
        %v2797 = vsub.f32 1.5, %v2796
        %v2798 = vmul.f32 %v2793, %v2797
        %vm2799 = vweird.f32 %v2789
        %vm2800 = vweird.f32 %v2793
        %vm2801 = vmor %vm2799, %vm2800
        %v2802 = vsel %vm2801, %v2793, %v2798
        %v2803 = vrsqrt.pop %v2790
        %v2804 = vmul.f32 %v2803, %v2790
        %v2805 = vmul.f32 %v2804, %v2803
        %v2806 = vmul.f32 0.5, %v2805
        %v2807 = vsub.f32 1.5, %v2806
        %v2808 = vmul.f32 %v2803, %v2807
        %vm2809 = vweird.f32 %v2790
        %vm2810 = vweird.f32 %v2803
        %vm2811 = vmor %vm2809, %vm2810
        %v2812 = vsel %vm2811, %v2803, %v2808
        %v2813 = vrsqrt.pop %v2791
        %v2814 = vmul.f32 %v2813, %v2791
        %v2815 = vmul.f32 %v2814, %v2813
        %v2816 = vmul.f32 0.5, %v2815
        %v2817 = vsub.f32 1.5, %v2816
        %v2818 = vmul.f32 %v2813, %v2817
        %vm2819 = vweird.f32 %v2791
        %vm2820 = vweird.f32 %v2813
        %vm2821 = vmor %vm2819, %vm2820
        %v2822 = vsel %vm2821, %v2813, %v2818
        %v2823 = vrsqrt.pop %v2792
        %v2824 = vmul.f32 %v2823, %v2792
        %v2825 = vmul.f32 %v2824, %v2823
        %v2826 = vmul.f32 0.5, %v2825
        %v2827 = vsub.f32 1.5, %v2826
        %v2828 = vmul.f32 %v2823, %v2827
        %vm2829 = vweird.f32 %v2792
        %vm2830 = vweird.f32 %v2823
        %vm2831 = vmor %vm2829, %vm2830
        %v2832 = vsel %vm2831, %v2823, %v2828
        %v2833 = vmul.f32 %v1997, %v2802
        %v2834 = vmul.f32 %v1998, %v2812
        %v2835 = vmul.f32 %v1999, %v2822
        %v2836 = vmul.f32 %v2000, %v2832
        %2838 = vset.pattern.permute.xlu0 6
        %2839 = vperm.xlu0 %2838, %v2833
        %v2840 = vpop.permute.xlu0 %2839
        %2843 = vset.pattern.permute.xlu0 6
        %2844 = vperm.xlu0 %2843, %v2834
        %v2845 = vpop.permute.xlu0 %2844
        %2848 = vset.pattern.permute.xlu0 6
        %2849 = vperm.xlu0 %2848, %v2835
        %v2850 = vpop.permute.xlu0 %2849
        %2853 = vset.pattern.permute.xlu0 6
        %2854 = vperm.xlu0 %2853, %v2836
        %v2855 = vpop.permute.xlu0 %2854
        %v2857 = vmul.f32 %v2735, %v2840
        %v2858 = vmul.f32 %v2739, %v2845
        %v2859 = vmul.f32 %v2743, %v2850
        %v2860 = vmul.f32 %v2747, %v2855
        %v2861 = vmul.f32 %v2761, %v2833
        %v2862 = vmul.f32 %v2762, %v2834
        %v2863 = vmul.f32 %v2763, %v2835
        %v2864 = vmul.f32 %v2764, %v2836
        %2869 = vrot.lane.b32.xlu0 %v2861, 1
        %v2870 = vpop.permute.xlu0 %2869
        %2871 = vrot.lane.b32.xlu0 %v2862, 1
        %v2872 = vpop.permute.xlu0 %2871
        %2873 = vrot.lane.b32.xlu0 %v2863, 1
        %v2874 = vpop.permute.xlu0 %2873
        %2875 = vrot.lane.b32.xlu0 %v2864, 1
        %v2876 = vpop.permute.xlu0 %2875
        %v2881 = vsub.f32 %v1997, %v2870
        %v2882 = vsub.f32 %v1998, %v2872
        %v2883 = vsub.f32 %v1999, %v2874
        %v2884 = vsub.f32 %v2000, %v2876
        %2886 = vset.pattern.permute.xlu0 7
        %2887 = vperm.xlu0 %2886, %v2881
        %v2888 = vpop.permute.xlu0 %2887
        %2891 = vset.pattern.permute.xlu0 7
        %2892 = vperm.xlu0 %2891, %v2882
        %v2893 = vpop.permute.xlu0 %2892
        %2896 = vset.pattern.permute.xlu0 7
        %2897 = vperm.xlu0 %2896, %v2883
        %v2898 = vpop.permute.xlu0 %2897
        %2901 = vset.pattern.permute.xlu0 7
        %2902 = vperm.xlu0 %2901, %v2884
        %v2903 = vpop.permute.xlu0 %2902
        %v2905 = vadd.f32 %v2857, %v2888
        %v2906 = vadd.f32 %v2858, %v2893
        %v2907 = vadd.f32 %v2859, %v2898
        %v2908 = vadd.f32 %v2860, %v2903
        %v2909 = vmax.f32 %v2905, 0.0
        %v2910 = vmax.f32 %v2906, 0.0
        %v2911 = vmax.f32 %v2907, 0.0
        %v2912 = vmax.f32 %v2908, 0.0
        %2913 = vrot.lane.b32.xlu0 %v1993, 92
        %v2914 = vpop.permute.xlu0 %2913
        %2915 = vrot.lane.b32.xlu0 %v1994, 92
        %v2916 = vpop.permute.xlu0 %2915
        %2917 = vrot.lane.b32.xlu0 %v1995, 92
        %v2918 = vpop.permute.xlu0 %2917
        %2919 = vrot.lane.b32.xlu0 %v1996, 92
        %v2920 = vpop.permute.xlu0 %2919
        %v2921 = vsel %vm1006, %v2914, 0
        %v2923 = vsel %vm1006, %v2916, 0
        %v2925 = vsel %vm1006, %v2918, 0
        %v2927 = vsel %vm1006, %v2920, 0
        %2929 = vmatpush.msra.mxu0 0.0
        %2930 = vmatpush.msra.mxu0 0.0
        %2931 = vmatpush.msra.mxu0 0.0
        %2932 = vmatpush.msra.mxu0 0.0
        %2933 = vmatpush.msra.mxu0 0.0
        %2934 = vmatpush.msra.mxu0 0.0
        %2935 = vmatpush.msra.mxu0 0.0
        %2936 = vmatpush.msra.mxu0 0.0
        %2937 = vmatpush.msra.mxu0 0.0
        %2938 = vmatpush.msra.mxu0 0.0
        %2939 = vmatpush.msra.mxu0 0.0
        %2940 = vmatpush.msra.mxu0 0.0
        %v2941 = vand.u32 %v2912, 4294901760
        %2942 = vmatpush.msra.mxu0 %v2941
        %v2943 = vand.u32 %v2911, 4294901760
        %2944 = vmatpush.msra.mxu0 %v2943
        %v2945 = vand.u32 %v2910, 4294901760
        %2946 = vmatpush.msra.mxu0 %v2945
        %v2947 = vand.u32 %v2909, 4294901760
        %2948 = vmatpush.msra.mxu0 %v2947
        %v2949 = vand.u32 %v2921, 4294901760
        %v2950 = vsub.f32 %v2921, %v2949
        %v2951 = vand.u32 %v2950, 4294901760
        %v2952 = vsub.f32 %v2950, %v2951
        %v2953 = vand.u32 %v2952, 4294901760
        %2954 = vmatmul.f32.gmra.mxu0 %v2953
        %v2955 = vpop.f32.mrf.mxu0
        %v2956 = vadd.f32 0.0, %v2955
        %v2957 = vand.u32 %v2923, 4294901760
        %v2958 = vsub.f32 %v2923, %v2957
        %v2959 = vand.u32 %v2958, 4294901760
        %v2960 = vsub.f32 %v2958, %v2959
        %v2961 = vand.u32 %v2960, 4294901760
        %2962 = vmatmul.f32.gmra.mxu0 %v2961
        %v2963 = vpop.f32.mrf.mxu0
        %v2964 = vand.u32 %v2925, 4294901760
        %v2965 = vsub.f32 %v2925, %v2964
        %v2966 = vand.u32 %v2965, 4294901760
        %v2967 = vsub.f32 %v2965, %v2966
        %v2968 = vand.u32 %v2967, 4294901760
        %2969 = vmatmul.f32.gmra.mxu0 %v2968
        %v2970 = vpop.f32.mrf.mxu0
        %v2971 = vand.u32 %v2927, 4294901760
        %v2972 = vsub.f32 %v2927, %v2971
        %v2973 = vand.u32 %v2972, 4294901760
        %v2974 = vsub.f32 %v2972, %v2973
        %v2975 = vand.u32 %v2974, 4294901760
        %2976 = vmatmul.f32.gmra.mxu0 %v2975
        %v2977 = vpop.f32.mrf.mxu0
        %2978 = vdwg.mxu0
        %2979 = vmatpush.msra.mxu0 0.0
        %2980 = vmatpush.msra.mxu0 0.0
        %2981 = vmatpush.msra.mxu0 0.0
        %2982 = vmatpush.msra.mxu0 0.0
        %2983 = vmatpush.msra.mxu0 0.0
        %2984 = vmatpush.msra.mxu0 0.0
        %2985 = vmatpush.msra.mxu0 0.0
        %2986 = vmatpush.msra.mxu0 0.0
        %2987 = vmatpush.msra.mxu0 0.0
        %2988 = vmatpush.msra.mxu0 0.0
        %2989 = vmatpush.msra.mxu0 0.0
        %2990 = vmatpush.msra.mxu0 0.0
        %v2991 = vand.u32 %v2912, 4294901760
        %v2992 = vsub.f32 %v2912, %v2991
        %v2993 = vand.u32 %v2992, 4294901760
        %v2994 = vsub.f32 %v2992, %v2993
        %v2995 = vand.u32 %v2994, 4294901760
        %2996 = vmatpush.msra.mxu0 %v2995
        %v2997 = vand.u32 %v2911, 4294901760
        %v2998 = vsub.f32 %v2911, %v2997
        %v2999 = vand.u32 %v2998, 4294901760
        %v3000 = vsub.f32 %v2998, %v2999
        %v3001 = vand.u32 %v3000, 4294901760
        %3002 = vmatpush.msra.mxu0 %v3001
        %v3003 = vand.u32 %v2910, 4294901760
        %v3004 = vsub.f32 %v2910, %v3003
        %v3005 = vand.u32 %v3004, 4294901760
        %v3006 = vsub.f32 %v3004, %v3005
        %v3007 = vand.u32 %v3006, 4294901760
        %3008 = vmatpush.msra.mxu0 %v3007
        %v3009 = vand.u32 %v2909, 4294901760
        %v3010 = vsub.f32 %v2909, %v3009
        %v3011 = vand.u32 %v3010, 4294901760
        %v3012 = vsub.f32 %v3010, %v3011
        %v3013 = vand.u32 %v3012, 4294901760
        %3014 = vmatpush.msra.mxu0 %v3013
        %v3015 = vand.u32 %v2921, 4294901760
        %3016 = vmatmul.f32.gmra.mxu0 %v3015
        %v3017 = vpop.f32.mrf.mxu0
        %v3018 = vadd.f32 %v2956, %v3017
        %v3019 = vand.u32 %v2923, 4294901760
        %3020 = vmatmul.f32.gmra.mxu0 %v3019
        %v3021 = vpop.f32.mrf.mxu0
        %v3022 = vand.u32 %v2925, 4294901760
        %3023 = vmatmul.f32.gmra.mxu0 %v3022
        %v3024 = vpop.f32.mrf.mxu0
        %v3025 = vand.u32 %v2927, 4294901760
        %3026 = vmatmul.f32.gmra.mxu0 %v3025
        %v3027 = vpop.f32.mrf.mxu0
        %3028 = vdwg.mxu0
        %3029 = vmatpush.msra.mxu0 0.0
        %3030 = vmatpush.msra.mxu0 0.0
        %3031 = vmatpush.msra.mxu0 0.0
        %3032 = vmatpush.msra.mxu0 0.0
        %3033 = vmatpush.msra.mxu0 0.0
        %3034 = vmatpush.msra.mxu0 0.0
        %3035 = vmatpush.msra.mxu0 0.0
        %3036 = vmatpush.msra.mxu0 0.0
        %3037 = vmatpush.msra.mxu0 0.0
        %3038 = vmatpush.msra.mxu0 0.0
        %3039 = vmatpush.msra.mxu0 0.0
        %3040 = vmatpush.msra.mxu0 0.0
        %v3041 = vand.u32 %v2912, 4294901760
        %v3042 = vsub.f32 %v2912, %v3041
        %3043 = vmatpush.msra.mxu0 %v3042
        %v3044 = vand.u32 %v2911, 4294901760
        %v3045 = vsub.f32 %v2911, %v3044
        %3046 = vmatpush.msra.mxu0 %v3045
        %v3047 = vand.u32 %v2910, 4294901760
        %v3048 = vsub.f32 %v2910, %v3047
        %3049 = vmatpush.msra.mxu0 %v3048
        %v3050 = vand.u32 %v2909, 4294901760
        %v3051 = vsub.f32 %v2909, %v3050
        %3052 = vmatpush.msra.mxu0 %v3051
        %v3053 = vand.u32 %v2921, 4294901760
        %v3054 = vsub.f32 %v2921, %v3053
        %3055 = vmatmul.f32.gmra.mxu0 %v3054
        %v3056 = vpop.f32.mrf.mxu0
        %v3057 = vadd.f32 %v3018, %v3056
        %v3058 = vand.u32 %v2923, 4294901760
        %v3059 = vsub.f32 %v2923, %v3058
        %3060 = vmatmul.f32.gmra.mxu0 %v3059
        %v3061 = vpop.f32.mrf.mxu0
        %v3062 = vand.u32 %v2925, 4294901760
        %v3063 = vsub.f32 %v2925, %v3062
        %3064 = vmatmul.f32.gmra.mxu0 %v3063
        %v3065 = vpop.f32.mrf.mxu0
        %v3066 = vand.u32 %v2927, 4294901760
        %v3067 = vsub.f32 %v2927, %v3066
        %3068 = vmatmul.f32.gmra.mxu0 %v3067
        %v3069 = vpop.f32.mrf.mxu0
        %3070 = vdwg.mxu0
        %3071 = vmatpush.msra.mxu0 0.0
        %3072 = vmatpush.msra.mxu0 0.0
        %3073 = vmatpush.msra.mxu0 0.0
        %3074 = vmatpush.msra.mxu0 0.0
        %3075 = vmatpush.msra.mxu0 0.0
        %3076 = vmatpush.msra.mxu0 0.0
        %3077 = vmatpush.msra.mxu0 0.0
        %3078 = vmatpush.msra.mxu0 0.0
        %3079 = vmatpush.msra.mxu0 0.0
        %3080 = vmatpush.msra.mxu0 0.0
        %3081 = vmatpush.msra.mxu0 0.0
        %3082 = vmatpush.msra.mxu0 0.0
        %v3083 = vand.u32 %v2912, 4294901760
        %3084 = vmatpush.msra.mxu0 %v3083
        %v3085 = vand.u32 %v2911, 4294901760
        %3086 = vmatpush.msra.mxu0 %v3085
        %v3087 = vand.u32 %v2910, 4294901760
        %3088 = vmatpush.msra.mxu0 %v3087
        %v3089 = vand.u32 %v2909, 4294901760
        %3090 = vmatpush.msra.mxu0 %v3089
        %v3091 = vand.u32 %v2921, 4294901760
        %v3092 = vsub.f32 %v2921, %v3091
        %v3093 = vand.u32 %v3092, 4294901760
        %3094 = vmatmul.f32.gmra.mxu0 %v3093
        %v3095 = vpop.f32.mrf.mxu0
        %v3096 = vadd.f32 %v3057, %v3095
        %v3097 = vand.u32 %v2923, 4294901760
        %v3098 = vsub.f32 %v2923, %v3097
        %v3099 = vand.u32 %v3098, 4294901760
        %3100 = vmatmul.f32.gmra.mxu0 %v3099
        %v3101 = vpop.f32.mrf.mxu0
        %v3102 = vand.u32 %v2925, 4294901760
        %v3103 = vsub.f32 %v2925, %v3102
        %v3104 = vand.u32 %v3103, 4294901760
        %3105 = vmatmul.f32.gmra.mxu0 %v3104
        %v3106 = vpop.f32.mrf.mxu0
        %v3107 = vand.u32 %v2927, 4294901760
        %v3108 = vsub.f32 %v2927, %v3107
        %v3109 = vand.u32 %v3108, 4294901760
        %3110 = vmatmul.f32.gmra.mxu0 %v3109
        %v3111 = vpop.f32.mrf.mxu0
        %3112 = vdwg.mxu0
        %3113 = vmatpush.msra.mxu0 0.0
        %3114 = vmatpush.msra.mxu0 0.0
        %3115 = vmatpush.msra.mxu0 0.0
        %3116 = vmatpush.msra.mxu0 0.0
        %3117 = vmatpush.msra.mxu0 0.0
        %3118 = vmatpush.msra.mxu0 0.0
        %3119 = vmatpush.msra.mxu0 0.0
        %3120 = vmatpush.msra.mxu0 0.0
        %3121 = vmatpush.msra.mxu0 0.0
        %3122 = vmatpush.msra.mxu0 0.0
        %3123 = vmatpush.msra.mxu0 0.0
        %3124 = vmatpush.msra.mxu0 0.0
        %v3125 = vand.u32 %v2912, 4294901760
        %v3126 = vsub.f32 %v2912, %v3125
        %v3127 = vand.u32 %v3126, 4294901760
        %3128 = vmatpush.msra.mxu0 %v3127
        %v3129 = vand.u32 %v2911, 4294901760
        %v3130 = vsub.f32 %v2911, %v3129
        %v3131 = vand.u32 %v3130, 4294901760
        %3132 = vmatpush.msra.mxu0 %v3131
        %v3133 = vand.u32 %v2910, 4294901760
        %v3134 = vsub.f32 %v2910, %v3133
        %v3135 = vand.u32 %v3134, 4294901760
        %3136 = vmatpush.msra.mxu0 %v3135
        %v3137 = vand.u32 %v2909, 4294901760
        %v3138 = vsub.f32 %v2909, %v3137
        %v3139 = vand.u32 %v3138, 4294901760
        %3140 = vmatpush.msra.mxu0 %v3139
        %v3141 = vand.u32 %v2921, 4294901760
        %3142 = vmatmul.f32.gmra.mxu0 %v3141
        %v3143 = vpop.f32.mrf.mxu0
        %v3144 = vadd.f32 %v3096, %v3143
        %v3145 = vand.u32 %v2923, 4294901760
        %3146 = vmatmul.f32.gmra.mxu0 %v3145
        %v3147 = vpop.f32.mrf.mxu0
        %v3148 = vand.u32 %v2925, 4294901760
        %3149 = vmatmul.f32.gmra.mxu0 %v3148
        %v3150 = vpop.f32.mrf.mxu0
        %v3151 = vand.u32 %v2927, 4294901760
        %3152 = vmatmul.f32.gmra.mxu0 %v3151
        %v3153 = vpop.f32.mrf.mxu0
        %3154 = vdwg.mxu0
        %3155 = vmatpush.msra.mxu0 0.0
        %3156 = vmatpush.msra.mxu0 0.0
        %3157 = vmatpush.msra.mxu0 0.0
        %3158 = vmatpush.msra.mxu0 0.0
        %3159 = vmatpush.msra.mxu0 0.0
        %3160 = vmatpush.msra.mxu0 0.0
        %3161 = vmatpush.msra.mxu0 0.0
        %3162 = vmatpush.msra.mxu0 0.0
        %3163 = vmatpush.msra.mxu0 0.0
        %3164 = vmatpush.msra.mxu0 0.0
        %3165 = vmatpush.msra.mxu0 0.0
        %3166 = vmatpush.msra.mxu0 0.0
        %v3167 = vand.u32 %v2912, 4294901760
        %3168 = vmatpush.msra.mxu0 %v3167
        %v3169 = vand.u32 %v2911, 4294901760
        %3170 = vmatpush.msra.mxu0 %v3169
        %v3171 = vand.u32 %v2910, 4294901760
        %3172 = vmatpush.msra.mxu0 %v3171
        %v3173 = vand.u32 %v2909, 4294901760
        %3174 = vmatpush.msra.mxu0 %v3173
        %v3175 = vand.u32 %v2921, 4294901760
        %3176 = vmatmul.f32.gmra.mxu0 %v3175
        %v3177 = vpop.f32.mrf.mxu0
        %v3178 = vadd.f32 %v3144, %v3177
        %v3179 = vand.u32 %v2923, 4294901760
        %3180 = vmatmul.f32.gmra.mxu0 %v3179
        %v3181 = vpop.f32.mrf.mxu0
        %v3182 = vand.u32 %v2925, 4294901760
        %3183 = vmatmul.f32.gmra.mxu0 %v3182
        %v3184 = vpop.f32.mrf.mxu0
        %v3185 = vand.u32 %v2927, 4294901760
        %3186 = vmatmul.f32.gmra.mxu0 %v3185
        %v3187 = vpop.f32.mrf.mxu0
        %3188 = vdwg.mxu0
        %3190 = vset.pattern.permute.xlu0 8
        %3191 = vperm.xlu0 %3190, %v1951
        %v3192 = vpop.permute.xlu0 %3191
        %v3194 = vadd.f32 %v3178, %v3192
        %v3195 = vsel %vm487, %v3194, 0.0
        %3196 = vadd.xlane.f32.xlu0 %v3195
        %v3197 = vpop.xlane.xlu0 %3196
        %v3198 = vmul.f32 %v3197, %v497
        %v3199 = vsub.f32 %v3194, %v3198
        %v3200 = vmul.f32 %v3199, %v3199
        %v3201 = vsel %vm487, %v3200, 0.0
        %3202 = vadd.xlane.f32.xlu0 %v3201
        %v3203 = vpop.xlane.xlu0 %3202
        %v3204 = vmul.f32 %v3203, %v497
        %v3205 = vadd.f32 %v3204, 1e-05
        %v3206 = vrsqrt.pop %v3205
        %v3207 = vmul.f32 %v3206, %v3205
        %v3208 = vmul.f32 %v3207, %v3206
        %v3209 = vmul.f32 0.5, %v3208
        %v3210 = vsub.f32 1.5, %v3209
        %v3211 = vmul.f32 %v3206, %v3210
        %vm3212 = vweird.f32 %v3205
        %vm3213 = vweird.f32 %v3206
        %vm3214 = vmor %vm3212, %vm3213
        %v3215 = vsel %vm3214, %v3206, %v3211
        %v3216 = vmul.f32 %v1951, %v3215
        %3218 = vset.pattern.permute.xlu0 9
        %3219 = vperm.xlu0 %3218, %v3216
        %v3220 = vpop.permute.xlu0 %3219
        %v3222 = vmul.f32 %v3194, %v3220
        %v3223 = vmul.f32 %v3198, %v3216
        %3225 = vrot.lane.b32.xlu0 %v3223, 1
        %v3226 = vpop.permute.xlu0 %3225
        %v3228 = vsub.f32 %v1951, %v3226
        %3230 = vset.pattern.permute.xlu0 10
        %3231 = vperm.xlu0 %3230, %v3228
        %v3232 = vpop.permute.xlu0 %3231
        %v3234 = vadd.f32 %v3222, %v3232
        %s3235 = sld [smem:[#allocation5 + %s1797]]
        %v3236 = vmul.f32 %v3234, %v1949
        %v3237 = vsel %vm487, %v3236, 0.0
        %v3238 = vrot.slane %v3237, 4
        %v3239 = vadd.f32 %v3237, %v3238
        %v3240 = vrot.slane %v3239, 2
        %v3241 = vadd.f32 %v3239, %v3240
        %v3242 = vrot.slane %v3241, 1
        %v3243 = vadd.f32 %v3241, %v3242
        %v3244 = vstv %s3235
        %v3245 = vmul.f32 %v3244, %v3243
        %v3246 = vadd.f32 %v1790, %v3245
        %s3247 = sld [smem:[#allocation6 + %s1797]]
        %v3248 = vstv %s3247
        %v3249 = vmul.f32 %v3248, %v1795
        %v3250 = vadd.f32 %v1795, %v3249
        %v3251 = vadd.f32 %v3250, %v1949
        %s3252 = scalar_lea.vmem %s295, 4 [#allocation9]
        %3253 = vst.msk [vmem:[%s3252] sm:$0xf] %vm487, %v3251
        %3254 = vst.msk [vmem:[#allocation2] sm:$0xf] %vm487, %v3251
        %vm3255 = vcmask 122880
        %3256 = vst.msk [vmem:[#allocation3] sm:$0x1] %vm3255, %v3246
        %p3257 = scmp.eq.s32.totalorder %s37, 1
        // Predicated region
        $region45: #{tpu_custom_call.1} parent=39 // pred_check
          %p3258 = pneg %p3257
        $region46: #{tpu_custom_call.1} parent=39 // pred_check_branch
          %3260 = sbr.rel (%p3258) target = $region48
        $region47: #{tpu_custom_call.1} parent=39 // pred_region
          %3261 = vst.msk [vmem:[#allocation7] sm:$0x1] %vm3255, %v3246
        $region48: #{tpu_custom_call.1} parent=39 // pred_fallthru
          _
        %s3262 = sand.u32 %s186, 1
        %s3263 = scalar_lea.sflag [#allocation10], %s3262
        %s3264 = sand.u32 %s186, 1
        %s3265 = smul.addr %s3264, 8
        %s3266 = scalar_lea.vmem [#allocation9], %s3265
        // Predicated region
        $region49: #{tpu_custom_call.1} parent=39 // pred_check
          %p3267 = pneg %p170
        $region50: #{tpu_custom_call.1} parent=39 // pred_check_branch
          %3269 = sbr.rel (%p3267) target = $region52
        $region51: #{tpu_custom_call.1} parent=39 // pred_region
          %3271 = vsyncadd [#allocation8], 0
          %s3273 = sshll.u32 [#allocation7], 4
          %s3274 = int_to_ptr.vmem [resolvable:$true] %s3273
          %s3275 = sshll.u32 %s7, 4
          %s3276 = int_to_ptr.hbm [resolvable:$true] %s3275
          %3278 = dma.vmem_to_hbm [thread:$0]  %s3274, 16, %s3276, [#allocation8]
        $region52: #{tpu_custom_call.1} parent=39 // pred_fallthru
          _
        // Predicated region
        $region53: #{tpu_custom_call.1} parent=39 // pred_check
          %p3279 = pneg %p196
        $region54: #{tpu_custom_call.1} parent=39 // pred_check_branch
          %3281 = sbr.rel (%p3279) target = $region56
        $region55: #{tpu_custom_call.1} parent=39 // pred_region
          %s3282 = smul.u32 2, %s37
          %3284 = vsyncadd %s3263, 0
          %s3285 = smul.addr %s3282, 4
          %s3286 = scalar_lea.hbm %s8, %s3285
          %s3287 = sshll.u32 %s3266, 4
          %s3288 = int_to_ptr.vmem [resolvable:$true] %s3287
          %s3289 = sshll.u32 %s3286, 4
          %s3290 = int_to_ptr.hbm [resolvable:$true] %s3289
          %3295 = dma.vmem_to_hbm [thread:$0]  %s3288, 128, %s3290, %s3263, 64, 64, 4
        $region56: #{tpu_custom_call.1} parent=39 // pred_fallthru
          _
        // Predicated region
        $region57: #{tpu_custom_call.1} parent=39 // pred_check
          %p3296 = pneg %p170
        $region58: #{tpu_custom_call.1} parent=39 // pred_check_branch
          %3298 = sbr.rel (%p3296) target = $region60
        $region59: #{tpu_custom_call.1} parent=39 // pred_region
          %3300 = dma.done [#allocation8], 16
        $region60: #{tpu_custom_call.1} parent=39 // pred_fallthru
          _
      $region40: #{tpu_custom_call.1} parent=5 // pred_fallthru
        _
      %p3301 = scmp.le.s32.totalorder 2, %s32
      // Predicated region
      $region61: #{tpu_custom_call.1} parent=5 // pred_check
        %p3302 = pneg %p3301
      $region62: #{tpu_custom_call.1} parent=5 // pred_check_branch
        %3304 = sbr.rel (%p3302) target = $region64
      $region63: #{tpu_custom_call.1} parent=5 // pred_region
        %s3305 = ssub.s32 %s32, 2
        // Predicated region
        $region65: #{tpu_custom_call.1} parent=63 // pred_check
          %p3306 = pneg %p202
        $region66: #{tpu_custom_call.1} parent=63 // pred_check_branch
          %3308 = sbr.rel (%p3306) target = $region68
        $region67: #{tpu_custom_call.1} parent=63 // pred_region
          %s3309 = sand.u32 %s187, 1
          %s3310 = scalar_lea.sflag [#allocation10], %s3309
          %s3311 = sand.u32 %s187, 1
          %s3312 = smul.addr %s3311, 8
          %s3313 = scalar_lea.vmem [#allocation9], %s3312
          %3315 = dma.done %s3310, 128
        $region68: #{tpu_custom_call.1} parent=63 // pred_fallthru
          _
      $region64: #{tpu_custom_call.1} parent=5 // pred_fallthru
        _
    $region6: #{tpu_custom_call.1} parent=1 // loop_footer
      %s36 = sadd.s32 1, %s32
    $region7: #{tpu_custom_call.1} parent=1 // loop_footer_branch
      %31 = sbr.rel target = $region3
    $region8: #{tpu_custom_call.1} parent=1 // loop_exit
      _
    %3316 = vsyncpa [#allocation8], 1
    %s3317 = scalar_lea.sflag [#allocation8], 1
    %3318 = vsyncpa %s3317, 1
    %3319 = vsyncpa [#allocation10], 1
    %s3320 = scalar_lea.sflag [#allocation10], 1
    %3321 = vsyncpa %s3320, 1

</llo_original>
